<compile_context>
chip_gen: v5e
topology: v5e:2x2
jax: 0.10.0
libtpu: 0.0.40
codegen_flags: <defaults>
</compile_context>

<pallas_src>
import functools

import numpy as np
import jax
import jax.numpy as jnp
from jax.experimental import pallas as pl
from jax.experimental.pallas import tpu as pltpu


def _ray_encoder_kernel(vd_ref, m_ref, w_ref, b_ref, out_ref, act_ref, *,
                        kh, TBP, E):
    """Grid = (frame block i [parallel], feature tile j [arbitrary, innermost]).

    vd_ref  : [TB*Hp, kh, Wp, kw*3] f32   ray directions (free host reshape)
    m_ref   : [kw*3, 3 + E]         f32   fused horizontal-mean + 2**f matrix
    w_ref   : [3 + 2E, td]          mxu   fused projection weight tile (weight.T)
    b_ref   : [1, td]               f32   bias tile
    out_ref : [TB*P, td]            out   output tile (lane-dense)
    act_ref : [TB*P, 3 + 2E]        mxu   packed [pooled, sin, cos] activations
    (E = 3*F)
    """
    j = pl.program_id(1)

    # ---- phase 1: pooling + frequency embedding, once per frame block --------
    # NOTE: the act_ref caching below is only valid while the d-tile axis (j) is
    # the innermost, sequentially executed ("arbitrary") grid axis.
    @pl.when(j == 0)
    def _build_activations():
        # vertical part of the adaptive mean: sum the kh pixel rows of each patch row
        s = vd_ref[:, 0]
        for r in range(1, kh):
            s = s + vd_ref[:, r]                       # [TB*Hp, Wp, kw*3]
        # collapse (patch-row group, Wp) -> patch rows.  Layout-preserving (free)
        # when Wp % 8 == 0; otherwise a one-off in-VMEM relayout per frame block.
        rowsum = s.reshape(TBP, -1)                    # [TB*P, kw*3]
        # horizontal mean + per-channel 2**f scaling as ONE tiny constant matmul
        pe = jnp.dot(rowsum, m_ref[...],
                     preferred_element_type=jnp.float32)   # [TB*P, 3 + 3F]
        pooled = pe[:, 0:3]
        emb = pe[:, 3:]                                 # [TB*P, 3F], f32
        # lane-dense transcendentals, packed into one MXU-ready scratch buffer
        act_ref[:, 0:3] = pooled.astype(act_ref.dtype)
        act_ref[:, 3:3 + E] = jnp.sin(emb).astype(act_ref.dtype)
        act_ref[:, 3 + E:] = jnp.cos(emb).astype(act_ref.dtype)

    # ---- phase 2: single fused projection matmul per d-tile ------------------
    acc = jnp.dot(act_ref[...], w_ref[...], preferred_element_type=jnp.float32)
    out_ref[...] = (acc + b_ref[...]).astype(out_ref.dtype)


def prepare_ray_encoder_params(weight, bias, view_freq, mxu_dtype=jnp.bfloat16):
    """Once-per-model host prep (hoist out of the per-call path).

    weight: [D, 3 + 6F] (PyTorch nn.Linear layout), bias: [D], view_freq: [F].
    The fused projection weight is weight.T cast to `mxu_dtype` (bf16 default =
    the MXU fast path on v5e/v6e/v7x).  Pass mxu_dtype=jnp.float32 for an f32
    MXU path."""
    weight = jnp.asarray(weight)
    D, in_dim = weight.shape
    F = int(np.shape(view_freq)[0])
    assert in_dim == 3 + 6 * F
    w_fused = weight.T.astype(mxu_dtype)                      # [3+6F, D]
    b2 = jnp.asarray(bias).astype(jnp.float32).reshape(1, D)  # [1, D]
    freq = np.asarray(view_freq, dtype=np.float32)            # [F] host constant
    return w_fused, b2, freq


def _build_pool_emb_matrix(kh, kw, freq):
    """[kw*3, 3+3F] constant: horizontal row-sums -> [pooled(3), emb(3F)].

    pooled[c]     = (1/(kh*kw)) * sum_dw rowsum[dw*3 + c]
    emb[c*F + f]  = pooled[c] * freq[f]
    """
    F = int(freq.shape[0])
    inv_area = np.float32(1.0 / (kh * kw))
    M = np.zeros((kw * 3, 3 + 3 * F), dtype=np.float32)
    for dw in range(kw):
        for c in range(3):
            row = dw * 3 + c
            M[row, c] = inv_area
            M[row, 3 + c * F: 3 + (c + 1) * F] = inv_area * freq
    return jnp.asarray(M)


def ray_direction_encoder_image(rays_d, params, num_patches, H=None, W=None,
                                is_normalized=True, out_dtype=jnp.bfloat16,
                                frames_per_block=None, d_block=None):
    """rays_d: [B, T, HW, 3].  Returns [B, T, num_patches, feature_dim]."""
    w_fused, b2, freq = params
    B, T, HW, C = rays_d.shape
    assert C == 3
    if H is None or W is None:
        H = W = int(round(HW ** 0.5))
    assert H * W == HW
    Hp = Wp = int(round(num_patches ** 0.5))
    P = Hp * Wp
    assert P == num_patches
    F = int(freq.shape[0])
    K = 3 + 6 * F
    D = int(b2.shape[1])
    assert w_fused.shape == (K, D)
    # TODO(synk): support uneven adaptive_avg_pool2d bins (H % Hp != 0); the
    # deployed config (H = W = patch_size * sqrt(num_patches)) divides evenly.
    assert H % Hp == 0 and W % Wp == 0
    kh, kw = H // Hp, W // Wp

    # pooling / normalization always in f32, even for bf16 ray inputs
    vd = rays_d.astype(jnp.float32)
    if not is_normalized:
        vd = vd / jnp.maximum(jnp.linalg.norm(vd, axis=-1, keepdims=True), 1e-12)

    BT = B * T
    if frames_per_block is None:
        # amortize per-grid-step overhead but keep >= 2 parallel steps (v7x: 2 TCs)
        frames_per_block = 1
        for cand in (2, 4):
            if BT % cand == 0 and BT // cand >= 2:
                frames_per_block = cand
    TB = frames_per_block
    assert BT % TB == 0
    # flat [BT*P, D] output blocks need a sublane-aligned first dim unless the
    # block spans the whole array.
    # TODO(synk): patch-row parallel split for odd P / single-frame calls on v7x.
    if (TB * P) % 8 != 0 and TB != BT:
        TB = BT

    if d_block is None:
        if D <= 512:
            d_block = D
        else:
            d_block = D
            for cand in (512, 384, 256, 128):
                if D % cand == 0:
                    d_block = cand
                    break
    td = d_block
    assert D % td == 0 and (td == D or td % 128 == 0)

    # free, contiguous reshape: rows = (frame, patch-row); minor dims keep the
    # interleaved (Wp, kw, 3) pixel layout so no host-side transpose is needed.
    vd = vd.reshape(BT * Hp, kh, Wp, kw * 3)
    m_mat = _build_pool_emb_matrix(kh, kw, freq)              # [kw*3, 3+3F]

    # per-step VMEM budget (double-buffered blocks + lane-padded scratch)
    mxu_bytes = jnp.dtype(w_fused.dtype).itemsize
    out_bytes = jnp.dtype(out_dtype).itemsize
    est = 2 * (TB * Hp * kh * Wp * kw * 3 * 4                 # vd block
               + TB * P * td * out_bytes                      # out block
               + K * td * mxu_bytes                           # weight tile
               + td * 4                                       # bias tile
               + kw * 3 * max(3 + 3 * F, 128) * 4)            # pool/emb matrix
    est += TB * P * max(K, 128) * mxu_bytes                   # packed activations
    est += 2 << 20
    vmem_limit = None
    if est > 30 * (1 << 20):
        vmem_limit = min(int(est * 1.25), 96 * (1 << 20))

    grid = (BT // TB, D // td)
    kernel = functools.partial(_ray_encoder_kernel, kh=kh, TBP=TB * P, E=3 * F)
    out = pl.pallas_call(
        kernel,
        out_shape=jax.ShapeDtypeStruct((BT * P, D), out_dtype),
        grid_spec=pltpu.PrefetchScalarGridSpec(
            num_scalar_prefetch=0,
            grid=grid,
            in_specs=[
                pl.BlockSpec((TB * Hp, kh, Wp, kw * 3),
                             lambda i, j: (i, 0, 0, 0)),      # ray dirs, per frame blk
                pl.BlockSpec((kw * 3, 3 + 3 * F),
                             lambda i, j: (0, 0)),            # fused pool/emb matrix
                pl.BlockSpec((K, td), lambda i, j: (0, j)),   # fused weight tile
                pl.BlockSpec((1, td), lambda i, j: (0, j)),   # bias tile
            ],
            out_specs=pl.BlockSpec((TB * P, td), lambda i, j: (i, j)),
            scratch_shapes=[
                pltpu.VMEM((TB * P, K), w_fused.dtype),       # packed activations
            ],
        ),
        compiler_params=pltpu.CompilerParams(
            dimension_semantics=("parallel", "arbitrary"),
            vmem_limit_bytes=vmem_limit),
    )(vd, m_mat, w_fused, b2)
    return out.reshape(B, T, P, D)


if __name__ == "__main__":
    # Small shapes consistent with the module: B x T frames of H*W ray
    # directions, pooled to num_patches patches, projected to feature_dim.
    B, T = 2, 2
    H = W = 16
    HW = H * W
    num_patches = 64            # Hp = Wp = 8 (2x2 pooling windows)
    view_base_pe = 4            # F = 4 -> in_dim = 3 + 6*4 = 27
    feature_dim = 256           # multiple of 128 -> lane-dense output (3584 real)
    in_dim = 3 + 6 * view_base_pe

    key = jax.random.PRNGKey(0)
    k1, k2, k3 = jax.random.split(key, 3)

    # is_normalized=True path: unit ray directions
    raw = jax.random.normal(k1, (B, T, HW, 3), dtype=jnp.float32)
    rays_d = raw / jnp.linalg.norm(raw, axis=-1, keepdims=True)

    # deterministic nn.Linear params (PyTorch layout: weight [out, in], bias [out])
    weight = jax.random.normal(k2, (feature_dim, in_dim), dtype=jnp.float32) * 0.02
    bias = jax.random.normal(k3, (feature_dim,), dtype=jnp.float32) * 0.02
    view_freq = 2.0 ** jnp.arange(view_base_pe, dtype=jnp.float32)

    # ---- pure-JAX reference mirroring the PyTorch forward ----
    Hp = Wp = int(num_patches ** 0.5)
    kh, kw = H // Hp, W // Wp
    pooled = rays_d.reshape(B, T, Hp, kh, Wp, kw, 3).mean(axis=(3, 5))
    pooled = pooled.reshape(B, T, num_patches, 3)
    emb = (pooled[..., None] * view_freq).reshape(B, T, num_patches, -1)
    full = jnp.concatenate([pooled, jnp.sin(emb), jnp.cos(emb)], axis=-1)
    ref = np.asarray(full @ weight.T + bias)

    # f32 MXU operands + f32 output (tight path)
    params_f32 = prepare_ray_encoder_params(weight, bias, view_freq,
                                            mxu_dtype=jnp.float32)
    out_f32 = jax.block_until_ready(
        ray_direction_encoder_image(rays_d, params_f32, num_patches, H=H, W=W,
                                    out_dtype=jnp.float32))
    assert out_f32.shape == (B, T, num_patches, feature_dim)
    np.testing.assert_allclose(np.asarray(out_f32), ref, atol=1e-2, rtol=1e-2)

    # default fast path: bf16 MXU operands + bf16 output (bandwidth-optimal)
    params_bf16 = prepare_ray_encoder_params(weight, bias, view_freq)
    out_bf16 = jax.block_until_ready(
        ray_direction_encoder_image(rays_d, params_bf16, num_patches, H=H, W=W))
    assert out_bf16.shape == (B, T, num_patches, feature_dim)
    assert out_bf16.dtype == jnp.bfloat16
    np.testing.assert_allclose(np.asarray(out_bf16.astype(jnp.float32)), ref,
                               atol=3e-2, rtol=3e-2)

    print("KERNEL_OK")
</pallas_src>

<mosaic_0001>
module attributes {stable_mosaic.version = 11 : i64} {
  func.func @_ray_encoder_kernel(%arg0: i32, %arg1: i32, %arg2: memref<16x2x8x6xf32, #tpu.memory_space<vmem>>, %arg3: memref<6x15xf32, #tpu.memory_space<vmem>>, %arg4: memref<27x256xf32, #tpu.memory_space<vmem>>, %arg5: memref<1x256xf32, #tpu.memory_space<vmem>>, %arg6: memref<128x256xf32, #tpu.memory_space<vmem>>, %arg7: memref<128x27xf32, #tpu.memory_space<vmem>>) attributes {dimension_semantics = [#tpu.dimension_semantics<parallel>, #tpu.dimension_semantics<arbitrary>], iteration_bounds = array<i64: 2, 1>, scalar_prefetch = 0 : i64, scratch_operands = 1 : i64, tpu.core_type = #tpu.core_type<tc>, window_params = [{transform_indices = @transform_0, window_bounds = array<i64: 16, 2, 8, 6>}, {pipeline_mode = #tpu.pipeline_mode<synchronous>, transform_indices = @transform_1, window_bounds = array<i64: 6, 15>}, {transform_indices = @transform_2, window_bounds = array<i64: 27, 256>}, {transform_indices = @transform_3, window_bounds = array<i64: 1, 256>}, {transform_indices = @transform_4, window_bounds = array<i64: 128, 256>}]} {
    %c0_i32 = arith.constant 0 : i32
    %0 = arith.cmpi eq, %arg1, %c0_i32 : i32
    %1 = arith.extui %0 : i1 to i32
    %c0_i32_0 = arith.constant 0 : i32
    %2 = arith.cmpi ne, %1, %c0_i32_0 : i32
    scf.if %2 {
      %c0_8 = arith.constant 0 : index
      %c0_9 = arith.constant 0 : index
      %c0_10 = arith.constant 0 : index
      %c0_11 = arith.constant 0 : index
      %10 = vector.load %arg2[%c0_8, %c0_9, %c0_10, %c0_11] : memref<16x2x8x6xf32, #tpu.memory_space<vmem>>, vector<16x1x8x6xf32>
      %11 = vector.shape_cast %10 : vector<16x1x8x6xf32> to vector<16x8x6xf32>
      %c0_12 = arith.constant 0 : index
      %c1 = arith.constant 1 : index
      %c0_13 = arith.constant 0 : index
      %c0_14 = arith.constant 0 : index
      %12 = vector.load %arg2[%c0_12, %c1, %c0_13, %c0_14] : memref<16x2x8x6xf32, #tpu.memory_space<vmem>>, vector<16x1x8x6xf32>
      %13 = vector.shape_cast %12 : vector<16x1x8x6xf32> to vector<16x8x6xf32>
      %14 = arith.addf %11, %13 : vector<16x8x6xf32>
      %15 = vector.shape_cast %14 : vector<16x8x6xf32> to vector<128x6xf32>
      %c0_15 = arith.constant 0 : index
      %c0_16 = arith.constant 0 : index
      %16 = vector.load %arg3[%c0_15, %c0_16] : memref<6x15xf32, #tpu.memory_space<vmem>>, vector<6x15xf32>
      %cst_17 = arith.constant dense<0.000000e+00> : vector<128x15xf32>
      %17 = tpu.matmul %15, %16, %cst_17 {dimension_numbers = #tpu.dot_dimension_numbers<[1], [0], [0], [1], [0, 0, 1, 1], [], []>} : vector<128x6xf32>, vector<6x15xf32>, vector<128x15xf32> -> vector<128x15xf32>
      %18 = vector.extract_strided_slice %17 {offsets = [0, 0], sizes = [128, 3], strides = [1, 1]} : vector<128x15xf32> to vector<128x3xf32>
      %19 = vector.extract_strided_slice %17 {offsets = [0, 3], sizes = [128, 12], strides = [1, 1]} : vector<128x15xf32> to vector<128x12xf32>
      %c0_18 = arith.constant 0 : index
      %c0_19 = arith.constant 0 : index
      %20 = vector.load %arg7[%c0_18, %c0_19] : memref<128x27xf32, #tpu.memory_space<vmem>>, vector<128x3xf32>
      tpu.vector_store %arg7[%c0_18, %c0_19], %18 {strides = array<i32>} : memref<128x27xf32, #tpu.memory_space<vmem>>, vector<128x3xf32>,
      %21 = math.sin %19 : vector<128x12xf32>
      %c0_20 = arith.constant 0 : index
      %c3 = arith.constant 3 : index
      %22 = vector.load %arg7[%c0_20, %c3] : memref<128x27xf32, #tpu.memory_space<vmem>>, vector<128x12xf32>
      tpu.vector_store %arg7[%c0_20, %c3], %21 {strides = array<i32>} : memref<128x27xf32, #tpu.memory_space<vmem>>, vector<128x12xf32>,
      %23 = math.cos %19 : vector<128x12xf32>
      %c0_21 = arith.constant 0 : index
      %c15 = arith.constant 15 : index
      %24 = vector.load %arg7[%c0_21, %c15] : memref<128x27xf32, #tpu.memory_space<vmem>>, vector<128x12xf32>
      tpu.vector_store %arg7[%c0_21, %c15], %23 {strides = array<i32>} : memref<128x27xf32, #tpu.memory_space<vmem>>, vector<128x12xf32>,
    } else {
    }
    %c0 = arith.constant 0 : index
    %c0_1 = arith.constant 0 : index
    %3 = vector.load %arg7[%c0, %c0_1] : memref<128x27xf32, #tpu.memory_space<vmem>>, vector<128x27xf32>
    %c0_2 = arith.constant 0 : index
    %c0_3 = arith.constant 0 : index
    %4 = vector.load %arg4[%c0_2, %c0_3] : memref<27x256xf32, #tpu.memory_space<vmem>>, vector<27x256xf32>
    %cst = arith.constant dense<0.000000e+00> : vector<128x256xf32>
    %5 = tpu.matmul %3, %4, %cst {dimension_numbers = #tpu.dot_dimension_numbers<[1], [0], [0], [1], [0, 0, 1, 1], [], []>} : vector<128x27xf32>, vector<27x256xf32>, vector<128x256xf32> -> vector<128x256xf32>
    %c0_4 = arith.constant 0 : index
    %c0_5 = arith.constant 0 : index
    %6 = vector.load %arg5[%c0_4, %c0_5] : memref<1x256xf32, #tpu.memory_space<vmem>>, vector<1x256xf32>
    %7 = vector.broadcast %6 : vector<1x256xf32> to vector<128x256xf32>
    %8 = arith.addf %5, %7 : vector<128x256xf32>
    %c0_6 = arith.constant 0 : index
    %c0_7 = arith.constant 0 : index
    %9 = vector.load %arg6[%c0_6, %c0_7] : memref<128x256xf32, #tpu.memory_space<vmem>>, vector<128x256xf32>
    tpu.vector_store %arg6[%c0_6, %c0_7], %8 {strides = array<i32>} : memref<128x256xf32, #tpu.memory_space<vmem>>, vector<128x256xf32>,
    return
  }
  func.func @transform_0(%arg0: i32, %arg1: i32) -> (i32, i32, i32, i32) {
    %c0_i32 = arith.constant 0 : i32
    %c0_i32_0 = arith.constant 0 : i32
    %c0_i32_1 = arith.constant 0 : i32
    %c0_i32_2 = arith.constant 0 : i32
    return %arg0, %c0_i32, %c0_i32_0, %c0_i32_1 : i32, i32, i32, i32
  }
  func.func @transform_1(%arg0: i32, %arg1: i32) -> (i32, i32) {
    %c0_i32 = arith.constant 0 : i32
    %c0_i32_0 = arith.constant 0 : i32
    %c0_i32_1 = arith.constant 0 : i32
    return %c0_i32, %c0_i32_0 : i32, i32
  }
  func.func @transform_2(%arg0: i32, %arg1: i32) -> (i32, i32) {
    %c0_i32 = arith.constant 0 : i32
    %c0_i32_0 = arith.constant 0 : i32
    return %c0_i32, %arg1 : i32, i32
  }
  func.func @transform_3(%arg0: i32, %arg1: i32) -> (i32, i32) {
    %c0_i32 = arith.constant 0 : i32
    %c0_i32_0 = arith.constant 0 : i32
    return %c0_i32, %arg1 : i32, i32
  }
  func.func @transform_4(%arg0: i32, %arg1: i32) -> (i32, i32) {
    %c0_i32 = arith.constant 0 : i32
    return %arg0, %arg1 : i32, i32
  }
}

</mosaic_0001>

<llo_original>
// kernel: tpu_custom_call.1
$region0: #{tpu_custom_call.1}
  #allocation0 [shape = 'u32[]', space=smem, size = 0x4, offset = 0x4, fixed_abs, tag = 'smem constant byte address 0x4 - core index']
  #allocation1 [shape = 'u32[72,128]{1,0:T(1,128)}', space=vmem, size = 0x9000, scoped, tag = 'internal scratch']
  #allocation2 [shape = 'f32[128,27]{1,0:T(8,128)}', space=vmem, size = 0x10000, scoped, tag = 'scratch operand']
  %s0 = inlined_call_operand.vmem [shape: f32[32,2,8,6], index: 0, kind: input, shape index: {}]
  %s1 = inlined_call_operand.vmem [shape: f32[6,15], index: 1, kind: input, shape index: {}]
  %s2 = inlined_call_operand.vmem [shape: f32[27,256], index: 2, kind: input, shape index: {}]
  %s3 = inlined_call_operand.vmem [shape: f32[1,256], index: 3, kind: input, shape index: {}]
  %s4 = inlined_call_operand.hbm [shape: f32[256,256], index: 4, kind: output, shape index: {}]
  %s5 = sld [smem:[#allocation0]]
  $region53: #{tpu_custom_call.1} parent=0
    _
  %s7 = ssub.s32 1, %s5
  %s8 = scalar_select 0, %s7, %s5
  $region1: #{tpu_custom_call.1} parent=0
    #allocation3 [shape = 'u8[262144]{0}', space=vmem, size = 0x40000, scoped, tag = 'output window, operand 0']
    #allocation4 [shape = 's32[2]{0}', space=sflag, size = 0x8, scoped, tag = 'scoped memory for tpu_custom_call.1']
    %9 = vsyncpa [#allocation4], 0
    %s10 = scalar_lea.sflag [#allocation4], 1
    %11 = vsyncpa %s10, 0
    loop: start=0, step=1, limit=4
    $region2: #{tpu_custom_call.1} parent=1 // loop_pre_header
      _
    $region3: #{tpu_custom_call.1} parent=1 // loop_header
      %s13 = sphi 0, %s17
      %p14 = scmp.ge.s32.totalorder %s13, 4
      %s20 = sphi 0, %s32
      %s21 = sphi 0, %s28
      %s22 = sphi 0, %s20
      %s23 = sphi 0, %s21
      %s24 = sphi 0, %s22
      %s25 = sphi 0, %s23
      %s35 = sphi 0, %s37
      %s38 = sphi 0, %s35
      %s39 = sphi 0, %s38
      %s55 = sphi 0, %s39
      %s59 = sphi 0, %s59
      %s61 = sphi 0, %s59
      %s62 = sphi 0, %s61
      %s76 = sphi 0, %s62
      %s82 = sphi 0, %s84
      %s85 = sphi 0, %s82
      %s86 = sphi 0, %s85
      %s102 = sphi 0, %s86
      %s108 = sphi 0, %s110
      %s111 = sphi 0, %s108
      %s112 = sphi 0, %s111
      %s128 = sphi 0, %s112
      %s136 = sphi 0, %s138
      %s139 = sphi 0, %s136
      %s140 = sphi 0, %s139
      %s156 = sphi 0, %s140
    $region4: #{tpu_custom_call.1} parent=1 // loop_header_branch
      %16 = sbr.rel (%p14) target = $region8
    $region5: #{tpu_custom_call.1} parent=1 // loop_body
      %s18 = ssub.s32 %s13, 1
      %s19 = ssub.s32 %s13, 2
      %s26 = sadd.s32 1, %s21
      %p27 = scmp.ge.s32.totalorder %s26, 1
      %s28 = scalar_select %p27, 0, %s26
      %s29 = sadd.s32 1, %s20
      %s30 = scalar_select %p27, %s29, %s20
      %p31 = scmp.ge.s32.totalorder %s30, 2
      %s32 = scalar_select %p31, 0, %s30
      %s33 = ssub.s32 %s20, %s32
      %p34 = scmp.eq.s32.totalorder %s33, 0
      %s36 = sadd.s32 %s35, 1
      %s37 = scalar_select %p34, %s35, %s36
      %p40 = pneg %p34
      %p41 = scmp.eq.s32.totalorder %s13, 1
      %p42 = por %p40, %p41
      %p43 = scmp.ne.s32.totalorder %s35, %s38
      %p44 = scmp.eq.s32.totalorder %s13, 0
      %p45 = por %p43, %p44
      %p46 = scmp.ne.s32.totalorder %s35, %s38
      %p47 = scmp.eq.s32.totalorder %s18, 1
      %p48 = por %p46, %p47
      %p49 = scmp.ne.s32.totalorder %s38, %s39
      %p50 = scmp.eq.s32.totalorder %s18, 0
      %p51 = por %p49, %p50
      %p52 = scmp.ne.s32.totalorder %s38, %s39
      %p53 = scmp.eq.s32.totalorder %s19, 1
      %p54 = por %p52, %p53
      %p56 = scmp.ne.s32.totalorder %s39, %s55
      %p57 = scmp.eq.s32.totalorder %s19, 0
      %p58 = por %p56, %p57
      %s60 = sadd.s32 %s59, 1
      %p63 = scmp.eq.s32.totalorder %s13, 1
      %p64 = scmp.ne.s32.totalorder %s59, %s61
      %p65 = scmp.eq.s32.totalorder %s13, 0
      %p66 = por %p64, %p65
      %p67 = scmp.ne.s32.totalorder %s59, %s61
      %p68 = scmp.eq.s32.totalorder %s18, 1
      %p69 = por %p67, %p68
      %p70 = scmp.ne.s32.totalorder %s61, %s62
      %p71 = scmp.eq.s32.totalorder %s18, 0
      %p72 = por %p70, %p71
      %p73 = scmp.ne.s32.totalorder %s61, %s62
      %p74 = scmp.eq.s32.totalorder %s19, 1
      %p75 = por %p73, %p74
      %p77 = scmp.ne.s32.totalorder %s62, %s76
      %p78 = scmp.eq.s32.totalorder %s19, 0
      %p79 = por %p77, %p78
      %s80 = ssub.s32 %s21, %s28
      %p81 = scmp.eq.s32.totalorder %s80, 0
      %s83 = sadd.s32 %s82, 1
      %s84 = scalar_select %p81, %s82, %s83
      %p87 = pneg %p81
      %p88 = scmp.eq.s32.totalorder %s13, 1
      %p89 = por %p87, %p88
      %p90 = scmp.ne.s32.totalorder %s82, %s85
      %p91 = scmp.eq.s32.totalorder %s13, 0
      %p92 = por %p90, %p91
      %p93 = scmp.ne.s32.totalorder %s82, %s85
      %p94 = scmp.eq.s32.totalorder %s18, 1
      %p95 = por %p93, %p94
      %p96 = scmp.ne.s32.totalorder %s85, %s86
      %p97 = scmp.eq.s32.totalorder %s18, 0
      %p98 = por %p96, %p97
      %p99 = scmp.ne.s32.totalorder %s85, %s86
      %p100 = scmp.eq.s32.totalorder %s19, 1
      %p101 = por %p99, %p100
      %p103 = scmp.ne.s32.totalorder %s86, %s102
      %p104 = scmp.eq.s32.totalorder %s19, 0
      %p105 = por %p103, %p104
      %s106 = ssub.s32 %s21, %s28
      %p107 = scmp.eq.s32.totalorder %s106, 0
      %s109 = sadd.s32 %s108, 1
      %s110 = scalar_select %p107, %s108, %s109
      %p113 = pneg %p107
      %p114 = scmp.eq.s32.totalorder %s13, 1
      %p115 = por %p113, %p114
      %p116 = scmp.ne.s32.totalorder %s108, %s111
      %p117 = scmp.eq.s32.totalorder %s13, 0
      %p118 = por %p116, %p117
      %p119 = scmp.ne.s32.totalorder %s108, %s111
      %p120 = scmp.eq.s32.totalorder %s18, 1
      %p121 = por %p119, %p120
      %p122 = scmp.ne.s32.totalorder %s111, %s112
      %p123 = scmp.eq.s32.totalorder %s18, 0
      %p124 = por %p122, %p123
      %p125 = scmp.ne.s32.totalorder %s111, %s112
      %p126 = scmp.eq.s32.totalorder %s19, 1
      %p127 = por %p125, %p126
      %p129 = scmp.ne.s32.totalorder %s112, %s128
      %p130 = scmp.eq.s32.totalorder %s19, 0
      %p131 = por %p129, %p130
      %s132 = ssub.s32 %s20, %s32
      %s133 = ssub.s32 %s21, %s28
      %s134 = sor.u32 %s132, %s133
      %p135 = scmp.eq.s32.totalorder %s134, 0
      %s137 = sadd.s32 %s136, 1
      %s138 = scalar_select %p135, %s136, %s137
      %p141 = pneg %p135
      %p142 = scmp.eq.s32.totalorder %s13, 1
      %p143 = por %p141, %p142
      %p144 = scmp.ne.s32.totalorder %s136, %s139
      %p145 = scmp.eq.s32.totalorder %s13, 0
      %p146 = por %p144, %p145
      %p147 = scmp.ne.s32.totalorder %s136, %s139
      %p148 = scmp.eq.s32.totalorder %s18, 1
      %p149 = por %p147, %p148
      %p150 = scmp.ne.s32.totalorder %s139, %s140
      %p151 = scmp.eq.s32.totalorder %s18, 0
      %p152 = por %p150, %p151
      %p153 = scmp.ne.s32.totalorder %s139, %s140
      %p154 = scmp.eq.s32.totalorder %s19, 1
      %p155 = por %p153, %p154
      %p157 = scmp.ne.s32.totalorder %s140, %s156
      %p158 = scmp.eq.s32.totalorder %s19, 0
      %p159 = por %p157, %p158
      %p160 = scmp.le.s32.totalorder 1, %s13
      %p161 = scmp.lt.s32.totalorder %s13, 3
      %p162 = pnand %p160, %p161
      %p163 = pneg %p162
      // Predicated region
      $region9: #{tpu_custom_call.1} parent=5 // pred_check
        _
      $region10: #{tpu_custom_call.1} parent=5 // pred_check_branch
        %165 = sbr.rel (%p162) target = $region12
      $region11: #{tpu_custom_call.1} parent=5 // pred_region
        %s166 = ssub.s32 %s13, 1
        // Predicated region
        $region13: #{tpu_custom_call.1} parent=11 // pred_check
          %p167 = pneg %p72
        $region14: #{tpu_custom_call.1} parent=11 // pred_check_branch
          %169 = sbr.rel (%p167) target = $region16
        $region15: #{tpu_custom_call.1} parent=11 // pred_region
          _
        $region16: #{tpu_custom_call.1} parent=11 // pred_fallthru
          _
        // Predicated region
        $region17: #{tpu_custom_call.1} parent=11 // pred_check
          %p170 = pneg %p98
        $region18: #{tpu_custom_call.1} parent=11 // pred_check_branch
          %172 = sbr.rel (%p170) target = $region20
        $region19: #{tpu_custom_call.1} parent=11 // pred_region
          %s173 = smul.u32 2, %s23
          %p174 = scmp.lt.s32.totalorder %s173, 1
          %s175 = scalar_select %p174, %s173, 1
          %s176 = smul.addr %s175, 8
          %s177 = scalar_lea.vmem %s2, %s176
          %s178 = smul.u32 2, %s23
        $region20: #{tpu_custom_call.1} parent=11 // pred_fallthru
          _
        // Predicated region
        $region21: #{tpu_custom_call.1} parent=11 // pred_check
          %p179 = pneg %p124
        $region22: #{tpu_custom_call.1} parent=11 // pred_check_branch
          %181 = sbr.rel (%p179) target = $region24
        $region23: #{tpu_custom_call.1} parent=11 // pred_region
          %s182 = smul.u32 2, %s23
          %p183 = scmp.lt.s32.totalorder %s182, 1
          %s184 = scalar_select %p183, %s182, 1
          %s185 = scalar_lea.vmem %s3, %s184
          %s186 = smul.u32 2, %s23
        $region24: #{tpu_custom_call.1} parent=11 // pred_fallthru
          _
      $region12: #{tpu_custom_call.1} parent=5 // pred_fallthru
        _
      %p187 = scmp.lt.s32.totalorder %s13, 2
      // Predicated region
      $region25: #{tpu_custom_call.1} parent=5 // pred_check
        %p188 = pneg %p187
      $region26: #{tpu_custom_call.1} parent=5 // pred_check_branch
        %190 = sbr.rel (%p188) target = $region28
      $region27: #{tpu_custom_call.1} parent=5 // pred_region
        // Predicated region
        $region29: #{tpu_custom_call.1} parent=27 // pred_check
          %p191 = pneg %p45
        $region30: #{tpu_custom_call.1} parent=27 // pred_check_branch
          %193 = sbr.rel (%p191) target = $region32
        $region31: #{tpu_custom_call.1} parent=27 // pred_region
          %s194 = smul.u32 16, %s20
          %p195 = scmp.lt.s32.totalorder %s194, 31
          %s196 = scalar_select %p195, %s194, 31
          %s197 = smul.addr %s196, 2
          %s198 = smul.addr %s197, 8
          %s199 = scalar_lea.vmem %s0, %s198
          %s200 = smul.u32 16, %s20
        $region32: #{tpu_custom_call.1} parent=27 // pred_fallthru
          _
      $region28: #{tpu_custom_call.1} parent=5 // pred_fallthru
        _
      %p201 = scmp.le.s32.totalorder 1, %s13
      %p202 = scmp.lt.s32.totalorder %s13, 3
      %p203 = pnand %p201, %p202
      %p204 = pneg %p203
      // Predicated region
      $region33: #{tpu_custom_call.1} parent=5 // pred_check
        _
      $region34: #{tpu_custom_call.1} parent=5 // pred_check_branch
        %206 = sbr.rel (%p203) target = $region36
      $region35: #{tpu_custom_call.1} parent=5 // pred_region
        %s207 = ssub.s32 %s13, 1
        %s208 = smul.u32 16, %s22
        %p209 = scmp.lt.s32.totalorder %s208, 31
        %s210 = scalar_select %p209, %s208, 31
        %s211 = smul.addr %s210, 2
        %s212 = smul.addr %s211, 8
        %s213 = scalar_lea.vmem %s0, %s212
        %p214 = pneg %p51
        %p215 = pneg %p48
        %p216 = pneg %p72
        %p217 = pneg %p69
        %s218 = smul.u32 2, %s23
        %p219 = scmp.lt.s32.totalorder %s218, 1
        %s220 = scalar_select %p219, %s218, 1
        %s221 = smul.addr %s220, 8
        %s222 = scalar_lea.vmem %s2, %s221
        %p223 = pneg %p98
        %p224 = pneg %p95
        %s225 = smul.u32 2, %s23
        %p226 = scmp.lt.s32.totalorder %s225, 1
        %s227 = scalar_select %p226, %s225, 1
        %s228 = scalar_lea.vmem %s3, %s227
        %p229 = pneg %p124
        %p230 = pneg %p121
        %p231 = pneg %p152
        %p232 = pneg %p149
        %s233 = sand.u32 %s139, 1
        %s234 = scalar_lea.sflag [#allocation4], %s233
        %s235 = sand.u32 %s139, 1
        %s236 = smul.addr %s235, 256
        %s237 = scalar_lea.vmem [#allocation3], %s236
        %s238 = smul.u32 16, %s22
        %p239 = scmp.lt.s32.totalorder %s238, 31
        %s240 = scalar_select %p239, %s238, 31
        %s241 = smul.addr %s240, 2
        %s242 = smul.addr %s241, 8
        %s243 = scalar_lea.vmem %s0, %s242
        %s244 = smul.u32 16, %s22
        %s245 = smul.u32 2, %s23
        %p246 = scmp.lt.s32.totalorder %s245, 1
        %s247 = scalar_select %p246, %s245, 1
        %s248 = smul.addr %s247, 8
        %s249 = scalar_lea.vmem %s2, %s248
        %s250 = smul.u32 2, %s23
        %s251 = smul.u32 2, %s23
        %p252 = scmp.lt.s32.totalorder %s251, 1
        %s253 = scalar_select %p252, %s251, 1
        %s254 = scalar_lea.vmem %s3, %s253
        %s255 = smul.u32 2, %s23
        %s256 = smul.u32 16, %s22
        %s257 = smul.u32 2, %s23
        %p258 = scmp.eq.s32.totalorder %s23, 0
        // Predicated region
        $region37: #{tpu_custom_call.1} parent=35 // pred_check
          %p259 = pneg %p258
        $region38: #{tpu_custom_call.1} parent=35 // pred_check_branch
          %261 = sbr.rel (%p259) target = $region40
        $region39: #{tpu_custom_call.1} parent=35 // pred_region
          %v262 = vld [vmem:[%s243] sm:$0xff]
          %v263 = vld [vmem:[%s243 + $0x10] sm:$0xff]
          %v264 = vld [vmem:[%s243 + $0x20] sm:$0xff]
          %v265 = vld [vmem:[%s243 + $0x30] sm:$0xff]
          %v266 = vld [vmem:[%s243 + $0x40] sm:$0xff]
          %v267 = vld [vmem:[%s243 + $0x50] sm:$0xff]
          %v268 = vld [vmem:[%s243 + $0x60] sm:$0xff]
          %v269 = vld [vmem:[%s243 + $0x70] sm:$0xff]
          %v270 = vld [vmem:[%s243 + $0x80] sm:$0xff]
          %v271 = vld [vmem:[%s243 + $0x90] sm:$0xff]
          %v272 = vld [vmem:[%s243 + $0xa0] sm:$0xff]
          %v273 = vld [vmem:[%s243 + $0xb0] sm:$0xff]
          %v274 = vld [vmem:[%s243 + $0xc0] sm:$0xff]
          %v275 = vld [vmem:[%s243 + $0xd0] sm:$0xff]
          %v276 = vld [vmem:[%s243 + $0xe0] sm:$0xff]
          %v277 = vld [vmem:[%s243 + $0xf0] sm:$0xff]
          %s278 = scalar_lea.vmem %s243, 8
          %v279 = vld [vmem:[%s278] sm:$0xff]
          %v280 = vld [vmem:[%s278 + $0x10] sm:$0xff]
          %v281 = vld [vmem:[%s278 + $0x20] sm:$0xff]
          %v282 = vld [vmem:[%s278 + $0x30] sm:$0xff]
          %v283 = vld [vmem:[%s278 + $0x40] sm:$0xff]
          %v284 = vld [vmem:[%s278 + $0x50] sm:$0xff]
          %v285 = vld [vmem:[%s278 + $0x60] sm:$0xff]
          %v286 = vld [vmem:[%s278 + $0x70] sm:$0xff]
          %v287 = vld [vmem:[%s278 + $0x80] sm:$0xff]
          %v288 = vld [vmem:[%s278 + $0x90] sm:$0xff]
          %v289 = vld [vmem:[%s278 + $0xa0] sm:$0xff]
          %v290 = vld [vmem:[%s278 + $0xb0] sm:$0xff]
          %v291 = vld [vmem:[%s278 + $0xc0] sm:$0xff]
          %v292 = vld [vmem:[%s278 + $0xd0] sm:$0xff]
          %v293 = vld [vmem:[%s278 + $0xe0] sm:$0xff]
          %v294 = vld [vmem:[%s278 + $0xf0] sm:$0xff]
          %v295 = vadd.f32 %v262, %v279
          %v296 = vadd.f32 %v263, %v280
          %v297 = vadd.f32 %v264, %v281
          %v298 = vadd.f32 %v265, %v282
          %v299 = vadd.f32 %v266, %v283
          %v300 = vadd.f32 %v267, %v284
          %v301 = vadd.f32 %v268, %v285
          %v302 = vadd.f32 %v269, %v286
          %v303 = vadd.f32 %v270, %v287
          %v304 = vadd.f32 %v271, %v288
          %v305 = vadd.f32 %v272, %v289
          %v306 = vadd.f32 %v273, %v290
          %v307 = vadd.f32 %v274, %v291
          %v308 = vadd.f32 %v275, %v292
          %v309 = vadd.f32 %v276, %v293
          %v310 = vadd.f32 %v277, %v294
          %v311 = vld [vmem:[%s1] sm:$0x3f]
          %vm312 = vcmask 48128
          %v314 = vsel %vm312, %v295, 0
          %v317 = vsel %vm312, %v296, 0
          %v320 = vsel %vm312, %v297, 0
          %v323 = vsel %vm312, %v298, 0
          %v326 = vsel %vm312, %v299, 0
          %v329 = vsel %vm312, %v300, 0
          %v332 = vsel %vm312, %v301, 0
          %v335 = vsel %vm312, %v302, 0
          %v338 = vsel %vm312, %v303, 0
          %v341 = vsel %vm312, %v304, 0
          %v344 = vsel %vm312, %v305, 0
          %v347 = vsel %vm312, %v306, 0
          %v350 = vsel %vm312, %v307, 0
          %v353 = vsel %vm312, %v308, 0
          %v356 = vsel %vm312, %v309, 0
          %v359 = vsel %vm312, %v310, 0
          %vm361 = vcmask 1045504
          %v363 = vsel %vm361, %v311, 0
          %365 = vmatpush.msra.mxu0 0.0
          %366 = vmatpush.msra.mxu0 0.0
          %367 = vmatpush.msra.mxu0 0.0
          %368 = vmatpush.msra.mxu0 0.0
          %369 = vmatpush.msra.mxu0 0.0
          %370 = vmatpush.msra.mxu0 0.0
          %371 = vmatpush.msra.mxu0 0.0
          %372 = vmatpush.msra.mxu0 0.0
          %373 = vmatpush.msra.mxu0 0.0
          %374 = vmatpush.msra.mxu0 0.0
          %375 = vmatpush.msra.mxu0 0.0
          %376 = vmatpush.msra.mxu0 0.0
          %377 = vmatpush.msra.mxu0 0.0
          %378 = vmatpush.msra.mxu0 0.0
          %379 = vmatpush.msra.mxu0 0.0
          %380 = vmatpush.msra.mxu0 %v363
          %381 = vmatmul.f32.gmra.mxu0 %v314
          %v382 = vpop.f32.mrf.mxu0
          %v383 = vadd.f32 0.0, %v382
          %384 = vmatmul.f32.gmra.mxu0 %v317
          %v385 = vpop.f32.mrf.mxu0
          %v386 = vadd.f32 0.0, %v385
          %387 = vmatmul.f32.gmra.mxu0 %v320
          %v388 = vpop.f32.mrf.mxu0
          %v389 = vadd.f32 0.0, %v388
          %390 = vmatmul.f32.gmra.mxu0 %v323
          %v391 = vpop.f32.mrf.mxu0
          %v392 = vadd.f32 0.0, %v391
          %393 = vmatmul.f32.gmra.mxu0 %v326
          %v394 = vpop.f32.mrf.mxu0
          %v395 = vadd.f32 0.0, %v394
          %396 = vmatmul.f32.gmra.mxu0 %v329
          %v397 = vpop.f32.mrf.mxu0
          %v398 = vadd.f32 0.0, %v397
          %399 = vmatmul.f32.gmra.mxu0 %v332
          %v400 = vpop.f32.mrf.mxu0
          %v401 = vadd.f32 0.0, %v400
          %402 = vmatmul.f32.gmra.mxu0 %v335
          %v403 = vpop.f32.mrf.mxu0
          %v404 = vadd.f32 0.0, %v403
          %405 = vmatmul.f32.gmra.mxu0 %v338
          %v406 = vpop.f32.mrf.mxu0
          %v407 = vadd.f32 0.0, %v406
          %408 = vmatmul.f32.gmra.mxu0 %v341
          %v409 = vpop.f32.mrf.mxu0
          %v410 = vadd.f32 0.0, %v409
          %411 = vmatmul.f32.gmra.mxu0 %v344
          %v412 = vpop.f32.mrf.mxu0
          %v413 = vadd.f32 0.0, %v412
          %414 = vmatmul.f32.gmra.mxu0 %v347
          %v415 = vpop.f32.mrf.mxu0
          %v416 = vadd.f32 0.0, %v415
          %417 = vmatmul.f32.gmra.mxu0 %v350
          %v418 = vpop.f32.mrf.mxu0
          %v419 = vadd.f32 0.0, %v418
          %420 = vmatmul.f32.gmra.mxu0 %v353
          %v421 = vpop.f32.mrf.mxu0
          %v422 = vadd.f32 0.0, %v421
          %423 = vmatmul.f32.gmra.mxu0 %v356
          %v424 = vpop.f32.mrf.mxu0
          %v425 = vadd.f32 0.0, %v424
          %426 = vmatmul.f32.gmra.mxu0 %v359
          %v427 = vpop.f32.mrf.mxu0
          %v428 = vadd.f32 0.0, %v427
          %429 = vdwg.mxu0
          %vm430 = vcmask 23552
          %431 = vst.msk [vmem:[#allocation2] sm:$0xff] %vm430, %v383
          %432 = vst.msk [vmem:[#allocation2 + $0x8] sm:$0xff] %vm430, %v386
          %433 = vst.msk [vmem:[#allocation2 + $0x10] sm:$0xff] %vm430, %v389
          %434 = vst.msk [vmem:[#allocation2 + $0x18] sm:$0xff] %vm430, %v392
          %435 = vst.msk [vmem:[#allocation2 + $0x20] sm:$0xff] %vm430, %v395
          %436 = vst.msk [vmem:[#allocation2 + $0x28] sm:$0xff] %vm430, %v398
          %437 = vst.msk [vmem:[#allocation2 + $0x30] sm:$0xff] %vm430, %v401
          %438 = vst.msk [vmem:[#allocation2 + $0x38] sm:$0xff] %vm430, %v404
          %439 = vst.msk [vmem:[#allocation2 + $0x40] sm:$0xff] %vm430, %v407
          %440 = vst.msk [vmem:[#allocation2 + $0x48] sm:$0xff] %vm430, %v410
          %441 = vst.msk [vmem:[#allocation2 + $0x50] sm:$0xff] %vm430, %v413
          %442 = vst.msk [vmem:[#allocation2 + $0x58] sm:$0xff] %vm430, %v416
          %443 = vst.msk [vmem:[#allocation2 + $0x60] sm:$0xff] %vm430, %v419
          %444 = vst.msk [vmem:[#allocation2 + $0x68] sm:$0xff] %vm430, %v422
          %445 = vst.msk [vmem:[#allocation2 + $0x70] sm:$0xff] %vm430, %v425
          %446 = vst.msk [vmem:[#allocation2 + $0x78] sm:$0xff] %vm430, %v428
          %v447 = vand.u32 2147483647, %v383
          %vm448 = vcmp.le.f32.partialorder %v447, 0.7853982
          %vm449 = vcmp.lt.s32.totalorder %v383, 0
          %v450 = vand.u32 %v383, 2139095040
          %v451 = vshrl.u32 %v450, 23
          %v452 = vsub.s32 %v451, 127
          %v453 = vand.u32 2147483647, %v383
          %v454 = vand.u32 %v453, 8388607
          %v455 = vor.u32 %v454, 8388608
          %v456 = vsub.s32 0, %v455
          %v457 = vadd.s32 %v452, 1
          %vm458 = vcmp.gt.s32.totalorder %v457, 0
          %v459 = vsel %vm458, %v457, 0
          %v460 = vshrl.u32 %v459, 5
          %v461 = vand.u32 %v459, 31
          %v462 = vsub.s32 32, %v461
          %v463 = vshrl.u32 683565275, %v462
          %v464 = vshll.u32 683565275, %v461
          %v465 = vshrl.u32 2475754826, %v462
          %v466 = vor.u32 %v464, %v465
          %v467 = vshll.u32 2475754826, %v461
          %v468 = vshrl.u32 2131351028, %v462
          %v469 = vor.u32 %v467, %v468
          %v470 = vshll.u32 2131351028, %v461
          %v471 = vshrl.u32 2102212464, %v462
          %v472 = vor.u32 %v470, %v471
          %v473 = vshll.u32 2102212464, %v461
          %v474 = vshrl.u32 920167782, %v462
          %v475 = vor.u32 %v473, %v474
          %v476 = vshll.u32 920167782, %v461
          %v477 = vshrl.u32 1326507024, %v462
          %v478 = vor.u32 %v476, %v477
          %vm479 = vcmp.lt.s32.totalorder %v460, 1
          %vm480 = vcmp.lt.s32.totalorder %v460, 2
          %vm481 = vcmp.lt.s32.totalorder %v460, 3
          %vm482 = vcmp.lt.s32.totalorder %v460, 4
          %v483 = vsel %vm479, %v463, %v466
          %v484 = vsel %vm482, %v472, 2102212464
          %v485 = vsel %vm481, %v469, %v484
          %v486 = vsel %vm480, %v483, %v485
          %v487 = vsel %vm479, %v466, %v469
          %v488 = vsel %vm482, %v475, 920167782
          %v489 = vsel %vm481, %v472, %v488
          %v490 = vsel %vm480, %v487, %v489
          %v491 = vsel %vm479, %v469, %v472
          %v492 = vsel %vm482, %v478, 1326507024
          %v493 = vsel %vm481, %v475, %v492
          %v494 = vsel %vm480, %v491, %v493
          %v495 = vshll.u32 %v455, 8
          %v496 = vand.u32 %v495, 65535
          %v497 = vshrl.u32 %v495, 16
          %v498 = vand.u32 %v494, 65535
          %v499 = vshrl.u32 %v494, 16
          %v500 = vmul.u32 %v496, %v498
          %v501 = vmul.u32 %v496, %v499
          %v502 = vmul.u32 %v497, %v498
          %v503 = vmul.u32 %v497, %v499
          %v504 = vshll.u32 %v501, 16
          %v505 = vshrl.u32 %v501, 16
          %v506 = vshll.u32 %v502, 16
          %v507 = vshrl.u32 %v502, 16
          %vm508 = vc.u32 %v500, %v504
          %v509 = vsel %vm508, 1, 0
          %v510 = vadd.s32 %v500, %v504
          %v511 = vadd.s32 %v503, %v509
          %vm512 = vc.u32 %v510, %v506
          %v513 = vsel %vm512, 1, 0
          %v514 = vadd.s32 %v510, %v506
          %v515 = vadd.s32 %v511, %v513
          %v516 = vadd.s32 %v515, %v505
          %v517 = vadd.s32 %v516, %v507
          %v518 = vand.u32 %v495, 65535
          %v519 = vshrl.u32 %v495, 16
          %v520 = vand.u32 %v490, 65535
          %v521 = vshrl.u32 %v490, 16
          %v522 = vmul.u32 %v518, %v520
          %v523 = vmul.u32 %v518, %v521
          %v524 = vmul.u32 %v519, %v520
          %v525 = vmul.u32 %v519, %v521
          %v526 = vshll.u32 %v523, 16
          %v527 = vshrl.u32 %v523, 16
          %v528 = vshll.u32 %v524, 16
          %v529 = vshrl.u32 %v524, 16
          %vm530 = vc.u32 %v522, %v526
          %v531 = vsel %vm530, 1, 0
          %v532 = vadd.s32 %v522, %v526
          %v533 = vadd.s32 %v525, %v531
          %vm534 = vc.u32 %v532, %v528
          %v535 = vsel %vm534, 1, 0
          %v536 = vadd.s32 %v532, %v528
          %v537 = vadd.s32 %v533, %v535
          %v538 = vadd.s32 %v537, %v527
          %v539 = vadd.s32 %v538, %v529
          %v540 = vmul.u32 %v495, %v486
          %v541 = vadd.s32 %v517, %v536
          %vm542 = vc.u32 %v517, %v536
          %v543 = vadd.s32 %v539, 1
          %v544 = vsel %vm542, %v543, %v539
          %v545 = vadd.s32 %v540, %v544
          %v546 = vadd.s32 %v545, 536870912
          %v547 = vshrl.u32 %v546, 30
          %v548 = vshll.u32 %v547, 30
          %v549 = vsub.s32 %v545, %v548
          %vm550 = vcmp.lt.s32.totalorder %v549, 0
          %v551 = vsub.s32 0, %v549
          %v552 = vsel %vm550, %v551, %v549
          %v553 = vclz %v552
          %v554 = vsub.s32 %v553, 2
          %vm555 = vcmp.gt.s32.totalorder 0, %v554
          %v556 = vsel %vm555, 0, %v554
          %v557 = vsub.s32 32, %v556
          %v558 = vshll.u32 %v549, %v556
          %v559 = vshrl.u32 %v541, %v557
          %v560 = vor.u32 %v558, %v559
          %v561 = vsub.s32 4294967266, %v556
          %v562 = vadd.s32 %v561, 127
          %v563 = vshll.u32 %v562, 23
          %v564 = vor.u32 4788187, %v563
          %v565 = vand.u32 2147483647, %v564
          %v567 = vcvt.s32.f32 %v560
          %v568 = vmul.f32 %v567, %v565
          %v569 = vxor.u32 %v568, 2147483648
          %v570 = vsel %vm449, %v569, %v568
          %v571 = vsub.s32 4, %v547
          %v572 = vsel %vm449, %v571, %v547
          %v573 = vsel %vm448, %v383, %v570
          %v574 = vsel %vm448, 0, %v572
          %v575 = vmul.f32 %v573, %v573
          %v576 = vmul.f32 %v575, -0.001358992
          %v577 = vadd.f32 %v576, 0.041655596
          %v578 = vmul.f32 %v575, %v577
          %v579 = vadd.f32 %v578, -0.4999988
          %v580 = vmul.f32 %v575, %v579
          %v581 = vadd.f32 1.0, %v580
          %v582 = vmul.f32 %v573, %v573
          %v583 = vmul.f32 %v582, -0.00019511016
          %v584 = vadd.f32 %v583, 0.008332121
          %v585 = vmul.f32 %v582, %v584
          %v586 = vadd.f32 %v585, -0.16666654
          %v587 = vmul.f32 %v582, %v586
          %v588 = vadd.f32 %v587, 1.0
          %v589 = vmul.f32 %v588, %v573
          %vm590 = vweird.f32 %v383
          %v591 = vadd.s32 %v574, 3
          %v592 = vand.u32 %v591, 3
          %vm593 = vcmp.lt.s32.totalorder %v592, 2
          %vm594 = vcmp.eq.s32.totalorder %v592, 0
          %v595 = vxor.u32 %v589, 2147483648
          %v596 = vsel %vm594, %v581, %v595
          %vm597 = vcmp.eq.s32.totalorder %v592, 2
          %v598 = vxor.u32 %v581, 2147483648
          %v599 = vsel %vm597, %v598, %v589
          %v600 = vsel %vm593, %v596, %v599
          %v601 = vsel %vm590, nan, %v600
          %v602 = vand.u32 2147483647, %v386
          %vm603 = vcmp.le.f32.partialorder %v602, 0.7853982
          %vm604 = vcmp.lt.s32.totalorder %v386, 0
          %v605 = vand.u32 %v386, 2139095040
          %v606 = vshrl.u32 %v605, 23
          %v607 = vsub.s32 %v606, 127
          %v608 = vand.u32 2147483647, %v386
          %v609 = vand.u32 %v608, 8388607
          %v610 = vor.u32 %v609, 8388608
          %v611 = vsub.s32 0, %v610
          %v612 = vadd.s32 %v607, 1
          %vm613 = vcmp.gt.s32.totalorder %v612, 0
          %v614 = vsel %vm613, %v612, 0
          %v615 = vshrl.u32 %v614, 5
          %v616 = vand.u32 %v614, 31
          %v617 = vsub.s32 32, %v616
          %v618 = vshrl.u32 683565275, %v617
          %v619 = vshll.u32 683565275, %v616
          %v620 = vshrl.u32 2475754826, %v617
          %v621 = vor.u32 %v619, %v620
          %v622 = vshll.u32 2475754826, %v616
          %v623 = vshrl.u32 2131351028, %v617
          %v624 = vor.u32 %v622, %v623
          %v625 = vshll.u32 2131351028, %v616
          %v626 = vshrl.u32 2102212464, %v617
          %v627 = vor.u32 %v625, %v626
          %v628 = vshll.u32 2102212464, %v616
          %v629 = vshrl.u32 920167782, %v617
          %v630 = vor.u32 %v628, %v629
          %v631 = vshll.u32 920167782, %v616
          %v632 = vshrl.u32 1326507024, %v617
          %v633 = vor.u32 %v631, %v632
          %vm634 = vcmp.lt.s32.totalorder %v615, 1
          %vm635 = vcmp.lt.s32.totalorder %v615, 2
          %vm636 = vcmp.lt.s32.totalorder %v615, 3
          %vm637 = vcmp.lt.s32.totalorder %v615, 4
          %v638 = vsel %vm634, %v618, %v621
          %v639 = vsel %vm637, %v627, 2102212464
          %v640 = vsel %vm636, %v624, %v639
          %v641 = vsel %vm635, %v638, %v640
          %v642 = vsel %vm634, %v621, %v624
          %v643 = vsel %vm637, %v630, 920167782
          %v644 = vsel %vm636, %v627, %v643
          %v645 = vsel %vm635, %v642, %v644
          %v646 = vsel %vm634, %v624, %v627
          %v647 = vsel %vm637, %v633, 1326507024
          %v648 = vsel %vm636, %v630, %v647
          %v649 = vsel %vm635, %v646, %v648
          %v650 = vshll.u32 %v610, 8
          %v651 = vand.u32 %v650, 65535
          %v652 = vshrl.u32 %v650, 16
          %v653 = vand.u32 %v649, 65535
          %v654 = vshrl.u32 %v649, 16
          %v655 = vmul.u32 %v651, %v653
          %v656 = vmul.u32 %v651, %v654
          %v657 = vmul.u32 %v652, %v653
          %v658 = vmul.u32 %v652, %v654
          %v659 = vshll.u32 %v656, 16
          %v660 = vshrl.u32 %v656, 16
          %v661 = vshll.u32 %v657, 16
          %v662 = vshrl.u32 %v657, 16
          %vm663 = vc.u32 %v655, %v659
          %v664 = vsel %vm663, 1, 0
          %v665 = vadd.s32 %v655, %v659
          %v666 = vadd.s32 %v658, %v664
          %vm667 = vc.u32 %v665, %v661
          %v668 = vsel %vm667, 1, 0
          %v669 = vadd.s32 %v665, %v661
          %v670 = vadd.s32 %v666, %v668
          %v671 = vadd.s32 %v670, %v660
          %v672 = vadd.s32 %v671, %v662
          %v673 = vand.u32 %v650, 65535
          %v674 = vshrl.u32 %v650, 16
          %v675 = vand.u32 %v645, 65535
          %v676 = vshrl.u32 %v645, 16
          %v677 = vmul.u32 %v673, %v675
          %v678 = vmul.u32 %v673, %v676
          %v679 = vmul.u32 %v674, %v675
          %v680 = vmul.u32 %v674, %v676
          %v681 = vshll.u32 %v678, 16
          %v682 = vshrl.u32 %v678, 16
          %v683 = vshll.u32 %v679, 16
          %v684 = vshrl.u32 %v679, 16
          %vm685 = vc.u32 %v677, %v681
          %v686 = vsel %vm685, 1, 0
          %v687 = vadd.s32 %v677, %v681
          %v688 = vadd.s32 %v680, %v686
          %vm689 = vc.u32 %v687, %v683
          %v690 = vsel %vm689, 1, 0
          %v691 = vadd.s32 %v687, %v683
          %v692 = vadd.s32 %v688, %v690
          %v693 = vadd.s32 %v692, %v682
          %v694 = vadd.s32 %v693, %v684
          %v695 = vmul.u32 %v650, %v641
          %v696 = vadd.s32 %v672, %v691
          %vm697 = vc.u32 %v672, %v691
          %v698 = vadd.s32 %v694, 1
          %v699 = vsel %vm697, %v698, %v694
          %v700 = vadd.s32 %v695, %v699
          %v701 = vadd.s32 %v700, 536870912
          %v702 = vshrl.u32 %v701, 30
          %v703 = vshll.u32 %v702, 30
          %v704 = vsub.s32 %v700, %v703
          %vm705 = vcmp.lt.s32.totalorder %v704, 0
          %v706 = vsub.s32 0, %v704
          %v707 = vsel %vm705, %v706, %v704
          %v708 = vclz %v707
          %v709 = vsub.s32 %v708, 2
          %vm710 = vcmp.gt.s32.totalorder 0, %v709
          %v711 = vsel %vm710, 0, %v709
          %v712 = vsub.s32 32, %v711
          %v713 = vshll.u32 %v704, %v711
          %v714 = vshrl.u32 %v696, %v712
          %v715 = vor.u32 %v713, %v714
          %v716 = vsub.s32 4294967266, %v711
          %v717 = vadd.s32 %v716, 127
          %v718 = vshll.u32 %v717, 23
          %v719 = vor.u32 4788187, %v718
          %v720 = vand.u32 2147483647, %v719
          %v722 = vcvt.s32.f32 %v715
          %v723 = vmul.f32 %v722, %v720
          %v724 = vxor.u32 %v723, 2147483648
          %v725 = vsel %vm604, %v724, %v723
          %v726 = vsub.s32 4, %v702
          %v727 = vsel %vm604, %v726, %v702
          %v728 = vsel %vm603, %v386, %v725
          %v729 = vsel %vm603, 0, %v727
          %v730 = vmul.f32 %v728, %v728
          %v731 = vmul.f32 %v730, -0.001358992
          %v732 = vadd.f32 %v731, 0.041655596
          %v733 = vmul.f32 %v730, %v732
          %v734 = vadd.f32 %v733, -0.4999988
          %v735 = vmul.f32 %v730, %v734
          %v736 = vadd.f32 1.0, %v735
          %v737 = vmul.f32 %v728, %v728
          %v738 = vmul.f32 %v737, -0.00019511016
          %v739 = vadd.f32 %v738, 0.008332121
          %v740 = vmul.f32 %v737, %v739
          %v741 = vadd.f32 %v740, -0.16666654
          %v742 = vmul.f32 %v737, %v741
          %v743 = vadd.f32 %v742, 1.0
          %v744 = vmul.f32 %v743, %v728
          %vm745 = vweird.f32 %v386
          %v746 = vadd.s32 %v729, 3
          %v747 = vand.u32 %v746, 3
          %vm748 = vcmp.lt.s32.totalorder %v747, 2
          %vm749 = vcmp.eq.s32.totalorder %v747, 0
          %v750 = vxor.u32 %v744, 2147483648
          %v751 = vsel %vm749, %v736, %v750
          %vm752 = vcmp.eq.s32.totalorder %v747, 2
          %v753 = vxor.u32 %v736, 2147483648
          %v754 = vsel %vm752, %v753, %v744
          %v755 = vsel %vm748, %v751, %v754
          %v756 = vsel %vm745, nan, %v755
          %v757 = vand.u32 2147483647, %v389
          %vm758 = vcmp.le.f32.partialorder %v757, 0.7853982
          %vm759 = vcmp.lt.s32.totalorder %v389, 0
          %v760 = vand.u32 %v389, 2139095040
          %v761 = vshrl.u32 %v760, 23
          %v762 = vsub.s32 %v761, 127
          %v763 = vand.u32 2147483647, %v389
          %v764 = vand.u32 %v763, 8388607
          %v765 = vor.u32 %v764, 8388608
          %v766 = vsub.s32 0, %v765
          %v767 = vadd.s32 %v762, 1
          %vm768 = vcmp.gt.s32.totalorder %v767, 0
          %v769 = vsel %vm768, %v767, 0
          %v770 = vshrl.u32 %v769, 5
          %v771 = vand.u32 %v769, 31
          %v772 = vsub.s32 32, %v771
          %v773 = vshrl.u32 683565275, %v772
          %v774 = vshll.u32 683565275, %v771
          %v775 = vshrl.u32 2475754826, %v772
          %v776 = vor.u32 %v774, %v775
          %v777 = vshll.u32 2475754826, %v771
          %v778 = vshrl.u32 2131351028, %v772
          %v779 = vor.u32 %v777, %v778
          %v780 = vshll.u32 2131351028, %v771
          %v781 = vshrl.u32 2102212464, %v772
          %v782 = vor.u32 %v780, %v781
          %v783 = vshll.u32 2102212464, %v771
          %v784 = vshrl.u32 920167782, %v772
          %v785 = vor.u32 %v783, %v784
          %v786 = vshll.u32 920167782, %v771
          %v787 = vshrl.u32 1326507024, %v772
          %v788 = vor.u32 %v786, %v787
          %vm789 = vcmp.lt.s32.totalorder %v770, 1
          %vm790 = vcmp.lt.s32.totalorder %v770, 2
          %vm791 = vcmp.lt.s32.totalorder %v770, 3
          %vm792 = vcmp.lt.s32.totalorder %v770, 4
          %v793 = vsel %vm789, %v773, %v776
          %v794 = vsel %vm792, %v782, 2102212464
          %v795 = vsel %vm791, %v779, %v794
          %v796 = vsel %vm790, %v793, %v795
          %v797 = vsel %vm789, %v776, %v779
          %v798 = vsel %vm792, %v785, 920167782
          %v799 = vsel %vm791, %v782, %v798
          %v800 = vsel %vm790, %v797, %v799
          %v801 = vsel %vm789, %v779, %v782
          %v802 = vsel %vm792, %v788, 1326507024
          %v803 = vsel %vm791, %v785, %v802
          %v804 = vsel %vm790, %v801, %v803
          %v805 = vshll.u32 %v765, 8
          %v806 = vand.u32 %v805, 65535
          %v807 = vshrl.u32 %v805, 16
          %v808 = vand.u32 %v804, 65535
          %v809 = vshrl.u32 %v804, 16
          %v810 = vmul.u32 %v806, %v808
          %v811 = vmul.u32 %v806, %v809
          %v812 = vmul.u32 %v807, %v808
          %v813 = vmul.u32 %v807, %v809
          %v814 = vshll.u32 %v811, 16
          %v815 = vshrl.u32 %v811, 16
          %v816 = vshll.u32 %v812, 16
          %v817 = vshrl.u32 %v812, 16
          %vm818 = vc.u32 %v810, %v814
          %v819 = vsel %vm818, 1, 0
          %v820 = vadd.s32 %v810, %v814
          %v821 = vadd.s32 %v813, %v819
          %vm822 = vc.u32 %v820, %v816
          %v823 = vsel %vm822, 1, 0
          %v824 = vadd.s32 %v820, %v816
          %v825 = vadd.s32 %v821, %v823
          %v826 = vadd.s32 %v825, %v815
          %v827 = vadd.s32 %v826, %v817
          %v828 = vand.u32 %v805, 65535
          %v829 = vshrl.u32 %v805, 16
          %v830 = vand.u32 %v800, 65535
          %v831 = vshrl.u32 %v800, 16
          %v832 = vmul.u32 %v828, %v830
          %v833 = vmul.u32 %v828, %v831
          %v834 = vmul.u32 %v829, %v830
          %v835 = vmul.u32 %v829, %v831
          %v836 = vshll.u32 %v833, 16
          %v837 = vshrl.u32 %v833, 16
          %v838 = vshll.u32 %v834, 16
          %v839 = vshrl.u32 %v834, 16
          %vm840 = vc.u32 %v832, %v836
          %v841 = vsel %vm840, 1, 0
          %v842 = vadd.s32 %v832, %v836
          %v843 = vadd.s32 %v835, %v841
          %vm844 = vc.u32 %v842, %v838
          %v845 = vsel %vm844, 1, 0
          %v846 = vadd.s32 %v842, %v838
          %v847 = vadd.s32 %v843, %v845
          %v848 = vadd.s32 %v847, %v837
          %v849 = vadd.s32 %v848, %v839
          %v850 = vmul.u32 %v805, %v796
          %v851 = vadd.s32 %v827, %v846
          %vm852 = vc.u32 %v827, %v846
          %v853 = vadd.s32 %v849, 1
          %v854 = vsel %vm852, %v853, %v849
          %v855 = vadd.s32 %v850, %v854
          %v856 = vadd.s32 %v855, 536870912
          %v857 = vshrl.u32 %v856, 30
          %v858 = vshll.u32 %v857, 30
          %v859 = vsub.s32 %v855, %v858
          %vm860 = vcmp.lt.s32.totalorder %v859, 0
          %v861 = vsub.s32 0, %v859
          %v862 = vsel %vm860, %v861, %v859
          %v863 = vclz %v862
          %v864 = vsub.s32 %v863, 2
          %vm865 = vcmp.gt.s32.totalorder 0, %v864
          %v866 = vsel %vm865, 0, %v864
          %v867 = vsub.s32 32, %v866
          %v868 = vshll.u32 %v859, %v866
          %v869 = vshrl.u32 %v851, %v867
          %v870 = vor.u32 %v868, %v869
          %v871 = vsub.s32 4294967266, %v866
          %v872 = vadd.s32 %v871, 127
          %v873 = vshll.u32 %v872, 23
          %v874 = vor.u32 4788187, %v873
          %v875 = vand.u32 2147483647, %v874
          %v877 = vcvt.s32.f32 %v870
          %v878 = vmul.f32 %v877, %v875
          %v879 = vxor.u32 %v878, 2147483648
          %v880 = vsel %vm759, %v879, %v878
          %v881 = vsub.s32 4, %v857
          %v882 = vsel %vm759, %v881, %v857
          %v883 = vsel %vm758, %v389, %v880
          %v884 = vsel %vm758, 0, %v882
          %v885 = vmul.f32 %v883, %v883
          %v886 = vmul.f32 %v885, -0.001358992
          %v887 = vadd.f32 %v886, 0.041655596
          %v888 = vmul.f32 %v885, %v887
          %v889 = vadd.f32 %v888, -0.4999988
          %v890 = vmul.f32 %v885, %v889
          %v891 = vadd.f32 1.0, %v890
          %v892 = vmul.f32 %v883, %v883
          %v893 = vmul.f32 %v892, -0.00019511016
          %v894 = vadd.f32 %v893, 0.008332121
          %v895 = vmul.f32 %v892, %v894
          %v896 = vadd.f32 %v895, -0.16666654
          %v897 = vmul.f32 %v892, %v896
          %v898 = vadd.f32 %v897, 1.0
          %v899 = vmul.f32 %v898, %v883
          %vm900 = vweird.f32 %v389
          %v901 = vadd.s32 %v884, 3
          %v902 = vand.u32 %v901, 3
          %vm903 = vcmp.lt.s32.totalorder %v902, 2
          %vm904 = vcmp.eq.s32.totalorder %v902, 0
          %v905 = vxor.u32 %v899, 2147483648
          %v906 = vsel %vm904, %v891, %v905
          %vm907 = vcmp.eq.s32.totalorder %v902, 2
          %v908 = vxor.u32 %v891, 2147483648
          %v909 = vsel %vm907, %v908, %v899
          %v910 = vsel %vm903, %v906, %v909
          %v911 = vsel %vm900, nan, %v910
          %v912 = vand.u32 2147483647, %v392
          %vm913 = vcmp.le.f32.partialorder %v912, 0.7853982
          %vm914 = vcmp.lt.s32.totalorder %v392, 0
          %v915 = vand.u32 %v392, 2139095040
          %v916 = vshrl.u32 %v915, 23
          %v917 = vsub.s32 %v916, 127
          %v918 = vand.u32 2147483647, %v392
          %v919 = vand.u32 %v918, 8388607
          %v920 = vor.u32 %v919, 8388608
          %v921 = vsub.s32 0, %v920
          %v922 = vadd.s32 %v917, 1
          %vm923 = vcmp.gt.s32.totalorder %v922, 0
          %v924 = vsel %vm923, %v922, 0
          %v925 = vshrl.u32 %v924, 5
          %v926 = vand.u32 %v924, 31
          %v927 = vsub.s32 32, %v926
          %v928 = vshrl.u32 683565275, %v927
          %v929 = vshll.u32 683565275, %v926
          %v930 = vshrl.u32 2475754826, %v927
          %v931 = vor.u32 %v929, %v930
          %v932 = vshll.u32 2475754826, %v926
          %v933 = vshrl.u32 2131351028, %v927
          %v934 = vor.u32 %v932, %v933
          %v935 = vshll.u32 2131351028, %v926
          %v936 = vshrl.u32 2102212464, %v927
          %v937 = vor.u32 %v935, %v936
          %v938 = vshll.u32 2102212464, %v926
          %v939 = vshrl.u32 920167782, %v927
          %v940 = vor.u32 %v938, %v939
          %v941 = vshll.u32 920167782, %v926
          %v942 = vshrl.u32 1326507024, %v927
          %v943 = vor.u32 %v941, %v942
          %vm944 = vcmp.lt.s32.totalorder %v925, 1
          %vm945 = vcmp.lt.s32.totalorder %v925, 2
          %vm946 = vcmp.lt.s32.totalorder %v925, 3
          %vm947 = vcmp.lt.s32.totalorder %v925, 4
          %v948 = vsel %vm944, %v928, %v931
          %v949 = vsel %vm947, %v937, 2102212464
          %v950 = vsel %vm946, %v934, %v949
          %v951 = vsel %vm945, %v948, %v950
          %v952 = vsel %vm944, %v931, %v934
          %v953 = vsel %vm947, %v940, 920167782
          %v954 = vsel %vm946, %v937, %v953
          %v955 = vsel %vm945, %v952, %v954
          %v956 = vsel %vm944, %v934, %v937
          %v957 = vsel %vm947, %v943, 1326507024
          %v958 = vsel %vm946, %v940, %v957
          %v959 = vsel %vm945, %v956, %v958
          %v960 = vshll.u32 %v920, 8
          %v961 = vand.u32 %v960, 65535
          %v962 = vshrl.u32 %v960, 16
          %v963 = vand.u32 %v959, 65535
          %v964 = vshrl.u32 %v959, 16
          %v965 = vmul.u32 %v961, %v963
          %v966 = vmul.u32 %v961, %v964
          %v967 = vmul.u32 %v962, %v963
          %v968 = vmul.u32 %v962, %v964
          %v969 = vshll.u32 %v966, 16
          %v970 = vshrl.u32 %v966, 16
          %v971 = vshll.u32 %v967, 16
          %v972 = vshrl.u32 %v967, 16
          %vm973 = vc.u32 %v965, %v969
          %v974 = vsel %vm973, 1, 0
          %v975 = vadd.s32 %v965, %v969
          %v976 = vadd.s32 %v968, %v974
          %vm977 = vc.u32 %v975, %v971
          %v978 = vsel %vm977, 1, 0
          %v979 = vadd.s32 %v975, %v971
          %v980 = vadd.s32 %v976, %v978
          %v981 = vadd.s32 %v980, %v970
          %v982 = vadd.s32 %v981, %v972
          %v983 = vand.u32 %v960, 65535
          %v984 = vshrl.u32 %v960, 16
          %v985 = vand.u32 %v955, 65535
          %v986 = vshrl.u32 %v955, 16
          %v987 = vmul.u32 %v983, %v985
          %v988 = vmul.u32 %v983, %v986
          %v989 = vmul.u32 %v984, %v985
          %v990 = vmul.u32 %v984, %v986
          %v991 = vshll.u32 %v988, 16
          %v992 = vshrl.u32 %v988, 16
          %v993 = vshll.u32 %v989, 16
          %v994 = vshrl.u32 %v989, 16
          %vm995 = vc.u32 %v987, %v991
          %v996 = vsel %vm995, 1, 0
          %v997 = vadd.s32 %v987, %v991
          %v998 = vadd.s32 %v990, %v996
          %vm999 = vc.u32 %v997, %v993
          %v1000 = vsel %vm999, 1, 0
          %v1001 = vadd.s32 %v997, %v993
          %v1002 = vadd.s32 %v998, %v1000
          %v1003 = vadd.s32 %v1002, %v992
          %v1004 = vadd.s32 %v1003, %v994
          %v1005 = vmul.u32 %v960, %v951
          %v1006 = vadd.s32 %v982, %v1001
          %vm1007 = vc.u32 %v982, %v1001
          %v1008 = vadd.s32 %v1004, 1
          %v1009 = vsel %vm1007, %v1008, %v1004
          %v1010 = vadd.s32 %v1005, %v1009
          %v1011 = vadd.s32 %v1010, 536870912
          %v1012 = vshrl.u32 %v1011, 30
          %v1013 = vshll.u32 %v1012, 30
          %v1014 = vsub.s32 %v1010, %v1013
          %vm1015 = vcmp.lt.s32.totalorder %v1014, 0
          %v1016 = vsub.s32 0, %v1014
          %v1017 = vsel %vm1015, %v1016, %v1014
          %v1018 = vclz %v1017
          %v1019 = vsub.s32 %v1018, 2
          %vm1020 = vcmp.gt.s32.totalorder 0, %v1019
          %v1021 = vsel %vm1020, 0, %v1019
          %v1022 = vsub.s32 32, %v1021
          %v1023 = vshll.u32 %v1014, %v1021
          %v1024 = vshrl.u32 %v1006, %v1022
          %v1025 = vor.u32 %v1023, %v1024
          %v1026 = vsub.s32 4294967266, %v1021
          %v1027 = vadd.s32 %v1026, 127
          %v1028 = vshll.u32 %v1027, 23
          %v1029 = vor.u32 4788187, %v1028
          %v1030 = vand.u32 2147483647, %v1029
          %v1032 = vcvt.s32.f32 %v1025
          %v1033 = vmul.f32 %v1032, %v1030
          %v1034 = vxor.u32 %v1033, 2147483648
          %v1035 = vsel %vm914, %v1034, %v1033
          %v1036 = vsub.s32 4, %v1012
          %v1037 = vsel %vm914, %v1036, %v1012
          %v1038 = vsel %vm913, %v392, %v1035
          %v1039 = vsel %vm913, 0, %v1037
          %v1040 = vmul.f32 %v1038, %v1038
          %v1041 = vmul.f32 %v1040, -0.001358992
          %v1042 = vadd.f32 %v1041, 0.041655596
          %v1043 = vmul.f32 %v1040, %v1042
          %v1044 = vadd.f32 %v1043, -0.4999988
          %v1045 = vmul.f32 %v1040, %v1044
          %v1046 = vadd.f32 1.0, %v1045
          %v1047 = vmul.f32 %v1038, %v1038
          %v1048 = vmul.f32 %v1047, -0.00019511016
          %v1049 = vadd.f32 %v1048, 0.008332121
          %v1050 = vmul.f32 %v1047, %v1049
          %v1051 = vadd.f32 %v1050, -0.16666654
          %v1052 = vmul.f32 %v1047, %v1051
          %v1053 = vadd.f32 %v1052, 1.0
          %v1054 = vmul.f32 %v1053, %v1038
          %vm1055 = vweird.f32 %v392
          %v1056 = vadd.s32 %v1039, 3
          %v1057 = vand.u32 %v1056, 3
          %vm1058 = vcmp.lt.s32.totalorder %v1057, 2
          %vm1059 = vcmp.eq.s32.totalorder %v1057, 0
          %v1060 = vxor.u32 %v1054, 2147483648
          %v1061 = vsel %vm1059, %v1046, %v1060
          %vm1062 = vcmp.eq.s32.totalorder %v1057, 2
          %v1063 = vxor.u32 %v1046, 2147483648
          %v1064 = vsel %vm1062, %v1063, %v1054
          %v1065 = vsel %vm1058, %v1061, %v1064
          %v1066 = vsel %vm1055, nan, %v1065
          %v1067 = vand.u32 2147483647, %v395
          %vm1068 = vcmp.le.f32.partialorder %v1067, 0.7853982
          %vm1069 = vcmp.lt.s32.totalorder %v395, 0
          %v1070 = vand.u32 %v395, 2139095040
          %v1071 = vshrl.u32 %v1070, 23
          %v1072 = vsub.s32 %v1071, 127
          %v1073 = vand.u32 2147483647, %v395
          %v1074 = vand.u32 %v1073, 8388607
          %v1075 = vor.u32 %v1074, 8388608
          %v1076 = vsub.s32 0, %v1075
          %v1077 = vadd.s32 %v1072, 1
          %vm1078 = vcmp.gt.s32.totalorder %v1077, 0
          %v1079 = vsel %vm1078, %v1077, 0
          %v1080 = vshrl.u32 %v1079, 5
          %v1081 = vand.u32 %v1079, 31
          %v1082 = vsub.s32 32, %v1081
          %v1083 = vshrl.u32 683565275, %v1082
          %v1084 = vshll.u32 683565275, %v1081
          %v1085 = vshrl.u32 2475754826, %v1082
          %v1086 = vor.u32 %v1084, %v1085
          %v1087 = vshll.u32 2475754826, %v1081
          %v1088 = vshrl.u32 2131351028, %v1082
          %v1089 = vor.u32 %v1087, %v1088
          %v1090 = vshll.u32 2131351028, %v1081
          %v1091 = vshrl.u32 2102212464, %v1082
          %v1092 = vor.u32 %v1090, %v1091
          %v1093 = vshll.u32 2102212464, %v1081
          %v1094 = vshrl.u32 920167782, %v1082
          %v1095 = vor.u32 %v1093, %v1094
          %v1096 = vshll.u32 920167782, %v1081
          %v1097 = vshrl.u32 1326507024, %v1082
          %v1098 = vor.u32 %v1096, %v1097
          %vm1099 = vcmp.lt.s32.totalorder %v1080, 1
          %vm1100 = vcmp.lt.s32.totalorder %v1080, 2
          %vm1101 = vcmp.lt.s32.totalorder %v1080, 3
          %vm1102 = vcmp.lt.s32.totalorder %v1080, 4
          %v1103 = vsel %vm1099, %v1083, %v1086
          %v1104 = vsel %vm1102, %v1092, 2102212464
          %v1105 = vsel %vm1101, %v1089, %v1104
          %v1106 = vsel %vm1100, %v1103, %v1105
          %v1107 = vsel %vm1099, %v1086, %v1089
          %v1108 = vsel %vm1102, %v1095, 920167782
          %v1109 = vsel %vm1101, %v1092, %v1108
          %v1110 = vsel %vm1100, %v1107, %v1109
          %v1111 = vsel %vm1099, %v1089, %v1092
          %v1112 = vsel %vm1102, %v1098, 1326507024
          %v1113 = vsel %vm1101, %v1095, %v1112
          %v1114 = vsel %vm1100, %v1111, %v1113
          %v1115 = vshll.u32 %v1075, 8
          %v1116 = vand.u32 %v1115, 65535
          %v1117 = vshrl.u32 %v1115, 16
          %v1118 = vand.u32 %v1114, 65535
          %v1119 = vshrl.u32 %v1114, 16
          %v1120 = vmul.u32 %v1116, %v1118
          %v1121 = vmul.u32 %v1116, %v1119
          %v1122 = vmul.u32 %v1117, %v1118
          %v1123 = vmul.u32 %v1117, %v1119
          %v1124 = vshll.u32 %v1121, 16
          %v1125 = vshrl.u32 %v1121, 16
          %v1126 = vshll.u32 %v1122, 16
          %v1127 = vshrl.u32 %v1122, 16
          %vm1128 = vc.u32 %v1120, %v1124
          %v1129 = vsel %vm1128, 1, 0
          %v1130 = vadd.s32 %v1120, %v1124
          %v1131 = vadd.s32 %v1123, %v1129
          %vm1132 = vc.u32 %v1130, %v1126
          %v1133 = vsel %vm1132, 1, 0
          %v1134 = vadd.s32 %v1130, %v1126
          %v1135 = vadd.s32 %v1131, %v1133
          %v1136 = vadd.s32 %v1135, %v1125
          %v1137 = vadd.s32 %v1136, %v1127
          %v1138 = vand.u32 %v1115, 65535
          %v1139 = vshrl.u32 %v1115, 16
          %v1140 = vand.u32 %v1110, 65535
          %v1141 = vshrl.u32 %v1110, 16
          %v1142 = vmul.u32 %v1138, %v1140
          %v1143 = vmul.u32 %v1138, %v1141
          %v1144 = vmul.u32 %v1139, %v1140
          %v1145 = vmul.u32 %v1139, %v1141
          %v1146 = vshll.u32 %v1143, 16
          %v1147 = vshrl.u32 %v1143, 16
          %v1148 = vshll.u32 %v1144, 16
          %v1149 = vshrl.u32 %v1144, 16
          %vm1150 = vc.u32 %v1142, %v1146
          %v1151 = vsel %vm1150, 1, 0
          %v1152 = vadd.s32 %v1142, %v1146
          %v1153 = vadd.s32 %v1145, %v1151
          %vm1154 = vc.u32 %v1152, %v1148
          %v1155 = vsel %vm1154, 1, 0
          %v1156 = vadd.s32 %v1152, %v1148
          %v1157 = vadd.s32 %v1153, %v1155
          %v1158 = vadd.s32 %v1157, %v1147
          %v1159 = vadd.s32 %v1158, %v1149
          %v1160 = vmul.u32 %v1115, %v1106
          %v1161 = vadd.s32 %v1137, %v1156
          %vm1162 = vc.u32 %v1137, %v1156
          %v1163 = vadd.s32 %v1159, 1
          %v1164 = vsel %vm1162, %v1163, %v1159
          %v1165 = vadd.s32 %v1160, %v1164
          %v1166 = vadd.s32 %v1165, 536870912
          %v1167 = vshrl.u32 %v1166, 30
          %v1168 = vshll.u32 %v1167, 30
          %v1169 = vsub.s32 %v1165, %v1168
          %vm1170 = vcmp.lt.s32.totalorder %v1169, 0
          %v1171 = vsub.s32 0, %v1169
          %v1172 = vsel %vm1170, %v1171, %v1169
          %v1173 = vclz %v1172
          %v1174 = vsub.s32 %v1173, 2
          %vm1175 = vcmp.gt.s32.totalorder 0, %v1174
          %v1176 = vsel %vm1175, 0, %v1174
          %v1177 = vsub.s32 32, %v1176
          %v1178 = vshll.u32 %v1169, %v1176
          %v1179 = vshrl.u32 %v1161, %v1177
          %v1180 = vor.u32 %v1178, %v1179
          %v1181 = vsub.s32 4294967266, %v1176
          %v1182 = vadd.s32 %v1181, 127
          %v1183 = vshll.u32 %v1182, 23
          %v1184 = vor.u32 4788187, %v1183
          %v1185 = vand.u32 2147483647, %v1184
          %v1187 = vcvt.s32.f32 %v1180
          %v1188 = vmul.f32 %v1187, %v1185
          %v1189 = vxor.u32 %v1188, 2147483648
          %v1190 = vsel %vm1069, %v1189, %v1188
          %v1191 = vsub.s32 4, %v1167
          %v1192 = vsel %vm1069, %v1191, %v1167
          %v1193 = vsel %vm1068, %v395, %v1190
          %v1194 = vsel %vm1068, 0, %v1192
          %v1195 = vmul.f32 %v1193, %v1193
          %v1196 = vmul.f32 %v1195, -0.001358992
          %v1197 = vadd.f32 %v1196, 0.041655596
          %v1198 = vmul.f32 %v1195, %v1197
          %v1199 = vadd.f32 %v1198, -0.4999988
          %v1200 = vmul.f32 %v1195, %v1199
          %v1201 = vadd.f32 1.0, %v1200
          %v1202 = vmul.f32 %v1193, %v1193
          %v1203 = vmul.f32 %v1202, -0.00019511016
          %v1204 = vadd.f32 %v1203, 0.008332121
          %v1205 = vmul.f32 %v1202, %v1204
          %v1206 = vadd.f32 %v1205, -0.16666654
          %v1207 = vmul.f32 %v1202, %v1206
          %v1208 = vadd.f32 %v1207, 1.0
          %v1209 = vmul.f32 %v1208, %v1193
          %vm1210 = vweird.f32 %v395
          %v1211 = vadd.s32 %v1194, 3
          %v1212 = vand.u32 %v1211, 3
          %vm1213 = vcmp.lt.s32.totalorder %v1212, 2
          %vm1214 = vcmp.eq.s32.totalorder %v1212, 0
          %v1215 = vxor.u32 %v1209, 2147483648
          %v1216 = vsel %vm1214, %v1201, %v1215
          %vm1217 = vcmp.eq.s32.totalorder %v1212, 2
          %v1218 = vxor.u32 %v1201, 2147483648
          %v1219 = vsel %vm1217, %v1218, %v1209
          %v1220 = vsel %vm1213, %v1216, %v1219
          %v1221 = vsel %vm1210, nan, %v1220
          %v1222 = vand.u32 2147483647, %v398
          %vm1223 = vcmp.le.f32.partialorder %v1222, 0.7853982
          %vm1224 = vcmp.lt.s32.totalorder %v398, 0
          %v1225 = vand.u32 %v398, 2139095040
          %v1226 = vshrl.u32 %v1225, 23
          %v1227 = vsub.s32 %v1226, 127
          %v1228 = vand.u32 2147483647, %v398
          %v1229 = vand.u32 %v1228, 8388607
          %v1230 = vor.u32 %v1229, 8388608
          %v1231 = vsub.s32 0, %v1230
          %v1232 = vadd.s32 %v1227, 1
          %vm1233 = vcmp.gt.s32.totalorder %v1232, 0
          %v1234 = vsel %vm1233, %v1232, 0
          %v1235 = vshrl.u32 %v1234, 5
          %v1236 = vand.u32 %v1234, 31
          %v1237 = vsub.s32 32, %v1236
          %v1238 = vshrl.u32 683565275, %v1237
          %v1239 = vshll.u32 683565275, %v1236
          %v1240 = vshrl.u32 2475754826, %v1237
          %v1241 = vor.u32 %v1239, %v1240
          %v1242 = vshll.u32 2475754826, %v1236
          %v1243 = vshrl.u32 2131351028, %v1237
          %v1244 = vor.u32 %v1242, %v1243
          %v1245 = vshll.u32 2131351028, %v1236
          %v1246 = vshrl.u32 2102212464, %v1237
          %v1247 = vor.u32 %v1245, %v1246
          %v1248 = vshll.u32 2102212464, %v1236
          %v1249 = vshrl.u32 920167782, %v1237
          %v1250 = vor.u32 %v1248, %v1249
          %v1251 = vshll.u32 920167782, %v1236
          %v1252 = vshrl.u32 1326507024, %v1237
          %v1253 = vor.u32 %v1251, %v1252
          %vm1254 = vcmp.lt.s32.totalorder %v1235, 1
          %vm1255 = vcmp.lt.s32.totalorder %v1235, 2
          %vm1256 = vcmp.lt.s32.totalorder %v1235, 3
          %vm1257 = vcmp.lt.s32.totalorder %v1235, 4
          %v1258 = vsel %vm1254, %v1238, %v1241
          %v1259 = vsel %vm1257, %v1247, 2102212464
          %v1260 = vsel %vm1256, %v1244, %v1259
          %v1261 = vsel %vm1255, %v1258, %v1260
          %v1262 = vsel %vm1254, %v1241, %v1244
          %v1263 = vsel %vm1257, %v1250, 920167782
          %v1264 = vsel %vm1256, %v1247, %v1263
          %v1265 = vsel %vm1255, %v1262, %v1264
          %v1266 = vsel %vm1254, %v1244, %v1247
          %v1267 = vsel %vm1257, %v1253, 1326507024
          %v1268 = vsel %vm1256, %v1250, %v1267
          %v1269 = vsel %vm1255, %v1266, %v1268
          %v1270 = vshll.u32 %v1230, 8
          %v1271 = vand.u32 %v1270, 65535
          %v1272 = vshrl.u32 %v1270, 16
          %v1273 = vand.u32 %v1269, 65535
          %v1274 = vshrl.u32 %v1269, 16
          %v1275 = vmul.u32 %v1271, %v1273
          %v1276 = vmul.u32 %v1271, %v1274
          %v1277 = vmul.u32 %v1272, %v1273
          %v1278 = vmul.u32 %v1272, %v1274
          %v1279 = vshll.u32 %v1276, 16
          %v1280 = vshrl.u32 %v1276, 16
          %v1281 = vshll.u32 %v1277, 16
          %v1282 = vshrl.u32 %v1277, 16
          %vm1283 = vc.u32 %v1275, %v1279
          %v1284 = vsel %vm1283, 1, 0
          %v1285 = vadd.s32 %v1275, %v1279
          %v1286 = vadd.s32 %v1278, %v1284
          %vm1287 = vc.u32 %v1285, %v1281
          %v1288 = vsel %vm1287, 1, 0
          %v1289 = vadd.s32 %v1285, %v1281
          %v1290 = vadd.s32 %v1286, %v1288
          %v1291 = vadd.s32 %v1290, %v1280
          %v1292 = vadd.s32 %v1291, %v1282
          %v1293 = vand.u32 %v1270, 65535
          %v1294 = vshrl.u32 %v1270, 16
          %v1295 = vand.u32 %v1265, 65535
          %v1296 = vshrl.u32 %v1265, 16
          %v1297 = vmul.u32 %v1293, %v1295
          %v1298 = vmul.u32 %v1293, %v1296
          %v1299 = vmul.u32 %v1294, %v1295
          %v1300 = vmul.u32 %v1294, %v1296
          %v1301 = vshll.u32 %v1298, 16
          %v1302 = vshrl.u32 %v1298, 16
          %v1303 = vshll.u32 %v1299, 16
          %v1304 = vshrl.u32 %v1299, 16
          %vm1305 = vc.u32 %v1297, %v1301
          %v1306 = vsel %vm1305, 1, 0
          %v1307 = vadd.s32 %v1297, %v1301
          %v1308 = vadd.s32 %v1300, %v1306
          %vm1309 = vc.u32 %v1307, %v1303
          %v1310 = vsel %vm1309, 1, 0
          %v1311 = vadd.s32 %v1307, %v1303
          %v1312 = vadd.s32 %v1308, %v1310
          %v1313 = vadd.s32 %v1312, %v1302
          %v1314 = vadd.s32 %v1313, %v1304
          %v1315 = vmul.u32 %v1270, %v1261
          %v1316 = vadd.s32 %v1292, %v1311
          %vm1317 = vc.u32 %v1292, %v1311
          %v1318 = vadd.s32 %v1314, 1
          %v1319 = vsel %vm1317, %v1318, %v1314
          %v1320 = vadd.s32 %v1315, %v1319
          %v1321 = vadd.s32 %v1320, 536870912
          %v1322 = vshrl.u32 %v1321, 30
          %v1323 = vshll.u32 %v1322, 30
          %v1324 = vsub.s32 %v1320, %v1323
          %vm1325 = vcmp.lt.s32.totalorder %v1324, 0
          %v1326 = vsub.s32 0, %v1324
          %v1327 = vsel %vm1325, %v1326, %v1324
          %v1328 = vclz %v1327
          %v1329 = vsub.s32 %v1328, 2
          %vm1330 = vcmp.gt.s32.totalorder 0, %v1329
          %v1331 = vsel %vm1330, 0, %v1329
          %v1332 = vsub.s32 32, %v1331
          %v1333 = vshll.u32 %v1324, %v1331
          %v1334 = vshrl.u32 %v1316, %v1332
          %v1335 = vor.u32 %v1333, %v1334
          %v1336 = vsub.s32 4294967266, %v1331
          %v1337 = vadd.s32 %v1336, 127
          %v1338 = vshll.u32 %v1337, 23
          %v1339 = vor.u32 4788187, %v1338
          %v1340 = vand.u32 2147483647, %v1339
          %v1342 = vcvt.s32.f32 %v1335
          %v1343 = vmul.f32 %v1342, %v1340
          %v1344 = vxor.u32 %v1343, 2147483648
          %v1345 = vsel %vm1224, %v1344, %v1343
          %v1346 = vsub.s32 4, %v1322
          %v1347 = vsel %vm1224, %v1346, %v1322
          %v1348 = vsel %vm1223, %v398, %v1345
          %v1349 = vsel %vm1223, 0, %v1347
          %v1350 = vmul.f32 %v1348, %v1348
          %v1351 = vmul.f32 %v1350, -0.001358992
          %v1352 = vadd.f32 %v1351, 0.041655596
          %v1353 = vmul.f32 %v1350, %v1352
          %v1354 = vadd.f32 %v1353, -0.4999988
          %v1355 = vmul.f32 %v1350, %v1354
          %v1356 = vadd.f32 1.0, %v1355
          %v1357 = vmul.f32 %v1348, %v1348
          %v1358 = vmul.f32 %v1357, -0.00019511016
          %v1359 = vadd.f32 %v1358, 0.008332121
          %v1360 = vmul.f32 %v1357, %v1359
          %v1361 = vadd.f32 %v1360, -0.16666654
          %v1362 = vmul.f32 %v1357, %v1361
          %v1363 = vadd.f32 %v1362, 1.0
          %v1364 = vmul.f32 %v1363, %v1348
          %vm1365 = vweird.f32 %v398
          %v1366 = vadd.s32 %v1349, 3
          %v1367 = vand.u32 %v1366, 3
          %vm1368 = vcmp.lt.s32.totalorder %v1367, 2
          %vm1369 = vcmp.eq.s32.totalorder %v1367, 0
          %v1370 = vxor.u32 %v1364, 2147483648
          %v1371 = vsel %vm1369, %v1356, %v1370
          %vm1372 = vcmp.eq.s32.totalorder %v1367, 2
          %v1373 = vxor.u32 %v1356, 2147483648
          %v1374 = vsel %vm1372, %v1373, %v1364
          %v1375 = vsel %vm1368, %v1371, %v1374
          %v1376 = vsel %vm1365, nan, %v1375
          %v1377 = vand.u32 2147483647, %v401
          %vm1378 = vcmp.le.f32.partialorder %v1377, 0.7853982
          %vm1379 = vcmp.lt.s32.totalorder %v401, 0
          %v1380 = vand.u32 %v401, 2139095040
          %v1381 = vshrl.u32 %v1380, 23
          %v1382 = vsub.s32 %v1381, 127
          %v1383 = vand.u32 2147483647, %v401
          %v1384 = vand.u32 %v1383, 8388607
          %v1385 = vor.u32 %v1384, 8388608
          %v1386 = vsub.s32 0, %v1385
          %v1387 = vadd.s32 %v1382, 1
          %vm1388 = vcmp.gt.s32.totalorder %v1387, 0
          %v1389 = vsel %vm1388, %v1387, 0
          %v1390 = vshrl.u32 %v1389, 5
          %v1391 = vand.u32 %v1389, 31
          %v1392 = vsub.s32 32, %v1391
          %v1393 = vshrl.u32 683565275, %v1392
          %v1394 = vshll.u32 683565275, %v1391
          %v1395 = vshrl.u32 2475754826, %v1392
          %v1396 = vor.u32 %v1394, %v1395
          %v1397 = vshll.u32 2475754826, %v1391
          %v1398 = vshrl.u32 2131351028, %v1392
          %v1399 = vor.u32 %v1397, %v1398
          %v1400 = vshll.u32 2131351028, %v1391
          %v1401 = vshrl.u32 2102212464, %v1392
          %v1402 = vor.u32 %v1400, %v1401
          %v1403 = vshll.u32 2102212464, %v1391
          %v1404 = vshrl.u32 920167782, %v1392
          %v1405 = vor.u32 %v1403, %v1404
          %v1406 = vshll.u32 920167782, %v1391
          %v1407 = vshrl.u32 1326507024, %v1392
          %v1408 = vor.u32 %v1406, %v1407
          %vm1409 = vcmp.lt.s32.totalorder %v1390, 1
          %vm1410 = vcmp.lt.s32.totalorder %v1390, 2
          %vm1411 = vcmp.lt.s32.totalorder %v1390, 3
          %vm1412 = vcmp.lt.s32.totalorder %v1390, 4
          %v1413 = vsel %vm1409, %v1393, %v1396
          %v1414 = vsel %vm1412, %v1402, 2102212464
          %v1415 = vsel %vm1411, %v1399, %v1414
          %v1416 = vsel %vm1410, %v1413, %v1415
          %v1417 = vsel %vm1409, %v1396, %v1399
          %v1418 = vsel %vm1412, %v1405, 920167782
          %v1419 = vsel %vm1411, %v1402, %v1418
          %v1420 = vsel %vm1410, %v1417, %v1419
          %v1421 = vsel %vm1409, %v1399, %v1402
          %v1422 = vsel %vm1412, %v1408, 1326507024
          %v1423 = vsel %vm1411, %v1405, %v1422
          %v1424 = vsel %vm1410, %v1421, %v1423
          %v1425 = vshll.u32 %v1385, 8
          %v1426 = vand.u32 %v1425, 65535
          %v1427 = vshrl.u32 %v1425, 16
          %v1428 = vand.u32 %v1424, 65535
          %v1429 = vshrl.u32 %v1424, 16
          %v1430 = vmul.u32 %v1426, %v1428
          %v1431 = vmul.u32 %v1426, %v1429
          %v1432 = vmul.u32 %v1427, %v1428
          %v1433 = vmul.u32 %v1427, %v1429
          %v1434 = vshll.u32 %v1431, 16
          %v1435 = vshrl.u32 %v1431, 16
          %v1436 = vshll.u32 %v1432, 16
          %v1437 = vshrl.u32 %v1432, 16
          %vm1438 = vc.u32 %v1430, %v1434
          %v1439 = vsel %vm1438, 1, 0
          %v1440 = vadd.s32 %v1430, %v1434
          %v1441 = vadd.s32 %v1433, %v1439
          %vm1442 = vc.u32 %v1440, %v1436
          %v1443 = vsel %vm1442, 1, 0
          %v1444 = vadd.s32 %v1440, %v1436
          %v1445 = vadd.s32 %v1441, %v1443
          %v1446 = vadd.s32 %v1445, %v1435
          %v1447 = vadd.s32 %v1446, %v1437
          %v1448 = vand.u32 %v1425, 65535
          %v1449 = vshrl.u32 %v1425, 16
          %v1450 = vand.u32 %v1420, 65535
          %v1451 = vshrl.u32 %v1420, 16
          %v1452 = vmul.u32 %v1448, %v1450
          %v1453 = vmul.u32 %v1448, %v1451
          %v1454 = vmul.u32 %v1449, %v1450
          %v1455 = vmul.u32 %v1449, %v1451
          %v1456 = vshll.u32 %v1453, 16
          %v1457 = vshrl.u32 %v1453, 16
          %v1458 = vshll.u32 %v1454, 16
          %v1459 = vshrl.u32 %v1454, 16
          %vm1460 = vc.u32 %v1452, %v1456
          %v1461 = vsel %vm1460, 1, 0
          %v1462 = vadd.s32 %v1452, %v1456
          %v1463 = vadd.s32 %v1455, %v1461
          %vm1464 = vc.u32 %v1462, %v1458
          %v1465 = vsel %vm1464, 1, 0
          %v1466 = vadd.s32 %v1462, %v1458
          %v1467 = vadd.s32 %v1463, %v1465
          %v1468 = vadd.s32 %v1467, %v1457
          %v1469 = vadd.s32 %v1468, %v1459
          %v1470 = vmul.u32 %v1425, %v1416
          %v1471 = vadd.s32 %v1447, %v1466
          %vm1472 = vc.u32 %v1447, %v1466
          %v1473 = vadd.s32 %v1469, 1
          %v1474 = vsel %vm1472, %v1473, %v1469
          %v1475 = vadd.s32 %v1470, %v1474
          %v1476 = vadd.s32 %v1475, 536870912
          %v1477 = vshrl.u32 %v1476, 30
          %v1478 = vshll.u32 %v1477, 30
          %v1479 = vsub.s32 %v1475, %v1478
          %vm1480 = vcmp.lt.s32.totalorder %v1479, 0
          %v1481 = vsub.s32 0, %v1479
          %v1482 = vsel %vm1480, %v1481, %v1479
          %v1483 = vclz %v1482
          %v1484 = vsub.s32 %v1483, 2
          %vm1485 = vcmp.gt.s32.totalorder 0, %v1484
          %v1486 = vsel %vm1485, 0, %v1484
          %v1487 = vsub.s32 32, %v1486
          %v1488 = vshll.u32 %v1479, %v1486
          %v1489 = vshrl.u32 %v1471, %v1487
          %v1490 = vor.u32 %v1488, %v1489
          %v1491 = vsub.s32 4294967266, %v1486
          %v1492 = vadd.s32 %v1491, 127
          %v1493 = vshll.u32 %v1492, 23
          %v1494 = vor.u32 4788187, %v1493
          %v1495 = vand.u32 2147483647, %v1494
          %v1497 = vcvt.s32.f32 %v1490
          %v1498 = vmul.f32 %v1497, %v1495
          %v1499 = vxor.u32 %v1498, 2147483648
          %v1500 = vsel %vm1379, %v1499, %v1498
          %v1501 = vsub.s32 4, %v1477
          %v1502 = vsel %vm1379, %v1501, %v1477
          %v1503 = vsel %vm1378, %v401, %v1500
          %v1504 = vsel %vm1378, 0, %v1502
          %v1505 = vmul.f32 %v1503, %v1503
          %v1506 = vmul.f32 %v1505, -0.001358992
          %v1507 = vadd.f32 %v1506, 0.041655596
          %v1508 = vmul.f32 %v1505, %v1507
          %v1509 = vadd.f32 %v1508, -0.4999988
          %v1510 = vmul.f32 %v1505, %v1509
          %v1511 = vadd.f32 1.0, %v1510
          %v1512 = vmul.f32 %v1503, %v1503
          %v1513 = vmul.f32 %v1512, -0.00019511016
          %v1514 = vadd.f32 %v1513, 0.008332121
          %v1515 = vmul.f32 %v1512, %v1514
          %v1516 = vadd.f32 %v1515, -0.16666654
          %v1517 = vmul.f32 %v1512, %v1516
          %v1518 = vadd.f32 %v1517, 1.0
          %v1519 = vmul.f32 %v1518, %v1503
          %vm1520 = vweird.f32 %v401
          %v1521 = vadd.s32 %v1504, 3
          %v1522 = vand.u32 %v1521, 3
          %vm1523 = vcmp.lt.s32.totalorder %v1522, 2
          %vm1524 = vcmp.eq.s32.totalorder %v1522, 0
          %v1525 = vxor.u32 %v1519, 2147483648
          %v1526 = vsel %vm1524, %v1511, %v1525
          %vm1527 = vcmp.eq.s32.totalorder %v1522, 2
          %v1528 = vxor.u32 %v1511, 2147483648
          %v1529 = vsel %vm1527, %v1528, %v1519
          %v1530 = vsel %vm1523, %v1526, %v1529
          %v1531 = vsel %vm1520, nan, %v1530
          %v1532 = vand.u32 2147483647, %v404
          %vm1533 = vcmp.le.f32.partialorder %v1532, 0.7853982
          %vm1534 = vcmp.lt.s32.totalorder %v404, 0
          %v1535 = vand.u32 %v404, 2139095040
          %v1536 = vshrl.u32 %v1535, 23
          %v1537 = vsub.s32 %v1536, 127
          %v1538 = vand.u32 2147483647, %v404
          %v1539 = vand.u32 %v1538, 8388607
          %v1540 = vor.u32 %v1539, 8388608
          %v1541 = vsub.s32 0, %v1540
          %v1542 = vadd.s32 %v1537, 1
          %vm1543 = vcmp.gt.s32.totalorder %v1542, 0
          %v1544 = vsel %vm1543, %v1542, 0
          %v1545 = vshrl.u32 %v1544, 5
          %v1546 = vand.u32 %v1544, 31
          %v1547 = vsub.s32 32, %v1546
          %v1548 = vshrl.u32 683565275, %v1547
          %v1549 = vshll.u32 683565275, %v1546
          %v1550 = vshrl.u32 2475754826, %v1547
          %v1551 = vor.u32 %v1549, %v1550
          %v1552 = vshll.u32 2475754826, %v1546
          %v1553 = vshrl.u32 2131351028, %v1547
          %v1554 = vor.u32 %v1552, %v1553
          %v1555 = vshll.u32 2131351028, %v1546
          %v1556 = vshrl.u32 2102212464, %v1547
          %v1557 = vor.u32 %v1555, %v1556
          %v1558 = vshll.u32 2102212464, %v1546
          %v1559 = vshrl.u32 920167782, %v1547
          %v1560 = vor.u32 %v1558, %v1559
          %v1561 = vshll.u32 920167782, %v1546
          %v1562 = vshrl.u32 1326507024, %v1547
          %v1563 = vor.u32 %v1561, %v1562
          %vm1564 = vcmp.lt.s32.totalorder %v1545, 1
          %vm1565 = vcmp.lt.s32.totalorder %v1545, 2
          %vm1566 = vcmp.lt.s32.totalorder %v1545, 3
          %vm1567 = vcmp.lt.s32.totalorder %v1545, 4
          %v1568 = vsel %vm1564, %v1548, %v1551
          %v1569 = vsel %vm1567, %v1557, 2102212464
          %v1570 = vsel %vm1566, %v1554, %v1569
          %v1571 = vsel %vm1565, %v1568, %v1570
          %v1572 = vsel %vm1564, %v1551, %v1554
          %v1573 = vsel %vm1567, %v1560, 920167782
          %v1574 = vsel %vm1566, %v1557, %v1573
          %v1575 = vsel %vm1565, %v1572, %v1574
          %v1576 = vsel %vm1564, %v1554, %v1557
          %v1577 = vsel %vm1567, %v1563, 1326507024
          %v1578 = vsel %vm1566, %v1560, %v1577
          %v1579 = vsel %vm1565, %v1576, %v1578
          %v1580 = vshll.u32 %v1540, 8
          %v1581 = vand.u32 %v1580, 65535
          %v1582 = vshrl.u32 %v1580, 16
          %v1583 = vand.u32 %v1579, 65535
          %v1584 = vshrl.u32 %v1579, 16
          %v1585 = vmul.u32 %v1581, %v1583
          %v1586 = vmul.u32 %v1581, %v1584
          %v1587 = vmul.u32 %v1582, %v1583
          %v1588 = vmul.u32 %v1582, %v1584
          %v1589 = vshll.u32 %v1586, 16
          %v1590 = vshrl.u32 %v1586, 16
          %v1591 = vshll.u32 %v1587, 16
          %v1592 = vshrl.u32 %v1587, 16
          %vm1593 = vc.u32 %v1585, %v1589
          %v1594 = vsel %vm1593, 1, 0
          %v1595 = vadd.s32 %v1585, %v1589
          %v1596 = vadd.s32 %v1588, %v1594
          %vm1597 = vc.u32 %v1595, %v1591
          %v1598 = vsel %vm1597, 1, 0
          %v1599 = vadd.s32 %v1595, %v1591
          %v1600 = vadd.s32 %v1596, %v1598
          %v1601 = vadd.s32 %v1600, %v1590
          %v1602 = vadd.s32 %v1601, %v1592
          %v1603 = vand.u32 %v1580, 65535
          %v1604 = vshrl.u32 %v1580, 16
          %v1605 = vand.u32 %v1575, 65535
          %v1606 = vshrl.u32 %v1575, 16
          %v1607 = vmul.u32 %v1603, %v1605
          %v1608 = vmul.u32 %v1603, %v1606
          %v1609 = vmul.u32 %v1604, %v1605
          %v1610 = vmul.u32 %v1604, %v1606
          %v1611 = vshll.u32 %v1608, 16
          %v1612 = vshrl.u32 %v1608, 16
          %v1613 = vshll.u32 %v1609, 16
          %v1614 = vshrl.u32 %v1609, 16
          %vm1615 = vc.u32 %v1607, %v1611
          %v1616 = vsel %vm1615, 1, 0
          %v1617 = vadd.s32 %v1607, %v1611
          %v1618 = vadd.s32 %v1610, %v1616
          %vm1619 = vc.u32 %v1617, %v1613
          %v1620 = vsel %vm1619, 1, 0
          %v1621 = vadd.s32 %v1617, %v1613
          %v1622 = vadd.s32 %v1618, %v1620
          %v1623 = vadd.s32 %v1622, %v1612
          %v1624 = vadd.s32 %v1623, %v1614
          %v1625 = vmul.u32 %v1580, %v1571
          %v1626 = vadd.s32 %v1602, %v1621
          %vm1627 = vc.u32 %v1602, %v1621
          %v1628 = vadd.s32 %v1624, 1
          %v1629 = vsel %vm1627, %v1628, %v1624
          %v1630 = vadd.s32 %v1625, %v1629
          %v1631 = vadd.s32 %v1630, 536870912
          %v1632 = vshrl.u32 %v1631, 30
          %v1633 = vshll.u32 %v1632, 30
          %v1634 = vsub.s32 %v1630, %v1633
          %vm1635 = vcmp.lt.s32.totalorder %v1634, 0
          %v1636 = vsub.s32 0, %v1634
          %v1637 = vsel %vm1635, %v1636, %v1634
          %v1638 = vclz %v1637
          %v1639 = vsub.s32 %v1638, 2
          %vm1640 = vcmp.gt.s32.totalorder 0, %v1639
          %v1641 = vsel %vm1640, 0, %v1639
          %v1642 = vsub.s32 32, %v1641
          %v1643 = vshll.u32 %v1634, %v1641
          %v1644 = vshrl.u32 %v1626, %v1642
          %v1645 = vor.u32 %v1643, %v1644
          %v1646 = vsub.s32 4294967266, %v1641
          %v1647 = vadd.s32 %v1646, 127
          %v1648 = vshll.u32 %v1647, 23
          %v1649 = vor.u32 4788187, %v1648
          %v1650 = vand.u32 2147483647, %v1649
          %v1652 = vcvt.s32.f32 %v1645
          %v1653 = vmul.f32 %v1652, %v1650
          %v1654 = vxor.u32 %v1653, 2147483648
          %v1655 = vsel %vm1534, %v1654, %v1653
          %v1656 = vsub.s32 4, %v1632
          %v1657 = vsel %vm1534, %v1656, %v1632
          %v1658 = vsel %vm1533, %v404, %v1655
          %v1659 = vsel %vm1533, 0, %v1657
          %v1660 = vmul.f32 %v1658, %v1658
          %v1661 = vmul.f32 %v1660, -0.001358992
          %v1662 = vadd.f32 %v1661, 0.041655596
          %v1663 = vmul.f32 %v1660, %v1662
          %v1664 = vadd.f32 %v1663, -0.4999988
          %v1665 = vmul.f32 %v1660, %v1664
          %v1666 = vadd.f32 1.0, %v1665
          %v1667 = vmul.f32 %v1658, %v1658
          %v1668 = vmul.f32 %v1667, -0.00019511016
          %v1669 = vadd.f32 %v1668, 0.008332121
          %v1670 = vmul.f32 %v1667, %v1669
          %v1671 = vadd.f32 %v1670, -0.16666654
          %v1672 = vmul.f32 %v1667, %v1671
          %v1673 = vadd.f32 %v1672, 1.0
          %v1674 = vmul.f32 %v1673, %v1658
          %vm1675 = vweird.f32 %v404
          %v1676 = vadd.s32 %v1659, 3
          %v1677 = vand.u32 %v1676, 3
          %vm1678 = vcmp.lt.s32.totalorder %v1677, 2
          %vm1679 = vcmp.eq.s32.totalorder %v1677, 0
          %v1680 = vxor.u32 %v1674, 2147483648
          %v1681 = vsel %vm1679, %v1666, %v1680
          %vm1682 = vcmp.eq.s32.totalorder %v1677, 2
          %v1683 = vxor.u32 %v1666, 2147483648
          %v1684 = vsel %vm1682, %v1683, %v1674
          %v1685 = vsel %vm1678, %v1681, %v1684
          %v1686 = vsel %vm1675, nan, %v1685
          %v1687 = vand.u32 2147483647, %v407
          %vm1688 = vcmp.le.f32.partialorder %v1687, 0.7853982
          %vm1689 = vcmp.lt.s32.totalorder %v407, 0
          %v1690 = vand.u32 %v407, 2139095040
          %v1691 = vshrl.u32 %v1690, 23
          %v1692 = vsub.s32 %v1691, 127
          %v1693 = vand.u32 2147483647, %v407
          %v1694 = vand.u32 %v1693, 8388607
          %v1695 = vor.u32 %v1694, 8388608
          %v1696 = vsub.s32 0, %v1695
          %v1697 = vadd.s32 %v1692, 1
          %vm1698 = vcmp.gt.s32.totalorder %v1697, 0
          %v1699 = vsel %vm1698, %v1697, 0
          %v1700 = vshrl.u32 %v1699, 5
          %v1701 = vand.u32 %v1699, 31
          %v1702 = vsub.s32 32, %v1701
          %v1703 = vshrl.u32 683565275, %v1702
          %v1704 = vshll.u32 683565275, %v1701
          %v1705 = vshrl.u32 2475754826, %v1702
          %v1706 = vor.u32 %v1704, %v1705
          %v1707 = vshll.u32 2475754826, %v1701
          %v1708 = vshrl.u32 2131351028, %v1702
          %v1709 = vor.u32 %v1707, %v1708
          %v1710 = vshll.u32 2131351028, %v1701
          %v1711 = vshrl.u32 2102212464, %v1702
          %v1712 = vor.u32 %v1710, %v1711
          %v1713 = vshll.u32 2102212464, %v1701
          %v1714 = vshrl.u32 920167782, %v1702
          %v1715 = vor.u32 %v1713, %v1714
          %v1716 = vshll.u32 920167782, %v1701
          %v1717 = vshrl.u32 1326507024, %v1702
          %v1718 = vor.u32 %v1716, %v1717
          %vm1719 = vcmp.lt.s32.totalorder %v1700, 1
          %vm1720 = vcmp.lt.s32.totalorder %v1700, 2
          %vm1721 = vcmp.lt.s32.totalorder %v1700, 3
          %vm1722 = vcmp.lt.s32.totalorder %v1700, 4
          %v1723 = vsel %vm1719, %v1703, %v1706
          %v1724 = vsel %vm1722, %v1712, 2102212464
          %v1725 = vsel %vm1721, %v1709, %v1724
          %v1726 = vsel %vm1720, %v1723, %v1725
          %v1727 = vsel %vm1719, %v1706, %v1709
          %v1728 = vsel %vm1722, %v1715, 920167782
          %v1729 = vsel %vm1721, %v1712, %v1728
          %v1730 = vsel %vm1720, %v1727, %v1729
          %v1731 = vsel %vm1719, %v1709, %v1712
          %v1732 = vsel %vm1722, %v1718, 1326507024
          %v1733 = vsel %vm1721, %v1715, %v1732
          %v1734 = vsel %vm1720, %v1731, %v1733
          %v1735 = vshll.u32 %v1695, 8
          %v1736 = vand.u32 %v1735, 65535
          %v1737 = vshrl.u32 %v1735, 16
          %v1738 = vand.u32 %v1734, 65535
          %v1739 = vshrl.u32 %v1734, 16
          %v1740 = vmul.u32 %v1736, %v1738
          %v1741 = vmul.u32 %v1736, %v1739
          %v1742 = vmul.u32 %v1737, %v1738
          %v1743 = vmul.u32 %v1737, %v1739
          %v1744 = vshll.u32 %v1741, 16
          %v1745 = vshrl.u32 %v1741, 16
          %v1746 = vshll.u32 %v1742, 16
          %v1747 = vshrl.u32 %v1742, 16
          %vm1748 = vc.u32 %v1740, %v1744
          %v1749 = vsel %vm1748, 1, 0
          %v1750 = vadd.s32 %v1740, %v1744
          %v1751 = vadd.s32 %v1743, %v1749
          %vm1752 = vc.u32 %v1750, %v1746
          %v1753 = vsel %vm1752, 1, 0
          %v1754 = vadd.s32 %v1750, %v1746
          %v1755 = vadd.s32 %v1751, %v1753
          %v1756 = vadd.s32 %v1755, %v1745
          %v1757 = vadd.s32 %v1756, %v1747
          %v1758 = vand.u32 %v1735, 65535
          %v1759 = vshrl.u32 %v1735, 16
          %v1760 = vand.u32 %v1730, 65535
          %v1761 = vshrl.u32 %v1730, 16
          %v1762 = vmul.u32 %v1758, %v1760
          %v1763 = vmul.u32 %v1758, %v1761
          %v1764 = vmul.u32 %v1759, %v1760
          %v1765 = vmul.u32 %v1759, %v1761
          %v1766 = vshll.u32 %v1763, 16
          %v1767 = vshrl.u32 %v1763, 16
          %v1768 = vshll.u32 %v1764, 16
          %v1769 = vshrl.u32 %v1764, 16
          %vm1770 = vc.u32 %v1762, %v1766
          %v1771 = vsel %vm1770, 1, 0
          %v1772 = vadd.s32 %v1762, %v1766
          %v1773 = vadd.s32 %v1765, %v1771
          %vm1774 = vc.u32 %v1772, %v1768
          %v1775 = vsel %vm1774, 1, 0
          %v1776 = vadd.s32 %v1772, %v1768
          %v1777 = vadd.s32 %v1773, %v1775
          %v1778 = vadd.s32 %v1777, %v1767
          %v1779 = vadd.s32 %v1778, %v1769
          %v1780 = vmul.u32 %v1735, %v1726
          %v1781 = vadd.s32 %v1757, %v1776
          %vm1782 = vc.u32 %v1757, %v1776
          %v1783 = vadd.s32 %v1779, 1
          %v1784 = vsel %vm1782, %v1783, %v1779
          %v1785 = vadd.s32 %v1780, %v1784
          %v1786 = vadd.s32 %v1785, 536870912
          %v1787 = vshrl.u32 %v1786, 30
          %v1788 = vshll.u32 %v1787, 30
          %v1789 = vsub.s32 %v1785, %v1788
          %vm1790 = vcmp.lt.s32.totalorder %v1789, 0
          %v1791 = vsub.s32 0, %v1789
          %v1792 = vsel %vm1790, %v1791, %v1789
          %v1793 = vclz %v1792
          %v1794 = vsub.s32 %v1793, 2
          %vm1795 = vcmp.gt.s32.totalorder 0, %v1794
          %v1796 = vsel %vm1795, 0, %v1794
          %v1797 = vsub.s32 32, %v1796
          %v1798 = vshll.u32 %v1789, %v1796
          %v1799 = vshrl.u32 %v1781, %v1797
          %v1800 = vor.u32 %v1798, %v1799
          %v1801 = vsub.s32 4294967266, %v1796
          %v1802 = vadd.s32 %v1801, 127
          %v1803 = vshll.u32 %v1802, 23
          %v1804 = vor.u32 4788187, %v1803
          %v1805 = vand.u32 2147483647, %v1804
          %v1807 = vcvt.s32.f32 %v1800
          %v1808 = vmul.f32 %v1807, %v1805
          %v1809 = vxor.u32 %v1808, 2147483648
          %v1810 = vsel %vm1689, %v1809, %v1808
          %v1811 = vsub.s32 4, %v1787
          %v1812 = vsel %vm1689, %v1811, %v1787
          %v1813 = vsel %vm1688, %v407, %v1810
          %v1814 = vsel %vm1688, 0, %v1812
          %v1815 = vmul.f32 %v1813, %v1813
          %v1816 = vmul.f32 %v1815, -0.001358992
          %v1817 = vadd.f32 %v1816, 0.041655596
          %v1818 = vmul.f32 %v1815, %v1817
          %v1819 = vadd.f32 %v1818, -0.4999988
          %v1820 = vmul.f32 %v1815, %v1819
          %v1821 = vadd.f32 1.0, %v1820
          %v1822 = vmul.f32 %v1813, %v1813
          %v1823 = vmul.f32 %v1822, -0.00019511016
          %v1824 = vadd.f32 %v1823, 0.008332121
          %v1825 = vmul.f32 %v1822, %v1824
          %v1826 = vadd.f32 %v1825, -0.16666654
          %v1827 = vmul.f32 %v1822, %v1826
          %v1828 = vadd.f32 %v1827, 1.0
          %v1829 = vmul.f32 %v1828, %v1813
          %vm1830 = vweird.f32 %v407
          %v1831 = vadd.s32 %v1814, 3
          %v1832 = vand.u32 %v1831, 3
          %vm1833 = vcmp.lt.s32.totalorder %v1832, 2
          %vm1834 = vcmp.eq.s32.totalorder %v1832, 0
          %v1835 = vxor.u32 %v1829, 2147483648
          %v1836 = vsel %vm1834, %v1821, %v1835
          %vm1837 = vcmp.eq.s32.totalorder %v1832, 2
          %v1838 = vxor.u32 %v1821, 2147483648
          %v1839 = vsel %vm1837, %v1838, %v1829
          %v1840 = vsel %vm1833, %v1836, %v1839
          %v1841 = vsel %vm1830, nan, %v1840
          %v1842 = vand.u32 2147483647, %v410
          %vm1843 = vcmp.le.f32.partialorder %v1842, 0.7853982
          %vm1844 = vcmp.lt.s32.totalorder %v410, 0
          %v1845 = vand.u32 %v410, 2139095040
          %v1846 = vshrl.u32 %v1845, 23
          %v1847 = vsub.s32 %v1846, 127
          %v1848 = vand.u32 2147483647, %v410
          %v1849 = vand.u32 %v1848, 8388607
          %v1850 = vor.u32 %v1849, 8388608
          %v1851 = vsub.s32 0, %v1850
          %v1852 = vadd.s32 %v1847, 1
          %vm1853 = vcmp.gt.s32.totalorder %v1852, 0
          %v1854 = vsel %vm1853, %v1852, 0
          %v1855 = vshrl.u32 %v1854, 5
          %v1856 = vand.u32 %v1854, 31
          %v1857 = vsub.s32 32, %v1856
          %v1858 = vshrl.u32 683565275, %v1857
          %v1859 = vshll.u32 683565275, %v1856
          %v1860 = vshrl.u32 2475754826, %v1857
          %v1861 = vor.u32 %v1859, %v1860
          %v1862 = vshll.u32 2475754826, %v1856
          %v1863 = vshrl.u32 2131351028, %v1857
          %v1864 = vor.u32 %v1862, %v1863
          %v1865 = vshll.u32 2131351028, %v1856
          %v1866 = vshrl.u32 2102212464, %v1857
          %v1867 = vor.u32 %v1865, %v1866
          %v1868 = vshll.u32 2102212464, %v1856
          %v1869 = vshrl.u32 920167782, %v1857
          %v1870 = vor.u32 %v1868, %v1869
          %v1871 = vshll.u32 920167782, %v1856
          %v1872 = vshrl.u32 1326507024, %v1857
          %v1873 = vor.u32 %v1871, %v1872
          %vm1874 = vcmp.lt.s32.totalorder %v1855, 1
          %vm1875 = vcmp.lt.s32.totalorder %v1855, 2
          %vm1876 = vcmp.lt.s32.totalorder %v1855, 3
          %vm1877 = vcmp.lt.s32.totalorder %v1855, 4
          %v1878 = vsel %vm1874, %v1858, %v1861
          %v1879 = vsel %vm1877, %v1867, 2102212464
          %v1880 = vsel %vm1876, %v1864, %v1879
          %v1881 = vsel %vm1875, %v1878, %v1880
          %v1882 = vsel %vm1874, %v1861, %v1864
          %v1883 = vsel %vm1877, %v1870, 920167782
          %v1884 = vsel %vm1876, %v1867, %v1883
          %v1885 = vsel %vm1875, %v1882, %v1884
          %v1886 = vsel %vm1874, %v1864, %v1867
          %v1887 = vsel %vm1877, %v1873, 1326507024
          %v1888 = vsel %vm1876, %v1870, %v1887
          %v1889 = vsel %vm1875, %v1886, %v1888
          %v1890 = vshll.u32 %v1850, 8
          %v1891 = vand.u32 %v1890, 65535
          %v1892 = vshrl.u32 %v1890, 16
          %v1893 = vand.u32 %v1889, 65535
          %v1894 = vshrl.u32 %v1889, 16
          %v1895 = vmul.u32 %v1891, %v1893
          %v1896 = vmul.u32 %v1891, %v1894
          %v1897 = vmul.u32 %v1892, %v1893
          %v1898 = vmul.u32 %v1892, %v1894
          %v1899 = vshll.u32 %v1896, 16
          %v1900 = vshrl.u32 %v1896, 16
          %v1901 = vshll.u32 %v1897, 16
          %v1902 = vshrl.u32 %v1897, 16
          %vm1903 = vc.u32 %v1895, %v1899
          %v1904 = vsel %vm1903, 1, 0
          %v1905 = vadd.s32 %v1895, %v1899
          %v1906 = vadd.s32 %v1898, %v1904
          %vm1907 = vc.u32 %v1905, %v1901
          %v1908 = vsel %vm1907, 1, 0
          %v1909 = vadd.s32 %v1905, %v1901
          %v1910 = vadd.s32 %v1906, %v1908
          %v1911 = vadd.s32 %v1910, %v1900
          %v1912 = vadd.s32 %v1911, %v1902
          %v1913 = vand.u32 %v1890, 65535
          %v1914 = vshrl.u32 %v1890, 16
          %v1915 = vand.u32 %v1885, 65535
          %v1916 = vshrl.u32 %v1885, 16
          %v1917 = vmul.u32 %v1913, %v1915
          %v1918 = vmul.u32 %v1913, %v1916
          %v1919 = vmul.u32 %v1914, %v1915
          %v1920 = vmul.u32 %v1914, %v1916
          %v1921 = vshll.u32 %v1918, 16
          %v1922 = vshrl.u32 %v1918, 16
          %v1923 = vshll.u32 %v1919, 16
          %v1924 = vshrl.u32 %v1919, 16
          %vm1925 = vc.u32 %v1917, %v1921
          %v1926 = vsel %vm1925, 1, 0
          %v1927 = vadd.s32 %v1917, %v1921
          %v1928 = vadd.s32 %v1920, %v1926
          %vm1929 = vc.u32 %v1927, %v1923
          %v1930 = vsel %vm1929, 1, 0
          %v1931 = vadd.s32 %v1927, %v1923
          %v1932 = vadd.s32 %v1928, %v1930
          %v1933 = vadd.s32 %v1932, %v1922
          %v1934 = vadd.s32 %v1933, %v1924
          %v1935 = vmul.u32 %v1890, %v1881
          %v1936 = vadd.s32 %v1912, %v1931
          %vm1937 = vc.u32 %v1912, %v1931
          %v1938 = vadd.s32 %v1934, 1
          %v1939 = vsel %vm1937, %v1938, %v1934
          %v1940 = vadd.s32 %v1935, %v1939
          %v1941 = vadd.s32 %v1940, 536870912
          %v1942 = vshrl.u32 %v1941, 30
          %v1943 = vshll.u32 %v1942, 30
          %v1944 = vsub.s32 %v1940, %v1943
          %vm1945 = vcmp.lt.s32.totalorder %v1944, 0
          %v1946 = vsub.s32 0, %v1944
          %v1947 = vsel %vm1945, %v1946, %v1944
          %v1948 = vclz %v1947
          %v1949 = vsub.s32 %v1948, 2
          %vm1950 = vcmp.gt.s32.totalorder 0, %v1949
          %v1951 = vsel %vm1950, 0, %v1949
          %v1952 = vsub.s32 32, %v1951
          %v1953 = vshll.u32 %v1944, %v1951
          %v1954 = vshrl.u32 %v1936, %v1952
          %v1955 = vor.u32 %v1953, %v1954
          %v1956 = vsub.s32 4294967266, %v1951
          %v1957 = vadd.s32 %v1956, 127
          %v1958 = vshll.u32 %v1957, 23
          %v1959 = vor.u32 4788187, %v1958
          %v1960 = vand.u32 2147483647, %v1959
          %v1962 = vcvt.s32.f32 %v1955
          %v1963 = vmul.f32 %v1962, %v1960
          %v1964 = vxor.u32 %v1963, 2147483648
          %v1965 = vsel %vm1844, %v1964, %v1963
          %v1966 = vsub.s32 4, %v1942
          %v1967 = vsel %vm1844, %v1966, %v1942
          %v1968 = vsel %vm1843, %v410, %v1965
          %v1969 = vsel %vm1843, 0, %v1967
          %v1970 = vmul.f32 %v1968, %v1968
          %v1971 = vmul.f32 %v1970, -0.001358992
          %v1972 = vadd.f32 %v1971, 0.041655596
          %v1973 = vmul.f32 %v1970, %v1972
          %v1974 = vadd.f32 %v1973, -0.4999988
          %v1975 = vmul.f32 %v1970, %v1974
          %v1976 = vadd.f32 1.0, %v1975
          %v1977 = vmul.f32 %v1968, %v1968
          %v1978 = vmul.f32 %v1977, -0.00019511016
          %v1979 = vadd.f32 %v1978, 0.008332121
          %v1980 = vmul.f32 %v1977, %v1979
          %v1981 = vadd.f32 %v1980, -0.16666654
          %v1982 = vmul.f32 %v1977, %v1981
          %v1983 = vadd.f32 %v1982, 1.0
          %v1984 = vmul.f32 %v1983, %v1968
          %vm1985 = vweird.f32 %v410
          %v1986 = vadd.s32 %v1969, 3
          %v1987 = vand.u32 %v1986, 3
          %vm1988 = vcmp.lt.s32.totalorder %v1987, 2
          %vm1989 = vcmp.eq.s32.totalorder %v1987, 0
          %v1990 = vxor.u32 %v1984, 2147483648
          %v1991 = vsel %vm1989, %v1976, %v1990
          %vm1992 = vcmp.eq.s32.totalorder %v1987, 2
          %v1993 = vxor.u32 %v1976, 2147483648
          %v1994 = vsel %vm1992, %v1993, %v1984
          %v1995 = vsel %vm1988, %v1991, %v1994
          %v1996 = vsel %vm1985, nan, %v1995
          %v1997 = vand.u32 2147483647, %v413
          %vm1998 = vcmp.le.f32.partialorder %v1997, 0.7853982
          %vm1999 = vcmp.lt.s32.totalorder %v413, 0
          %v2000 = vand.u32 %v413, 2139095040
          %v2001 = vshrl.u32 %v2000, 23
          %v2002 = vsub.s32 %v2001, 127
          %v2003 = vand.u32 2147483647, %v413
          %v2004 = vand.u32 %v2003, 8388607
          %v2005 = vor.u32 %v2004, 8388608
          %v2006 = vsub.s32 0, %v2005
          %v2007 = vadd.s32 %v2002, 1
          %vm2008 = vcmp.gt.s32.totalorder %v2007, 0
          %v2009 = vsel %vm2008, %v2007, 0
          %v2010 = vshrl.u32 %v2009, 5
          %v2011 = vand.u32 %v2009, 31
          %v2012 = vsub.s32 32, %v2011
          %v2013 = vshrl.u32 683565275, %v2012
          %v2014 = vshll.u32 683565275, %v2011
          %v2015 = vshrl.u32 2475754826, %v2012
          %v2016 = vor.u32 %v2014, %v2015
          %v2017 = vshll.u32 2475754826, %v2011
          %v2018 = vshrl.u32 2131351028, %v2012
          %v2019 = vor.u32 %v2017, %v2018
          %v2020 = vshll.u32 2131351028, %v2011
          %v2021 = vshrl.u32 2102212464, %v2012
          %v2022 = vor.u32 %v2020, %v2021
          %v2023 = vshll.u32 2102212464, %v2011
          %v2024 = vshrl.u32 920167782, %v2012
          %v2025 = vor.u32 %v2023, %v2024
          %v2026 = vshll.u32 920167782, %v2011
          %v2027 = vshrl.u32 1326507024, %v2012
          %v2028 = vor.u32 %v2026, %v2027
          %vm2029 = vcmp.lt.s32.totalorder %v2010, 1
          %vm2030 = vcmp.lt.s32.totalorder %v2010, 2
          %vm2031 = vcmp.lt.s32.totalorder %v2010, 3
          %vm2032 = vcmp.lt.s32.totalorder %v2010, 4
          %v2033 = vsel %vm2029, %v2013, %v2016
          %v2034 = vsel %vm2032, %v2022, 2102212464
          %v2035 = vsel %vm2031, %v2019, %v2034
          %v2036 = vsel %vm2030, %v2033, %v2035
          %v2037 = vsel %vm2029, %v2016, %v2019
          %v2038 = vsel %vm2032, %v2025, 920167782
          %v2039 = vsel %vm2031, %v2022, %v2038
          %v2040 = vsel %vm2030, %v2037, %v2039
          %v2041 = vsel %vm2029, %v2019, %v2022
          %v2042 = vsel %vm2032, %v2028, 1326507024
          %v2043 = vsel %vm2031, %v2025, %v2042
          %v2044 = vsel %vm2030, %v2041, %v2043
          %v2045 = vshll.u32 %v2005, 8
          %v2046 = vand.u32 %v2045, 65535
          %v2047 = vshrl.u32 %v2045, 16
          %v2048 = vand.u32 %v2044, 65535
          %v2049 = vshrl.u32 %v2044, 16
          %v2050 = vmul.u32 %v2046, %v2048
          %v2051 = vmul.u32 %v2046, %v2049
          %v2052 = vmul.u32 %v2047, %v2048
          %v2053 = vmul.u32 %v2047, %v2049
          %v2054 = vshll.u32 %v2051, 16
          %v2055 = vshrl.u32 %v2051, 16
          %v2056 = vshll.u32 %v2052, 16
          %v2057 = vshrl.u32 %v2052, 16
          %vm2058 = vc.u32 %v2050, %v2054
          %v2059 = vsel %vm2058, 1, 0
          %v2060 = vadd.s32 %v2050, %v2054
          %v2061 = vadd.s32 %v2053, %v2059
          %vm2062 = vc.u32 %v2060, %v2056
          %v2063 = vsel %vm2062, 1, 0
          %v2064 = vadd.s32 %v2060, %v2056
          %v2065 = vadd.s32 %v2061, %v2063
          %v2066 = vadd.s32 %v2065, %v2055
          %v2067 = vadd.s32 %v2066, %v2057
          %v2068 = vand.u32 %v2045, 65535
          %v2069 = vshrl.u32 %v2045, 16
          %v2070 = vand.u32 %v2040, 65535
          %v2071 = vshrl.u32 %v2040, 16
          %v2072 = vmul.u32 %v2068, %v2070
          %v2073 = vmul.u32 %v2068, %v2071
          %v2074 = vmul.u32 %v2069, %v2070
          %v2075 = vmul.u32 %v2069, %v2071
          %v2076 = vshll.u32 %v2073, 16
          %v2077 = vshrl.u32 %v2073, 16
          %v2078 = vshll.u32 %v2074, 16
          %v2079 = vshrl.u32 %v2074, 16
          %vm2080 = vc.u32 %v2072, %v2076
          %v2081 = vsel %vm2080, 1, 0
          %v2082 = vadd.s32 %v2072, %v2076
          %v2083 = vadd.s32 %v2075, %v2081
          %vm2084 = vc.u32 %v2082, %v2078
          %v2085 = vsel %vm2084, 1, 0
          %v2086 = vadd.s32 %v2082, %v2078
          %v2087 = vadd.s32 %v2083, %v2085
          %v2088 = vadd.s32 %v2087, %v2077
          %v2089 = vadd.s32 %v2088, %v2079
          %v2090 = vmul.u32 %v2045, %v2036
          %v2091 = vadd.s32 %v2067, %v2086
          %vm2092 = vc.u32 %v2067, %v2086
          %v2093 = vadd.s32 %v2089, 1
          %v2094 = vsel %vm2092, %v2093, %v2089
          %v2095 = vadd.s32 %v2090, %v2094
          %v2096 = vadd.s32 %v2095, 536870912
          %v2097 = vshrl.u32 %v2096, 30
          %v2098 = vshll.u32 %v2097, 30
          %v2099 = vsub.s32 %v2095, %v2098
          %vm2100 = vcmp.lt.s32.totalorder %v2099, 0
          %v2101 = vsub.s32 0, %v2099
          %v2102 = vsel %vm2100, %v2101, %v2099
          %v2103 = vclz %v2102
          %v2104 = vsub.s32 %v2103, 2
          %vm2105 = vcmp.gt.s32.totalorder 0, %v2104
          %v2106 = vsel %vm2105, 0, %v2104
          %v2107 = vsub.s32 32, %v2106
          %v2108 = vshll.u32 %v2099, %v2106
          %v2109 = vshrl.u32 %v2091, %v2107
          %v2110 = vor.u32 %v2108, %v2109
          %v2111 = vsub.s32 4294967266, %v2106
          %v2112 = vadd.s32 %v2111, 127
          %v2113 = vshll.u32 %v2112, 23
          %v2114 = vor.u32 4788187, %v2113
          %v2115 = vand.u32 2147483647, %v2114
          %v2117 = vcvt.s32.f32 %v2110
          %v2118 = vmul.f32 %v2117, %v2115
          %v2119 = vxor.u32 %v2118, 2147483648
          %v2120 = vsel %vm1999, %v2119, %v2118
          %v2121 = vsub.s32 4, %v2097
          %v2122 = vsel %vm1999, %v2121, %v2097
          %v2123 = vsel %vm1998, %v413, %v2120
          %v2124 = vsel %vm1998, 0, %v2122
          %v2125 = vmul.f32 %v2123, %v2123
          %v2126 = vmul.f32 %v2125, -0.001358992
          %v2127 = vadd.f32 %v2126, 0.041655596
          %v2128 = vmul.f32 %v2125, %v2127
          %v2129 = vadd.f32 %v2128, -0.4999988
          %v2130 = vmul.f32 %v2125, %v2129
          %v2131 = vadd.f32 1.0, %v2130
          %v2132 = vmul.f32 %v2123, %v2123
          %v2133 = vmul.f32 %v2132, -0.00019511016
          %v2134 = vadd.f32 %v2133, 0.008332121
          %v2135 = vmul.f32 %v2132, %v2134
          %v2136 = vadd.f32 %v2135, -0.16666654
          %v2137 = vmul.f32 %v2132, %v2136
          %v2138 = vadd.f32 %v2137, 1.0
          %v2139 = vmul.f32 %v2138, %v2123
          %vm2140 = vweird.f32 %v413
          %v2141 = vadd.s32 %v2124, 3
          %v2142 = vand.u32 %v2141, 3
          %vm2143 = vcmp.lt.s32.totalorder %v2142, 2
          %vm2144 = vcmp.eq.s32.totalorder %v2142, 0
          %v2145 = vxor.u32 %v2139, 2147483648
          %v2146 = vsel %vm2144, %v2131, %v2145
          %vm2147 = vcmp.eq.s32.totalorder %v2142, 2
          %v2148 = vxor.u32 %v2131, 2147483648
          %v2149 = vsel %vm2147, %v2148, %v2139
          %v2150 = vsel %vm2143, %v2146, %v2149
          %v2151 = vsel %vm2140, nan, %v2150
          %v2152 = vand.u32 2147483647, %v416
          %vm2153 = vcmp.le.f32.partialorder %v2152, 0.7853982
          %vm2154 = vcmp.lt.s32.totalorder %v416, 0
          %v2155 = vand.u32 %v416, 2139095040
          %v2156 = vshrl.u32 %v2155, 23
          %v2157 = vsub.s32 %v2156, 127
          %v2158 = vand.u32 2147483647, %v416
          %v2159 = vand.u32 %v2158, 8388607
          %v2160 = vor.u32 %v2159, 8388608
          %v2161 = vsub.s32 0, %v2160
          %v2162 = vadd.s32 %v2157, 1
          %vm2163 = vcmp.gt.s32.totalorder %v2162, 0
          %v2164 = vsel %vm2163, %v2162, 0
          %v2165 = vshrl.u32 %v2164, 5
          %v2166 = vand.u32 %v2164, 31
          %v2167 = vsub.s32 32, %v2166
          %v2168 = vshrl.u32 683565275, %v2167
          %v2169 = vshll.u32 683565275, %v2166
          %v2170 = vshrl.u32 2475754826, %v2167
          %v2171 = vor.u32 %v2169, %v2170
          %v2172 = vshll.u32 2475754826, %v2166
          %v2173 = vshrl.u32 2131351028, %v2167
          %v2174 = vor.u32 %v2172, %v2173
          %v2175 = vshll.u32 2131351028, %v2166
          %v2176 = vshrl.u32 2102212464, %v2167
          %v2177 = vor.u32 %v2175, %v2176
          %v2178 = vshll.u32 2102212464, %v2166
          %v2179 = vshrl.u32 920167782, %v2167
          %v2180 = vor.u32 %v2178, %v2179
          %v2181 = vshll.u32 920167782, %v2166
          %v2182 = vshrl.u32 1326507024, %v2167
          %v2183 = vor.u32 %v2181, %v2182
          %vm2184 = vcmp.lt.s32.totalorder %v2165, 1
          %vm2185 = vcmp.lt.s32.totalorder %v2165, 2
          %vm2186 = vcmp.lt.s32.totalorder %v2165, 3
          %vm2187 = vcmp.lt.s32.totalorder %v2165, 4
          %v2188 = vsel %vm2184, %v2168, %v2171
          %v2189 = vsel %vm2187, %v2177, 2102212464
          %v2190 = vsel %vm2186, %v2174, %v2189
          %v2191 = vsel %vm2185, %v2188, %v2190
          %v2192 = vsel %vm2184, %v2171, %v2174
          %v2193 = vsel %vm2187, %v2180, 920167782
          %v2194 = vsel %vm2186, %v2177, %v2193
          %v2195 = vsel %vm2185, %v2192, %v2194
          %v2196 = vsel %vm2184, %v2174, %v2177
          %v2197 = vsel %vm2187, %v2183, 1326507024
          %v2198 = vsel %vm2186, %v2180, %v2197
          %v2199 = vsel %vm2185, %v2196, %v2198
          %v2200 = vshll.u32 %v2160, 8
          %v2201 = vand.u32 %v2200, 65535
          %v2202 = vshrl.u32 %v2200, 16
          %v2203 = vand.u32 %v2199, 65535
          %v2204 = vshrl.u32 %v2199, 16
          %v2205 = vmul.u32 %v2201, %v2203
          %v2206 = vmul.u32 %v2201, %v2204
          %v2207 = vmul.u32 %v2202, %v2203
          %v2208 = vmul.u32 %v2202, %v2204
          %v2209 = vshll.u32 %v2206, 16
          %v2210 = vshrl.u32 %v2206, 16
          %v2211 = vshll.u32 %v2207, 16
          %v2212 = vshrl.u32 %v2207, 16
          %vm2213 = vc.u32 %v2205, %v2209
          %v2214 = vsel %vm2213, 1, 0
          %v2215 = vadd.s32 %v2205, %v2209
          %v2216 = vadd.s32 %v2208, %v2214
          %vm2217 = vc.u32 %v2215, %v2211
          %v2218 = vsel %vm2217, 1, 0
          %v2219 = vadd.s32 %v2215, %v2211
          %v2220 = vadd.s32 %v2216, %v2218
          %v2221 = vadd.s32 %v2220, %v2210
          %v2222 = vadd.s32 %v2221, %v2212
          %v2223 = vand.u32 %v2200, 65535
          %v2224 = vshrl.u32 %v2200, 16
          %v2225 = vand.u32 %v2195, 65535
          %v2226 = vshrl.u32 %v2195, 16
          %v2227 = vmul.u32 %v2223, %v2225
          %v2228 = vmul.u32 %v2223, %v2226
          %v2229 = vmul.u32 %v2224, %v2225
          %v2230 = vmul.u32 %v2224, %v2226
          %v2231 = vshll.u32 %v2228, 16
          %v2232 = vshrl.u32 %v2228, 16
          %v2233 = vshll.u32 %v2229, 16
          %v2234 = vshrl.u32 %v2229, 16
          %vm2235 = vc.u32 %v2227, %v2231
          %v2236 = vsel %vm2235, 1, 0
          %v2237 = vadd.s32 %v2227, %v2231
          %v2238 = vadd.s32 %v2230, %v2236
          %vm2239 = vc.u32 %v2237, %v2233
          %v2240 = vsel %vm2239, 1, 0
          %v2241 = vadd.s32 %v2237, %v2233
          %v2242 = vadd.s32 %v2238, %v2240
          %v2243 = vadd.s32 %v2242, %v2232
          %v2244 = vadd.s32 %v2243, %v2234
          %v2245 = vmul.u32 %v2200, %v2191
          %v2246 = vadd.s32 %v2222, %v2241
          %vm2247 = vc.u32 %v2222, %v2241
          %v2248 = vadd.s32 %v2244, 1
          %v2249 = vsel %vm2247, %v2248, %v2244
          %v2250 = vadd.s32 %v2245, %v2249
          %v2251 = vadd.s32 %v2250, 536870912
          %v2252 = vshrl.u32 %v2251, 30
          %v2253 = vshll.u32 %v2252, 30
          %v2254 = vsub.s32 %v2250, %v2253
          %vm2255 = vcmp.lt.s32.totalorder %v2254, 0
          %v2256 = vsub.s32 0, %v2254
          %v2257 = vsel %vm2255, %v2256, %v2254
          %v2258 = vclz %v2257
          %v2259 = vsub.s32 %v2258, 2
          %vm2260 = vcmp.gt.s32.totalorder 0, %v2259
          %v2261 = vsel %vm2260, 0, %v2259
          %v2262 = vsub.s32 32, %v2261
          %v2263 = vshll.u32 %v2254, %v2261
          %v2264 = vshrl.u32 %v2246, %v2262
          %v2265 = vor.u32 %v2263, %v2264
          %v2266 = vsub.s32 4294967266, %v2261
          %v2267 = vadd.s32 %v2266, 127
          %v2268 = vshll.u32 %v2267, 23
          %v2269 = vor.u32 4788187, %v2268
          %v2270 = vand.u32 2147483647, %v2269
          %v2272 = vcvt.s32.f32 %v2265
          %v2273 = vmul.f32 %v2272, %v2270
          %v2274 = vxor.u32 %v2273, 2147483648
          %v2275 = vsel %vm2154, %v2274, %v2273
          %v2276 = vsub.s32 4, %v2252
          %v2277 = vsel %vm2154, %v2276, %v2252
          %v2278 = vsel %vm2153, %v416, %v2275
          %v2279 = vsel %vm2153, 0, %v2277
          %v2280 = vmul.f32 %v2278, %v2278
          %v2281 = vmul.f32 %v2280, -0.001358992
          %v2282 = vadd.f32 %v2281, 0.041655596
          %v2283 = vmul.f32 %v2280, %v2282
          %v2284 = vadd.f32 %v2283, -0.4999988
          %v2285 = vmul.f32 %v2280, %v2284
          %v2286 = vadd.f32 1.0, %v2285
          %v2287 = vmul.f32 %v2278, %v2278
          %v2288 = vmul.f32 %v2287, -0.00019511016
          %v2289 = vadd.f32 %v2288, 0.008332121
          %v2290 = vmul.f32 %v2287, %v2289
          %v2291 = vadd.f32 %v2290, -0.16666654
          %v2292 = vmul.f32 %v2287, %v2291
          %v2293 = vadd.f32 %v2292, 1.0
          %v2294 = vmul.f32 %v2293, %v2278
          %vm2295 = vweird.f32 %v416
          %v2296 = vadd.s32 %v2279, 3
          %v2297 = vand.u32 %v2296, 3
          %vm2298 = vcmp.lt.s32.totalorder %v2297, 2
          %vm2299 = vcmp.eq.s32.totalorder %v2297, 0
          %v2300 = vxor.u32 %v2294, 2147483648
          %v2301 = vsel %vm2299, %v2286, %v2300
          %vm2302 = vcmp.eq.s32.totalorder %v2297, 2
          %v2303 = vxor.u32 %v2286, 2147483648
          %v2304 = vsel %vm2302, %v2303, %v2294
          %v2305 = vsel %vm2298, %v2301, %v2304
          %v2306 = vsel %vm2295, nan, %v2305
          %v2307 = vand.u32 2147483647, %v419
          %vm2308 = vcmp.le.f32.partialorder %v2307, 0.7853982
          %vm2309 = vcmp.lt.s32.totalorder %v419, 0
          %v2310 = vand.u32 %v419, 2139095040
          %v2311 = vshrl.u32 %v2310, 23
          %v2312 = vsub.s32 %v2311, 127
          %v2313 = vand.u32 2147483647, %v419
          %v2314 = vand.u32 %v2313, 8388607
          %v2315 = vor.u32 %v2314, 8388608
          %v2316 = vsub.s32 0, %v2315
          %v2317 = vadd.s32 %v2312, 1
          %vm2318 = vcmp.gt.s32.totalorder %v2317, 0
          %v2319 = vsel %vm2318, %v2317, 0
          %v2320 = vshrl.u32 %v2319, 5
          %v2321 = vand.u32 %v2319, 31
          %v2322 = vsub.s32 32, %v2321
          %v2323 = vshrl.u32 683565275, %v2322
          %v2324 = vshll.u32 683565275, %v2321
          %v2325 = vshrl.u32 2475754826, %v2322
          %v2326 = vor.u32 %v2324, %v2325
          %v2327 = vshll.u32 2475754826, %v2321
          %v2328 = vshrl.u32 2131351028, %v2322
          %v2329 = vor.u32 %v2327, %v2328
          %v2330 = vshll.u32 2131351028, %v2321
          %v2331 = vshrl.u32 2102212464, %v2322
          %v2332 = vor.u32 %v2330, %v2331
          %v2333 = vshll.u32 2102212464, %v2321
          %v2334 = vshrl.u32 920167782, %v2322
          %v2335 = vor.u32 %v2333, %v2334
          %v2336 = vshll.u32 920167782, %v2321
          %v2337 = vshrl.u32 1326507024, %v2322
          %v2338 = vor.u32 %v2336, %v2337
          %vm2339 = vcmp.lt.s32.totalorder %v2320, 1
          %vm2340 = vcmp.lt.s32.totalorder %v2320, 2
          %vm2341 = vcmp.lt.s32.totalorder %v2320, 3
          %vm2342 = vcmp.lt.s32.totalorder %v2320, 4
          %v2343 = vsel %vm2339, %v2323, %v2326
          %v2344 = vsel %vm2342, %v2332, 2102212464
          %v2345 = vsel %vm2341, %v2329, %v2344
          %v2346 = vsel %vm2340, %v2343, %v2345
          %v2347 = vsel %vm2339, %v2326, %v2329
          %v2348 = vsel %vm2342, %v2335, 920167782
          %v2349 = vsel %vm2341, %v2332, %v2348
          %v2350 = vsel %vm2340, %v2347, %v2349
          %v2351 = vsel %vm2339, %v2329, %v2332
          %v2352 = vsel %vm2342, %v2338, 1326507024
          %v2353 = vsel %vm2341, %v2335, %v2352
          %v2354 = vsel %vm2340, %v2351, %v2353
          %v2355 = vshll.u32 %v2315, 8
          %v2356 = vand.u32 %v2355, 65535
          %v2357 = vshrl.u32 %v2355, 16
          %v2358 = vand.u32 %v2354, 65535
          %v2359 = vshrl.u32 %v2354, 16
          %v2360 = vmul.u32 %v2356, %v2358
          %v2361 = vmul.u32 %v2356, %v2359
          %v2362 = vmul.u32 %v2357, %v2358
          %v2363 = vmul.u32 %v2357, %v2359
          %v2364 = vshll.u32 %v2361, 16
          %v2365 = vshrl.u32 %v2361, 16
          %v2366 = vshll.u32 %v2362, 16
          %v2367 = vshrl.u32 %v2362, 16
          %vm2368 = vc.u32 %v2360, %v2364
          %v2369 = vsel %vm2368, 1, 0
          %v2370 = vadd.s32 %v2360, %v2364
          %v2371 = vadd.s32 %v2363, %v2369
          %vm2372 = vc.u32 %v2370, %v2366
          %v2373 = vsel %vm2372, 1, 0
          %v2374 = vadd.s32 %v2370, %v2366
          %v2375 = vadd.s32 %v2371, %v2373
          %v2376 = vadd.s32 %v2375, %v2365
          %v2377 = vadd.s32 %v2376, %v2367
          %v2378 = vand.u32 %v2355, 65535
          %v2379 = vshrl.u32 %v2355, 16
          %v2380 = vand.u32 %v2350, 65535
          %v2381 = vshrl.u32 %v2350, 16
          %v2382 = vmul.u32 %v2378, %v2380
          %v2383 = vmul.u32 %v2378, %v2381
          %v2384 = vmul.u32 %v2379, %v2380
          %v2385 = vmul.u32 %v2379, %v2381
          %v2386 = vshll.u32 %v2383, 16
          %v2387 = vshrl.u32 %v2383, 16
          %v2388 = vshll.u32 %v2384, 16
          %v2389 = vshrl.u32 %v2384, 16
          %vm2390 = vc.u32 %v2382, %v2386
          %v2391 = vsel %vm2390, 1, 0
          %v2392 = vadd.s32 %v2382, %v2386
          %v2393 = vadd.s32 %v2385, %v2391
          %vm2394 = vc.u32 %v2392, %v2388
          %v2395 = vsel %vm2394, 1, 0
          %v2396 = vadd.s32 %v2392, %v2388
          %v2397 = vadd.s32 %v2393, %v2395
          %v2398 = vadd.s32 %v2397, %v2387
          %v2399 = vadd.s32 %v2398, %v2389
          %v2400 = vmul.u32 %v2355, %v2346
          %v2401 = vadd.s32 %v2377, %v2396
          %vm2402 = vc.u32 %v2377, %v2396
          %v2403 = vadd.s32 %v2399, 1
          %v2404 = vsel %vm2402, %v2403, %v2399
          %v2405 = vadd.s32 %v2400, %v2404
          %v2406 = vadd.s32 %v2405, 536870912
          %v2407 = vshrl.u32 %v2406, 30
          %v2408 = vshll.u32 %v2407, 30
          %v2409 = vsub.s32 %v2405, %v2408
          %vm2410 = vcmp.lt.s32.totalorder %v2409, 0
          %v2411 = vsub.s32 0, %v2409
          %v2412 = vsel %vm2410, %v2411, %v2409
          %v2413 = vclz %v2412
          %v2414 = vsub.s32 %v2413, 2
          %vm2415 = vcmp.gt.s32.totalorder 0, %v2414
          %v2416 = vsel %vm2415, 0, %v2414
          %v2417 = vsub.s32 32, %v2416
          %v2418 = vshll.u32 %v2409, %v2416
          %v2419 = vshrl.u32 %v2401, %v2417
          %v2420 = vor.u32 %v2418, %v2419
          %v2421 = vsub.s32 4294967266, %v2416
          %v2422 = vadd.s32 %v2421, 127
          %v2423 = vshll.u32 %v2422, 23
          %v2424 = vor.u32 4788187, %v2423
          %v2425 = vand.u32 2147483647, %v2424
          %v2427 = vcvt.s32.f32 %v2420
          %v2428 = vmul.f32 %v2427, %v2425
          %v2429 = vxor.u32 %v2428, 2147483648
          %v2430 = vsel %vm2309, %v2429, %v2428
          %v2431 = vsub.s32 4, %v2407
          %v2432 = vsel %vm2309, %v2431, %v2407
          %v2433 = vsel %vm2308, %v419, %v2430
          %v2434 = vsel %vm2308, 0, %v2432
          %v2435 = vmul.f32 %v2433, %v2433
          %v2436 = vmul.f32 %v2435, -0.001358992
          %v2437 = vadd.f32 %v2436, 0.041655596
          %v2438 = vmul.f32 %v2435, %v2437
          %v2439 = vadd.f32 %v2438, -0.4999988
          %v2440 = vmul.f32 %v2435, %v2439
          %v2441 = vadd.f32 1.0, %v2440
          %v2442 = vmul.f32 %v2433, %v2433
          %v2443 = vmul.f32 %v2442, -0.00019511016
          %v2444 = vadd.f32 %v2443, 0.008332121
          %v2445 = vmul.f32 %v2442, %v2444
          %v2446 = vadd.f32 %v2445, -0.16666654
          %v2447 = vmul.f32 %v2442, %v2446
          %v2448 = vadd.f32 %v2447, 1.0
          %v2449 = vmul.f32 %v2448, %v2433
          %vm2450 = vweird.f32 %v419
          %v2451 = vadd.s32 %v2434, 3
          %v2452 = vand.u32 %v2451, 3
          %vm2453 = vcmp.lt.s32.totalorder %v2452, 2
          %vm2454 = vcmp.eq.s32.totalorder %v2452, 0
          %v2455 = vxor.u32 %v2449, 2147483648
          %v2456 = vsel %vm2454, %v2441, %v2455
          %vm2457 = vcmp.eq.s32.totalorder %v2452, 2
          %v2458 = vxor.u32 %v2441, 2147483648
          %v2459 = vsel %vm2457, %v2458, %v2449
          %v2460 = vsel %vm2453, %v2456, %v2459
          %v2461 = vsel %vm2450, nan, %v2460
          %v2462 = vand.u32 2147483647, %v422
          %vm2463 = vcmp.le.f32.partialorder %v2462, 0.7853982
          %vm2464 = vcmp.lt.s32.totalorder %v422, 0
          %v2465 = vand.u32 %v422, 2139095040
          %v2466 = vshrl.u32 %v2465, 23
          %v2467 = vsub.s32 %v2466, 127
          %v2468 = vand.u32 2147483647, %v422
          %v2469 = vand.u32 %v2468, 8388607
          %v2470 = vor.u32 %v2469, 8388608
          %v2471 = vsub.s32 0, %v2470
          %v2472 = vadd.s32 %v2467, 1
          %vm2473 = vcmp.gt.s32.totalorder %v2472, 0
          %v2474 = vsel %vm2473, %v2472, 0
          %v2475 = vshrl.u32 %v2474, 5
          %v2476 = vand.u32 %v2474, 31
          %v2477 = vsub.s32 32, %v2476
          %v2478 = vshrl.u32 683565275, %v2477
          %v2479 = vshll.u32 683565275, %v2476
          %v2480 = vshrl.u32 2475754826, %v2477
          %v2481 = vor.u32 %v2479, %v2480
          %v2482 = vshll.u32 2475754826, %v2476
          %v2483 = vshrl.u32 2131351028, %v2477
          %v2484 = vor.u32 %v2482, %v2483
          %v2485 = vshll.u32 2131351028, %v2476
          %v2486 = vshrl.u32 2102212464, %v2477
          %v2487 = vor.u32 %v2485, %v2486
          %v2488 = vshll.u32 2102212464, %v2476
          %v2489 = vshrl.u32 920167782, %v2477
          %v2490 = vor.u32 %v2488, %v2489
          %v2491 = vshll.u32 920167782, %v2476
          %v2492 = vshrl.u32 1326507024, %v2477
          %v2493 = vor.u32 %v2491, %v2492
          %vm2494 = vcmp.lt.s32.totalorder %v2475, 1
          %vm2495 = vcmp.lt.s32.totalorder %v2475, 2
          %vm2496 = vcmp.lt.s32.totalorder %v2475, 3
          %vm2497 = vcmp.lt.s32.totalorder %v2475, 4
          %v2498 = vsel %vm2494, %v2478, %v2481
          %v2499 = vsel %vm2497, %v2487, 2102212464
          %v2500 = vsel %vm2496, %v2484, %v2499
          %v2501 = vsel %vm2495, %v2498, %v2500
          %v2502 = vsel %vm2494, %v2481, %v2484
          %v2503 = vsel %vm2497, %v2490, 920167782
          %v2504 = vsel %vm2496, %v2487, %v2503
          %v2505 = vsel %vm2495, %v2502, %v2504
          %v2506 = vsel %vm2494, %v2484, %v2487
          %v2507 = vsel %vm2497, %v2493, 1326507024
          %v2508 = vsel %vm2496, %v2490, %v2507
          %v2509 = vsel %vm2495, %v2506, %v2508
          %v2510 = vshll.u32 %v2470, 8
          %v2511 = vand.u32 %v2510, 65535
          %v2512 = vshrl.u32 %v2510, 16
          %v2513 = vand.u32 %v2509, 65535
          %v2514 = vshrl.u32 %v2509, 16
          %v2515 = vmul.u32 %v2511, %v2513
          %v2516 = vmul.u32 %v2511, %v2514
          %v2517 = vmul.u32 %v2512, %v2513
          %v2518 = vmul.u32 %v2512, %v2514
          %v2519 = vshll.u32 %v2516, 16
          %v2520 = vshrl.u32 %v2516, 16
          %v2521 = vshll.u32 %v2517, 16
          %v2522 = vshrl.u32 %v2517, 16
          %vm2523 = vc.u32 %v2515, %v2519
          %v2524 = vsel %vm2523, 1, 0
          %v2525 = vadd.s32 %v2515, %v2519
          %v2526 = vadd.s32 %v2518, %v2524
          %vm2527 = vc.u32 %v2525, %v2521
          %v2528 = vsel %vm2527, 1, 0
          %v2529 = vadd.s32 %v2525, %v2521
          %v2530 = vadd.s32 %v2526, %v2528
          %v2531 = vadd.s32 %v2530, %v2520
          %v2532 = vadd.s32 %v2531, %v2522
          %v2533 = vand.u32 %v2510, 65535
          %v2534 = vshrl.u32 %v2510, 16
          %v2535 = vand.u32 %v2505, 65535
          %v2536 = vshrl.u32 %v2505, 16
          %v2537 = vmul.u32 %v2533, %v2535
          %v2538 = vmul.u32 %v2533, %v2536
          %v2539 = vmul.u32 %v2534, %v2535
          %v2540 = vmul.u32 %v2534, %v2536
          %v2541 = vshll.u32 %v2538, 16
          %v2542 = vshrl.u32 %v2538, 16
          %v2543 = vshll.u32 %v2539, 16
          %v2544 = vshrl.u32 %v2539, 16
          %vm2545 = vc.u32 %v2537, %v2541
          %v2546 = vsel %vm2545, 1, 0
          %v2547 = vadd.s32 %v2537, %v2541
          %v2548 = vadd.s32 %v2540, %v2546
          %vm2549 = vc.u32 %v2547, %v2543
          %v2550 = vsel %vm2549, 1, 0
          %v2551 = vadd.s32 %v2547, %v2543
          %v2552 = vadd.s32 %v2548, %v2550
          %v2553 = vadd.s32 %v2552, %v2542
          %v2554 = vadd.s32 %v2553, %v2544
          %v2555 = vmul.u32 %v2510, %v2501
          %v2556 = vadd.s32 %v2532, %v2551
          %vm2557 = vc.u32 %v2532, %v2551
          %v2558 = vadd.s32 %v2554, 1
          %v2559 = vsel %vm2557, %v2558, %v2554
          %v2560 = vadd.s32 %v2555, %v2559
          %v2561 = vadd.s32 %v2560, 536870912
          %v2562 = vshrl.u32 %v2561, 30
          %v2563 = vshll.u32 %v2562, 30
          %v2564 = vsub.s32 %v2560, %v2563
          %vm2565 = vcmp.lt.s32.totalorder %v2564, 0
          %v2566 = vsub.s32 0, %v2564
          %v2567 = vsel %vm2565, %v2566, %v2564
          %v2568 = vclz %v2567
          %v2569 = vsub.s32 %v2568, 2
          %vm2570 = vcmp.gt.s32.totalorder 0, %v2569
          %v2571 = vsel %vm2570, 0, %v2569
          %v2572 = vsub.s32 32, %v2571
          %v2573 = vshll.u32 %v2564, %v2571
          %v2574 = vshrl.u32 %v2556, %v2572
          %v2575 = vor.u32 %v2573, %v2574
          %v2576 = vsub.s32 4294967266, %v2571
          %v2577 = vadd.s32 %v2576, 127
          %v2578 = vshll.u32 %v2577, 23
          %v2579 = vor.u32 4788187, %v2578
          %v2580 = vand.u32 2147483647, %v2579
          %v2582 = vcvt.s32.f32 %v2575
          %v2583 = vmul.f32 %v2582, %v2580
          %v2584 = vxor.u32 %v2583, 2147483648
          %v2585 = vsel %vm2464, %v2584, %v2583
          %v2586 = vsub.s32 4, %v2562
          %v2587 = vsel %vm2464, %v2586, %v2562
          %v2588 = vsel %vm2463, %v422, %v2585
          %v2589 = vsel %vm2463, 0, %v2587
          %v2590 = vmul.f32 %v2588, %v2588
          %v2591 = vmul.f32 %v2590, -0.001358992
          %v2592 = vadd.f32 %v2591, 0.041655596
          %v2593 = vmul.f32 %v2590, %v2592
          %v2594 = vadd.f32 %v2593, -0.4999988
          %v2595 = vmul.f32 %v2590, %v2594
          %v2596 = vadd.f32 1.0, %v2595
          %v2597 = vmul.f32 %v2588, %v2588
          %v2598 = vmul.f32 %v2597, -0.00019511016
          %v2599 = vadd.f32 %v2598, 0.008332121
          %v2600 = vmul.f32 %v2597, %v2599
          %v2601 = vadd.f32 %v2600, -0.16666654
          %v2602 = vmul.f32 %v2597, %v2601
          %v2603 = vadd.f32 %v2602, 1.0
          %v2604 = vmul.f32 %v2603, %v2588
          %vm2605 = vweird.f32 %v422
          %v2606 = vadd.s32 %v2589, 3
          %v2607 = vand.u32 %v2606, 3
          %vm2608 = vcmp.lt.s32.totalorder %v2607, 2
          %vm2609 = vcmp.eq.s32.totalorder %v2607, 0
          %v2610 = vxor.u32 %v2604, 2147483648
          %v2611 = vsel %vm2609, %v2596, %v2610
          %vm2612 = vcmp.eq.s32.totalorder %v2607, 2
          %v2613 = vxor.u32 %v2596, 2147483648
          %v2614 = vsel %vm2612, %v2613, %v2604
          %v2615 = vsel %vm2608, %v2611, %v2614
          %v2616 = vsel %vm2605, nan, %v2615
          %v2617 = vand.u32 2147483647, %v425
          %vm2618 = vcmp.le.f32.partialorder %v2617, 0.7853982
          %vm2619 = vcmp.lt.s32.totalorder %v425, 0
          %v2620 = vand.u32 %v425, 2139095040
          %v2621 = vshrl.u32 %v2620, 23
          %v2622 = vsub.s32 %v2621, 127
          %v2623 = vand.u32 2147483647, %v425
          %v2624 = vand.u32 %v2623, 8388607
          %v2625 = vor.u32 %v2624, 8388608
          %v2626 = vsub.s32 0, %v2625
          %v2627 = vadd.s32 %v2622, 1
          %vm2628 = vcmp.gt.s32.totalorder %v2627, 0
          %v2629 = vsel %vm2628, %v2627, 0
          %v2630 = vshrl.u32 %v2629, 5
          %v2631 = vand.u32 %v2629, 31
          %v2632 = vsub.s32 32, %v2631
          %v2633 = vshrl.u32 683565275, %v2632
          %v2634 = vshll.u32 683565275, %v2631
          %v2635 = vshrl.u32 2475754826, %v2632
          %v2636 = vor.u32 %v2634, %v2635
          %v2637 = vshll.u32 2475754826, %v2631
          %v2638 = vshrl.u32 2131351028, %v2632
          %v2639 = vor.u32 %v2637, %v2638
          %v2640 = vshll.u32 2131351028, %v2631
          %v2641 = vshrl.u32 2102212464, %v2632
          %v2642 = vor.u32 %v2640, %v2641
          %v2643 = vshll.u32 2102212464, %v2631
          %v2644 = vshrl.u32 920167782, %v2632
          %v2645 = vor.u32 %v2643, %v2644
          %v2646 = vshll.u32 920167782, %v2631
          %v2647 = vshrl.u32 1326507024, %v2632
          %v2648 = vor.u32 %v2646, %v2647
          %vm2649 = vcmp.lt.s32.totalorder %v2630, 1
          %vm2650 = vcmp.lt.s32.totalorder %v2630, 2
          %vm2651 = vcmp.lt.s32.totalorder %v2630, 3
          %vm2652 = vcmp.lt.s32.totalorder %v2630, 4
          %v2653 = vsel %vm2649, %v2633, %v2636
          %v2654 = vsel %vm2652, %v2642, 2102212464
          %v2655 = vsel %vm2651, %v2639, %v2654
          %v2656 = vsel %vm2650, %v2653, %v2655
          %v2657 = vsel %vm2649, %v2636, %v2639
          %v2658 = vsel %vm2652, %v2645, 920167782
          %v2659 = vsel %vm2651, %v2642, %v2658
          %v2660 = vsel %vm2650, %v2657, %v2659
          %v2661 = vsel %vm2649, %v2639, %v2642
          %v2662 = vsel %vm2652, %v2648, 1326507024
          %v2663 = vsel %vm2651, %v2645, %v2662
          %v2664 = vsel %vm2650, %v2661, %v2663
          %v2665 = vshll.u32 %v2625, 8
          %v2666 = vand.u32 %v2665, 65535
          %v2667 = vshrl.u32 %v2665, 16
          %v2668 = vand.u32 %v2664, 65535
          %v2669 = vshrl.u32 %v2664, 16
          %v2670 = vmul.u32 %v2666, %v2668
          %v2671 = vmul.u32 %v2666, %v2669
          %v2672 = vmul.u32 %v2667, %v2668
          %v2673 = vmul.u32 %v2667, %v2669
          %v2674 = vshll.u32 %v2671, 16
          %v2675 = vshrl.u32 %v2671, 16
          %v2676 = vshll.u32 %v2672, 16
          %v2677 = vshrl.u32 %v2672, 16
          %vm2678 = vc.u32 %v2670, %v2674
          %v2679 = vsel %vm2678, 1, 0
          %v2680 = vadd.s32 %v2670, %v2674
          %v2681 = vadd.s32 %v2673, %v2679
          %vm2682 = vc.u32 %v2680, %v2676
          %v2683 = vsel %vm2682, 1, 0
          %v2684 = vadd.s32 %v2680, %v2676
          %v2685 = vadd.s32 %v2681, %v2683
          %v2686 = vadd.s32 %v2685, %v2675
          %v2687 = vadd.s32 %v2686, %v2677
          %v2688 = vand.u32 %v2665, 65535
          %v2689 = vshrl.u32 %v2665, 16
          %v2690 = vand.u32 %v2660, 65535
          %v2691 = vshrl.u32 %v2660, 16
          %v2692 = vmul.u32 %v2688, %v2690
          %v2693 = vmul.u32 %v2688, %v2691
          %v2694 = vmul.u32 %v2689, %v2690
          %v2695 = vmul.u32 %v2689, %v2691
          %v2696 = vshll.u32 %v2693, 16
          %v2697 = vshrl.u32 %v2693, 16
          %v2698 = vshll.u32 %v2694, 16
          %v2699 = vshrl.u32 %v2694, 16
          %vm2700 = vc.u32 %v2692, %v2696
          %v2701 = vsel %vm2700, 1, 0
          %v2702 = vadd.s32 %v2692, %v2696
          %v2703 = vadd.s32 %v2695, %v2701
          %vm2704 = vc.u32 %v2702, %v2698
          %v2705 = vsel %vm2704, 1, 0
          %v2706 = vadd.s32 %v2702, %v2698
          %v2707 = vadd.s32 %v2703, %v2705
          %v2708 = vadd.s32 %v2707, %v2697
          %v2709 = vadd.s32 %v2708, %v2699
          %v2710 = vmul.u32 %v2665, %v2656
          %v2711 = vadd.s32 %v2687, %v2706
          %vm2712 = vc.u32 %v2687, %v2706
          %v2713 = vadd.s32 %v2709, 1
          %v2714 = vsel %vm2712, %v2713, %v2709
          %v2715 = vadd.s32 %v2710, %v2714
          %v2716 = vadd.s32 %v2715, 536870912
          %v2717 = vshrl.u32 %v2716, 30
          %v2718 = vshll.u32 %v2717, 30
          %v2719 = vsub.s32 %v2715, %v2718
          %vm2720 = vcmp.lt.s32.totalorder %v2719, 0
          %v2721 = vsub.s32 0, %v2719
          %v2722 = vsel %vm2720, %v2721, %v2719
          %v2723 = vclz %v2722
          %v2724 = vsub.s32 %v2723, 2
          %vm2725 = vcmp.gt.s32.totalorder 0, %v2724
          %v2726 = vsel %vm2725, 0, %v2724
          %v2727 = vsub.s32 32, %v2726
          %v2728 = vshll.u32 %v2719, %v2726
          %v2729 = vshrl.u32 %v2711, %v2727
          %v2730 = vor.u32 %v2728, %v2729
          %v2731 = vsub.s32 4294967266, %v2726
          %v2732 = vadd.s32 %v2731, 127
          %v2733 = vshll.u32 %v2732, 23
          %v2734 = vor.u32 4788187, %v2733
          %v2735 = vand.u32 2147483647, %v2734
          %v2737 = vcvt.s32.f32 %v2730
          %v2738 = vmul.f32 %v2737, %v2735
          %v2739 = vxor.u32 %v2738, 2147483648
          %v2740 = vsel %vm2619, %v2739, %v2738
          %v2741 = vsub.s32 4, %v2717
          %v2742 = vsel %vm2619, %v2741, %v2717
          %v2743 = vsel %vm2618, %v425, %v2740
          %v2744 = vsel %vm2618, 0, %v2742
          %v2745 = vmul.f32 %v2743, %v2743
          %v2746 = vmul.f32 %v2745, -0.001358992
          %v2747 = vadd.f32 %v2746, 0.041655596
          %v2748 = vmul.f32 %v2745, %v2747
          %v2749 = vadd.f32 %v2748, -0.4999988
          %v2750 = vmul.f32 %v2745, %v2749
          %v2751 = vadd.f32 1.0, %v2750
          %v2752 = vmul.f32 %v2743, %v2743
          %v2753 = vmul.f32 %v2752, -0.00019511016
          %v2754 = vadd.f32 %v2753, 0.008332121
          %v2755 = vmul.f32 %v2752, %v2754
          %v2756 = vadd.f32 %v2755, -0.16666654
          %v2757 = vmul.f32 %v2752, %v2756
          %v2758 = vadd.f32 %v2757, 1.0
          %v2759 = vmul.f32 %v2758, %v2743
          %vm2760 = vweird.f32 %v425
          %v2761 = vadd.s32 %v2744, 3
          %v2762 = vand.u32 %v2761, 3
          %vm2763 = vcmp.lt.s32.totalorder %v2762, 2
          %vm2764 = vcmp.eq.s32.totalorder %v2762, 0
          %v2765 = vxor.u32 %v2759, 2147483648
          %v2766 = vsel %vm2764, %v2751, %v2765
          %vm2767 = vcmp.eq.s32.totalorder %v2762, 2
          %v2768 = vxor.u32 %v2751, 2147483648
          %v2769 = vsel %vm2767, %v2768, %v2759
          %v2770 = vsel %vm2763, %v2766, %v2769
          %v2771 = vsel %vm2760, nan, %v2770
          %v2772 = vand.u32 2147483647, %v428
          %vm2773 = vcmp.le.f32.partialorder %v2772, 0.7853982
          %vm2774 = vcmp.lt.s32.totalorder %v428, 0
          %v2775 = vand.u32 %v428, 2139095040
          %v2776 = vshrl.u32 %v2775, 23
          %v2777 = vsub.s32 %v2776, 127
          %v2778 = vand.u32 2147483647, %v428
          %v2779 = vand.u32 %v2778, 8388607
          %v2780 = vor.u32 %v2779, 8388608
          %v2781 = vsub.s32 0, %v2780
          %v2782 = vadd.s32 %v2777, 1
          %vm2783 = vcmp.gt.s32.totalorder %v2782, 0
          %v2784 = vsel %vm2783, %v2782, 0
          %v2785 = vshrl.u32 %v2784, 5
          %v2786 = vand.u32 %v2784, 31
          %v2787 = vsub.s32 32, %v2786
          %v2788 = vshrl.u32 683565275, %v2787
          %v2789 = vshll.u32 683565275, %v2786
          %v2790 = vshrl.u32 2475754826, %v2787
          %v2791 = vor.u32 %v2789, %v2790
          %v2792 = vshll.u32 2475754826, %v2786
          %v2793 = vshrl.u32 2131351028, %v2787
          %v2794 = vor.u32 %v2792, %v2793
          %v2795 = vshll.u32 2131351028, %v2786
          %v2796 = vshrl.u32 2102212464, %v2787
          %v2797 = vor.u32 %v2795, %v2796
          %v2798 = vshll.u32 2102212464, %v2786
          %v2799 = vshrl.u32 920167782, %v2787
          %v2800 = vor.u32 %v2798, %v2799
          %v2801 = vshll.u32 920167782, %v2786
          %v2802 = vshrl.u32 1326507024, %v2787
          %v2803 = vor.u32 %v2801, %v2802
          %vm2804 = vcmp.lt.s32.totalorder %v2785, 1
          %vm2805 = vcmp.lt.s32.totalorder %v2785, 2
          %vm2806 = vcmp.lt.s32.totalorder %v2785, 3
          %vm2807 = vcmp.lt.s32.totalorder %v2785, 4
          %v2808 = vsel %vm2804, %v2788, %v2791
          %v2809 = vsel %vm2807, %v2797, 2102212464
          %v2810 = vsel %vm2806, %v2794, %v2809
          %v2811 = vsel %vm2805, %v2808, %v2810
          %v2812 = vsel %vm2804, %v2791, %v2794
          %v2813 = vsel %vm2807, %v2800, 920167782
          %v2814 = vsel %vm2806, %v2797, %v2813
          %v2815 = vsel %vm2805, %v2812, %v2814
          %v2816 = vsel %vm2804, %v2794, %v2797
          %v2817 = vsel %vm2807, %v2803, 1326507024
          %v2818 = vsel %vm2806, %v2800, %v2817
          %v2819 = vsel %vm2805, %v2816, %v2818
          %v2820 = vshll.u32 %v2780, 8
          %v2821 = vand.u32 %v2820, 65535
          %v2822 = vshrl.u32 %v2820, 16
          %v2823 = vand.u32 %v2819, 65535
          %v2824 = vshrl.u32 %v2819, 16
          %v2825 = vmul.u32 %v2821, %v2823
          %v2826 = vmul.u32 %v2821, %v2824
          %v2827 = vmul.u32 %v2822, %v2823
          %v2828 = vmul.u32 %v2822, %v2824
          %v2829 = vshll.u32 %v2826, 16
          %v2830 = vshrl.u32 %v2826, 16
          %v2831 = vshll.u32 %v2827, 16
          %v2832 = vshrl.u32 %v2827, 16
          %vm2833 = vc.u32 %v2825, %v2829
          %v2834 = vsel %vm2833, 1, 0
          %v2835 = vadd.s32 %v2825, %v2829
          %v2836 = vadd.s32 %v2828, %v2834
          %vm2837 = vc.u32 %v2835, %v2831
          %v2838 = vsel %vm2837, 1, 0
          %v2839 = vadd.s32 %v2835, %v2831
          %v2840 = vadd.s32 %v2836, %v2838
          %v2841 = vadd.s32 %v2840, %v2830
          %v2842 = vadd.s32 %v2841, %v2832
          %v2843 = vand.u32 %v2820, 65535
          %v2844 = vshrl.u32 %v2820, 16
          %v2845 = vand.u32 %v2815, 65535
          %v2846 = vshrl.u32 %v2815, 16
          %v2847 = vmul.u32 %v2843, %v2845
          %v2848 = vmul.u32 %v2843, %v2846
          %v2849 = vmul.u32 %v2844, %v2845
          %v2850 = vmul.u32 %v2844, %v2846
          %v2851 = vshll.u32 %v2848, 16
          %v2852 = vshrl.u32 %v2848, 16
          %v2853 = vshll.u32 %v2849, 16
          %v2854 = vshrl.u32 %v2849, 16
          %vm2855 = vc.u32 %v2847, %v2851
          %v2856 = vsel %vm2855, 1, 0
          %v2857 = vadd.s32 %v2847, %v2851
          %v2858 = vadd.s32 %v2850, %v2856
          %vm2859 = vc.u32 %v2857, %v2853
          %v2860 = vsel %vm2859, 1, 0
          %v2861 = vadd.s32 %v2857, %v2853
          %v2862 = vadd.s32 %v2858, %v2860
          %v2863 = vadd.s32 %v2862, %v2852
          %v2864 = vadd.s32 %v2863, %v2854
          %v2865 = vmul.u32 %v2820, %v2811
          %v2866 = vadd.s32 %v2842, %v2861
          %vm2867 = vc.u32 %v2842, %v2861
          %v2868 = vadd.s32 %v2864, 1
          %v2869 = vsel %vm2867, %v2868, %v2864
          %v2870 = vadd.s32 %v2865, %v2869
          %v2871 = vadd.s32 %v2870, 536870912
          %v2872 = vshrl.u32 %v2871, 30
          %v2873 = vshll.u32 %v2872, 30
          %v2874 = vsub.s32 %v2870, %v2873
          %vm2875 = vcmp.lt.s32.totalorder %v2874, 0
          %v2876 = vsub.s32 0, %v2874
          %v2877 = vsel %vm2875, %v2876, %v2874
          %v2878 = vclz %v2877
          %v2879 = vsub.s32 %v2878, 2
          %vm2880 = vcmp.gt.s32.totalorder 0, %v2879
          %v2881 = vsel %vm2880, 0, %v2879
          %v2882 = vsub.s32 32, %v2881
          %v2883 = vshll.u32 %v2874, %v2881
          %v2884 = vshrl.u32 %v2866, %v2882
          %v2885 = vor.u32 %v2883, %v2884
          %v2886 = vsub.s32 4294967266, %v2881
          %v2887 = vadd.s32 %v2886, 127
          %v2888 = vshll.u32 %v2887, 23
          %v2889 = vor.u32 4788187, %v2888
          %v2890 = vand.u32 2147483647, %v2889
          %v2892 = vcvt.s32.f32 %v2885
          %v2893 = vmul.f32 %v2892, %v2890
          %v2894 = vxor.u32 %v2893, 2147483648
          %v2895 = vsel %vm2774, %v2894, %v2893
          %v2896 = vsub.s32 4, %v2872
          %v2897 = vsel %vm2774, %v2896, %v2872
          %v2898 = vsel %vm2773, %v428, %v2895
          %v2899 = vsel %vm2773, 0, %v2897
          %v2900 = vmul.f32 %v2898, %v2898
          %v2901 = vmul.f32 %v2900, -0.001358992
          %v2902 = vadd.f32 %v2901, 0.041655596
          %v2903 = vmul.f32 %v2900, %v2902
          %v2904 = vadd.f32 %v2903, -0.4999988
          %v2905 = vmul.f32 %v2900, %v2904
          %v2906 = vadd.f32 1.0, %v2905
          %v2907 = vmul.f32 %v2898, %v2898
          %v2908 = vmul.f32 %v2907, -0.00019511016
          %v2909 = vadd.f32 %v2908, 0.008332121
          %v2910 = vmul.f32 %v2907, %v2909
          %v2911 = vadd.f32 %v2910, -0.16666654
          %v2912 = vmul.f32 %v2907, %v2911
          %v2913 = vadd.f32 %v2912, 1.0
          %v2914 = vmul.f32 %v2913, %v2898
          %vm2915 = vweird.f32 %v428
          %v2916 = vadd.s32 %v2899, 3
          %v2917 = vand.u32 %v2916, 3
          %vm2918 = vcmp.lt.s32.totalorder %v2917, 2
          %vm2919 = vcmp.eq.s32.totalorder %v2917, 0
          %v2920 = vxor.u32 %v2914, 2147483648
          %v2921 = vsel %vm2919, %v2906, %v2920
          %vm2922 = vcmp.eq.s32.totalorder %v2917, 2
          %v2923 = vxor.u32 %v2906, 2147483648
          %v2924 = vsel %vm2922, %v2923, %v2914
          %v2925 = vsel %vm2918, %v2921, %v2924
          %v2926 = vsel %vm2915, nan, %v2925
          %vm2927 = vcmask 121880
          %2928 = vst.msk [vmem:[#allocation2] sm:$0xff] %vm2927, %v601
          %2929 = vst.msk [vmem:[#allocation2 + $0x8] sm:$0xff] %vm2927, %v756
          %2930 = vst.msk [vmem:[#allocation2 + $0x10] sm:$0xff] %vm2927, %v911
          %2931 = vst.msk [vmem:[#allocation2 + $0x18] sm:$0xff] %vm2927, %v1066
          %2932 = vst.msk [vmem:[#allocation2 + $0x20] sm:$0xff] %vm2927, %v1221
          %2933 = vst.msk [vmem:[#allocation2 + $0x28] sm:$0xff] %vm2927, %v1376
          %2934 = vst.msk [vmem:[#allocation2 + $0x30] sm:$0xff] %vm2927, %v1531
          %2935 = vst.msk [vmem:[#allocation2 + $0x38] sm:$0xff] %vm2927, %v1686
          %2936 = vst.msk [vmem:[#allocation2 + $0x40] sm:$0xff] %vm2927, %v1841
          %2937 = vst.msk [vmem:[#allocation2 + $0x48] sm:$0xff] %vm2927, %v1996
          %2938 = vst.msk [vmem:[#allocation2 + $0x50] sm:$0xff] %vm2927, %v2151
          %2939 = vst.msk [vmem:[#allocation2 + $0x58] sm:$0xff] %vm2927, %v2306
          %2940 = vst.msk [vmem:[#allocation2 + $0x60] sm:$0xff] %vm2927, %v2461
          %2941 = vst.msk [vmem:[#allocation2 + $0x68] sm:$0xff] %vm2927, %v2616
          %2942 = vst.msk [vmem:[#allocation2 + $0x70] sm:$0xff] %vm2927, %v2771
          %2943 = vst.msk [vmem:[#allocation2 + $0x78] sm:$0xff] %vm2927, %v2926
          %v2944 = vand.u32 2147483647, %v383
          %vm2945 = vcmp.le.f32.partialorder %v2944, 0.7853982
          %vm2946 = vcmp.lt.s32.totalorder %v383, 0
          %v2947 = vand.u32 %v383, 2139095040
          %v2948 = vshrl.u32 %v2947, 23
          %v2949 = vsub.s32 %v2948, 127
          %v2950 = vand.u32 2147483647, %v383
          %v2951 = vand.u32 %v2950, 8388607
          %v2952 = vor.u32 %v2951, 8388608
          %v2953 = vsub.s32 0, %v2952
          %v2954 = vadd.s32 %v2949, 1
          %vm2955 = vcmp.gt.s32.totalorder %v2954, 0
          %v2956 = vsel %vm2955, %v2954, 0
          %v2957 = vshrl.u32 %v2956, 5
          %v2958 = vand.u32 %v2956, 31
          %v2959 = vsub.s32 32, %v2958
          %v2960 = vshrl.u32 683565275, %v2959
          %v2961 = vshll.u32 683565275, %v2958
          %v2962 = vshrl.u32 2475754826, %v2959
          %v2963 = vor.u32 %v2961, %v2962
          %v2964 = vshll.u32 2475754826, %v2958
          %v2965 = vshrl.u32 2131351028, %v2959
          %v2966 = vor.u32 %v2964, %v2965
          %v2967 = vshll.u32 2131351028, %v2958
          %v2968 = vshrl.u32 2102212464, %v2959
          %v2969 = vor.u32 %v2967, %v2968
          %v2970 = vshll.u32 2102212464, %v2958
          %v2971 = vshrl.u32 920167782, %v2959
          %v2972 = vor.u32 %v2970, %v2971
          %v2973 = vshll.u32 920167782, %v2958
          %v2974 = vshrl.u32 1326507024, %v2959
          %v2975 = vor.u32 %v2973, %v2974
          %vm2976 = vcmp.lt.s32.totalorder %v2957, 1
          %vm2977 = vcmp.lt.s32.totalorder %v2957, 2
          %vm2978 = vcmp.lt.s32.totalorder %v2957, 3
          %vm2979 = vcmp.lt.s32.totalorder %v2957, 4
          %v2980 = vsel %vm2976, %v2960, %v2963
          %v2981 = vsel %vm2979, %v2969, 2102212464
          %v2982 = vsel %vm2978, %v2966, %v2981
          %v2983 = vsel %vm2977, %v2980, %v2982
          %v2984 = vsel %vm2976, %v2963, %v2966
          %v2985 = vsel %vm2979, %v2972, 920167782
          %v2986 = vsel %vm2978, %v2969, %v2985
          %v2987 = vsel %vm2977, %v2984, %v2986
          %v2988 = vsel %vm2976, %v2966, %v2969
          %v2989 = vsel %vm2979, %v2975, 1326507024
          %v2990 = vsel %vm2978, %v2972, %v2989
          %v2991 = vsel %vm2977, %v2988, %v2990
          %v2992 = vshll.u32 %v2952, 8
          %v2993 = vand.u32 %v2992, 65535
          %v2994 = vshrl.u32 %v2992, 16
          %v2995 = vand.u32 %v2991, 65535
          %v2996 = vshrl.u32 %v2991, 16
          %v2997 = vmul.u32 %v2993, %v2995
          %v2998 = vmul.u32 %v2993, %v2996
          %v2999 = vmul.u32 %v2994, %v2995
          %v3000 = vmul.u32 %v2994, %v2996
          %v3001 = vshll.u32 %v2998, 16
          %v3002 = vshrl.u32 %v2998, 16
          %v3003 = vshll.u32 %v2999, 16
          %v3004 = vshrl.u32 %v2999, 16
          %vm3005 = vc.u32 %v2997, %v3001
          %v3006 = vsel %vm3005, 1, 0
          %v3007 = vadd.s32 %v2997, %v3001
          %v3008 = vadd.s32 %v3000, %v3006
          %vm3009 = vc.u32 %v3007, %v3003
          %v3010 = vsel %vm3009, 1, 0
          %v3011 = vadd.s32 %v3007, %v3003
          %v3012 = vadd.s32 %v3008, %v3010
          %v3013 = vadd.s32 %v3012, %v3002
          %v3014 = vadd.s32 %v3013, %v3004
          %v3015 = vand.u32 %v2992, 65535
          %v3016 = vshrl.u32 %v2992, 16
          %v3017 = vand.u32 %v2987, 65535
          %v3018 = vshrl.u32 %v2987, 16
          %v3019 = vmul.u32 %v3015, %v3017
          %v3020 = vmul.u32 %v3015, %v3018
          %v3021 = vmul.u32 %v3016, %v3017
          %v3022 = vmul.u32 %v3016, %v3018
          %v3023 = vshll.u32 %v3020, 16
          %v3024 = vshrl.u32 %v3020, 16
          %v3025 = vshll.u32 %v3021, 16
          %v3026 = vshrl.u32 %v3021, 16
          %vm3027 = vc.u32 %v3019, %v3023
          %v3028 = vsel %vm3027, 1, 0
          %v3029 = vadd.s32 %v3019, %v3023
          %v3030 = vadd.s32 %v3022, %v3028
          %vm3031 = vc.u32 %v3029, %v3025
          %v3032 = vsel %vm3031, 1, 0
          %v3033 = vadd.s32 %v3029, %v3025
          %v3034 = vadd.s32 %v3030, %v3032
          %v3035 = vadd.s32 %v3034, %v3024
          %v3036 = vadd.s32 %v3035, %v3026
          %v3037 = vmul.u32 %v2992, %v2983
          %v3038 = vadd.s32 %v3014, %v3033
          %vm3039 = vc.u32 %v3014, %v3033
          %v3040 = vadd.s32 %v3036, 1
          %v3041 = vsel %vm3039, %v3040, %v3036
          %v3042 = vadd.s32 %v3037, %v3041
          %v3043 = vadd.s32 %v3042, 536870912
          %v3044 = vshrl.u32 %v3043, 30
          %v3045 = vshll.u32 %v3044, 30
          %v3046 = vsub.s32 %v3042, %v3045
          %vm3047 = vcmp.lt.s32.totalorder %v3046, 0
          %v3048 = vsub.s32 0, %v3046
          %v3049 = vsel %vm3047, %v3048, %v3046
          %v3050 = vclz %v3049
          %v3051 = vsub.s32 %v3050, 2
          %vm3052 = vcmp.gt.s32.totalorder 0, %v3051
          %v3053 = vsel %vm3052, 0, %v3051
          %v3054 = vsub.s32 32, %v3053
          %v3055 = vshll.u32 %v3046, %v3053
          %v3056 = vshrl.u32 %v3038, %v3054
          %v3057 = vor.u32 %v3055, %v3056
          %v3058 = vsub.s32 4294967266, %v3053
          %v3059 = vadd.s32 %v3058, 127
          %v3060 = vshll.u32 %v3059, 23
          %v3061 = vor.u32 4788187, %v3060
          %v3062 = vand.u32 2147483647, %v3061
          %v3064 = vcvt.s32.f32 %v3057
          %v3065 = vmul.f32 %v3064, %v3062
          %v3066 = vxor.u32 %v3065, 2147483648
          %v3067 = vsel %vm2946, %v3066, %v3065
          %v3068 = vsub.s32 4, %v3044
          %v3069 = vsel %vm2946, %v3068, %v3044
          %v3070 = vsel %vm2945, %v383, %v3067
          %v3071 = vsel %vm2945, 0, %v3069
          %v3072 = vmul.f32 %v3070, %v3070
          %v3073 = vmul.f32 %v3072, -0.001358992
          %v3074 = vadd.f32 %v3073, 0.041655596
          %v3075 = vmul.f32 %v3072, %v3074
          %v3076 = vadd.f32 %v3075, -0.4999988
          %v3077 = vmul.f32 %v3072, %v3076
          %v3078 = vadd.f32 1.0, %v3077
          %v3079 = vmul.f32 %v3070, %v3070
          %v3080 = vmul.f32 %v3079, -0.00019511016
          %v3081 = vadd.f32 %v3080, 0.008332121
          %v3082 = vmul.f32 %v3079, %v3081
          %v3083 = vadd.f32 %v3082, -0.16666654
          %v3084 = vmul.f32 %v3079, %v3083
          %v3085 = vadd.f32 %v3084, 1.0
          %v3086 = vmul.f32 %v3085, %v3070
          %vm3087 = vweird.f32 %v383
          %v3088 = vand.u32 %v3071, 3
          %vm3089 = vcmp.lt.s32.totalorder %v3088, 2
          %vm3090 = vcmp.eq.s32.totalorder %v3088, 0
          %v3091 = vxor.u32 %v3086, 2147483648
          %v3092 = vsel %vm3090, %v3078, %v3091
          %vm3093 = vcmp.eq.s32.totalorder %v3088, 2
          %v3094 = vxor.u32 %v3078, 2147483648
          %v3095 = vsel %vm3093, %v3094, %v3086
          %v3096 = vsel %vm3089, %v3092, %v3095
          %v3097 = vsel %vm3087, nan, %v3096
          %v3098 = vand.u32 2147483647, %v386
          %vm3099 = vcmp.le.f32.partialorder %v3098, 0.7853982
          %vm3100 = vcmp.lt.s32.totalorder %v386, 0
          %v3101 = vand.u32 %v386, 2139095040
          %v3102 = vshrl.u32 %v3101, 23
          %v3103 = vsub.s32 %v3102, 127
          %v3104 = vand.u32 2147483647, %v386
          %v3105 = vand.u32 %v3104, 8388607
          %v3106 = vor.u32 %v3105, 8388608
          %v3107 = vsub.s32 0, %v3106
          %v3108 = vadd.s32 %v3103, 1
          %vm3109 = vcmp.gt.s32.totalorder %v3108, 0
          %v3110 = vsel %vm3109, %v3108, 0
          %v3111 = vshrl.u32 %v3110, 5
          %v3112 = vand.u32 %v3110, 31
          %v3113 = vsub.s32 32, %v3112
          %v3114 = vshrl.u32 683565275, %v3113
          %v3115 = vshll.u32 683565275, %v3112
          %v3116 = vshrl.u32 2475754826, %v3113
          %v3117 = vor.u32 %v3115, %v3116
          %v3118 = vshll.u32 2475754826, %v3112
          %v3119 = vshrl.u32 2131351028, %v3113
          %v3120 = vor.u32 %v3118, %v3119
          %v3121 = vshll.u32 2131351028, %v3112
          %v3122 = vshrl.u32 2102212464, %v3113
          %v3123 = vor.u32 %v3121, %v3122
          %v3124 = vshll.u32 2102212464, %v3112
          %v3125 = vshrl.u32 920167782, %v3113
          %v3126 = vor.u32 %v3124, %v3125
          %v3127 = vshll.u32 920167782, %v3112
          %v3128 = vshrl.u32 1326507024, %v3113
          %v3129 = vor.u32 %v3127, %v3128
          %vm3130 = vcmp.lt.s32.totalorder %v3111, 1
          %vm3131 = vcmp.lt.s32.totalorder %v3111, 2
          %vm3132 = vcmp.lt.s32.totalorder %v3111, 3
          %vm3133 = vcmp.lt.s32.totalorder %v3111, 4
          %v3134 = vsel %vm3130, %v3114, %v3117
          %v3135 = vsel %vm3133, %v3123, 2102212464
          %v3136 = vsel %vm3132, %v3120, %v3135
          %v3137 = vsel %vm3131, %v3134, %v3136
          %v3138 = vsel %vm3130, %v3117, %v3120
          %v3139 = vsel %vm3133, %v3126, 920167782
          %v3140 = vsel %vm3132, %v3123, %v3139
          %v3141 = vsel %vm3131, %v3138, %v3140
          %v3142 = vsel %vm3130, %v3120, %v3123
          %v3143 = vsel %vm3133, %v3129, 1326507024
          %v3144 = vsel %vm3132, %v3126, %v3143
          %v3145 = vsel %vm3131, %v3142, %v3144
          %v3146 = vshll.u32 %v3106, 8
          %v3147 = vand.u32 %v3146, 65535
          %v3148 = vshrl.u32 %v3146, 16
          %v3149 = vand.u32 %v3145, 65535
          %v3150 = vshrl.u32 %v3145, 16
          %v3151 = vmul.u32 %v3147, %v3149
          %v3152 = vmul.u32 %v3147, %v3150
          %v3153 = vmul.u32 %v3148, %v3149
          %v3154 = vmul.u32 %v3148, %v3150
          %v3155 = vshll.u32 %v3152, 16
          %v3156 = vshrl.u32 %v3152, 16
          %v3157 = vshll.u32 %v3153, 16
          %v3158 = vshrl.u32 %v3153, 16
          %vm3159 = vc.u32 %v3151, %v3155
          %v3160 = vsel %vm3159, 1, 0
          %v3161 = vadd.s32 %v3151, %v3155
          %v3162 = vadd.s32 %v3154, %v3160
          %vm3163 = vc.u32 %v3161, %v3157
          %v3164 = vsel %vm3163, 1, 0
          %v3165 = vadd.s32 %v3161, %v3157
          %v3166 = vadd.s32 %v3162, %v3164
          %v3167 = vadd.s32 %v3166, %v3156
          %v3168 = vadd.s32 %v3167, %v3158
          %v3169 = vand.u32 %v3146, 65535
          %v3170 = vshrl.u32 %v3146, 16
          %v3171 = vand.u32 %v3141, 65535
          %v3172 = vshrl.u32 %v3141, 16
          %v3173 = vmul.u32 %v3169, %v3171
          %v3174 = vmul.u32 %v3169, %v3172
          %v3175 = vmul.u32 %v3170, %v3171
          %v3176 = vmul.u32 %v3170, %v3172
          %v3177 = vshll.u32 %v3174, 16
          %v3178 = vshrl.u32 %v3174, 16
          %v3179 = vshll.u32 %v3175, 16
          %v3180 = vshrl.u32 %v3175, 16
          %vm3181 = vc.u32 %v3173, %v3177
          %v3182 = vsel %vm3181, 1, 0
          %v3183 = vadd.s32 %v3173, %v3177
          %v3184 = vadd.s32 %v3176, %v3182
          %vm3185 = vc.u32 %v3183, %v3179
          %v3186 = vsel %vm3185, 1, 0
          %v3187 = vadd.s32 %v3183, %v3179
          %v3188 = vadd.s32 %v3184, %v3186
          %v3189 = vadd.s32 %v3188, %v3178
          %v3190 = vadd.s32 %v3189, %v3180
          %v3191 = vmul.u32 %v3146, %v3137
          %v3192 = vadd.s32 %v3168, %v3187
          %vm3193 = vc.u32 %v3168, %v3187
          %v3194 = vadd.s32 %v3190, 1
          %v3195 = vsel %vm3193, %v3194, %v3190
          %v3196 = vadd.s32 %v3191, %v3195
          %v3197 = vadd.s32 %v3196, 536870912
          %v3198 = vshrl.u32 %v3197, 30
          %v3199 = vshll.u32 %v3198, 30
          %v3200 = vsub.s32 %v3196, %v3199
          %vm3201 = vcmp.lt.s32.totalorder %v3200, 0
          %v3202 = vsub.s32 0, %v3200
          %v3203 = vsel %vm3201, %v3202, %v3200
          %v3204 = vclz %v3203
          %v3205 = vsub.s32 %v3204, 2
          %vm3206 = vcmp.gt.s32.totalorder 0, %v3205
          %v3207 = vsel %vm3206, 0, %v3205
          %v3208 = vsub.s32 32, %v3207
          %v3209 = vshll.u32 %v3200, %v3207
          %v3210 = vshrl.u32 %v3192, %v3208
          %v3211 = vor.u32 %v3209, %v3210
          %v3212 = vsub.s32 4294967266, %v3207
          %v3213 = vadd.s32 %v3212, 127
          %v3214 = vshll.u32 %v3213, 23
          %v3215 = vor.u32 4788187, %v3214
          %v3216 = vand.u32 2147483647, %v3215
          %v3218 = vcvt.s32.f32 %v3211
          %v3219 = vmul.f32 %v3218, %v3216
          %v3220 = vxor.u32 %v3219, 2147483648
          %v3221 = vsel %vm3100, %v3220, %v3219
          %v3222 = vsub.s32 4, %v3198
          %v3223 = vsel %vm3100, %v3222, %v3198
          %v3224 = vsel %vm3099, %v386, %v3221
          %v3225 = vsel %vm3099, 0, %v3223
          %v3226 = vmul.f32 %v3224, %v3224
          %v3227 = vmul.f32 %v3226, -0.001358992
          %v3228 = vadd.f32 %v3227, 0.041655596
          %v3229 = vmul.f32 %v3226, %v3228
          %v3230 = vadd.f32 %v3229, -0.4999988
          %v3231 = vmul.f32 %v3226, %v3230
          %v3232 = vadd.f32 1.0, %v3231
          %v3233 = vmul.f32 %v3224, %v3224
          %v3234 = vmul.f32 %v3233, -0.00019511016
          %v3235 = vadd.f32 %v3234, 0.008332121
          %v3236 = vmul.f32 %v3233, %v3235
          %v3237 = vadd.f32 %v3236, -0.16666654
          %v3238 = vmul.f32 %v3233, %v3237
          %v3239 = vadd.f32 %v3238, 1.0
          %v3240 = vmul.f32 %v3239, %v3224
          %vm3241 = vweird.f32 %v386
          %v3242 = vand.u32 %v3225, 3
          %vm3243 = vcmp.lt.s32.totalorder %v3242, 2
          %vm3244 = vcmp.eq.s32.totalorder %v3242, 0
          %v3245 = vxor.u32 %v3240, 2147483648
          %v3246 = vsel %vm3244, %v3232, %v3245
          %vm3247 = vcmp.eq.s32.totalorder %v3242, 2
          %v3248 = vxor.u32 %v3232, 2147483648
          %v3249 = vsel %vm3247, %v3248, %v3240
          %v3250 = vsel %vm3243, %v3246, %v3249
          %v3251 = vsel %vm3241, nan, %v3250
          %v3252 = vand.u32 2147483647, %v389
          %vm3253 = vcmp.le.f32.partialorder %v3252, 0.7853982
          %vm3254 = vcmp.lt.s32.totalorder %v389, 0
          %v3255 = vand.u32 %v389, 2139095040
          %v3256 = vshrl.u32 %v3255, 23
          %v3257 = vsub.s32 %v3256, 127
          %v3258 = vand.u32 2147483647, %v389
          %v3259 = vand.u32 %v3258, 8388607
          %v3260 = vor.u32 %v3259, 8388608
          %v3261 = vsub.s32 0, %v3260
          %v3262 = vadd.s32 %v3257, 1
          %vm3263 = vcmp.gt.s32.totalorder %v3262, 0
          %v3264 = vsel %vm3263, %v3262, 0
          %v3265 = vshrl.u32 %v3264, 5
          %v3266 = vand.u32 %v3264, 31
          %v3267 = vsub.s32 32, %v3266
          %v3268 = vshrl.u32 683565275, %v3267
          %v3269 = vshll.u32 683565275, %v3266
          %v3270 = vshrl.u32 2475754826, %v3267
          %v3271 = vor.u32 %v3269, %v3270
          %v3272 = vshll.u32 2475754826, %v3266
          %v3273 = vshrl.u32 2131351028, %v3267
          %v3274 = vor.u32 %v3272, %v3273
          %v3275 = vshll.u32 2131351028, %v3266
          %v3276 = vshrl.u32 2102212464, %v3267
          %v3277 = vor.u32 %v3275, %v3276
          %v3278 = vshll.u32 2102212464, %v3266
          %v3279 = vshrl.u32 920167782, %v3267
          %v3280 = vor.u32 %v3278, %v3279
          %v3281 = vshll.u32 920167782, %v3266
          %v3282 = vshrl.u32 1326507024, %v3267
          %v3283 = vor.u32 %v3281, %v3282
          %vm3284 = vcmp.lt.s32.totalorder %v3265, 1
          %vm3285 = vcmp.lt.s32.totalorder %v3265, 2
          %vm3286 = vcmp.lt.s32.totalorder %v3265, 3
          %vm3287 = vcmp.lt.s32.totalorder %v3265, 4
          %v3288 = vsel %vm3284, %v3268, %v3271
          %v3289 = vsel %vm3287, %v3277, 2102212464
          %v3290 = vsel %vm3286, %v3274, %v3289
          %v3291 = vsel %vm3285, %v3288, %v3290
          %v3292 = vsel %vm3284, %v3271, %v3274
          %v3293 = vsel %vm3287, %v3280, 920167782
          %v3294 = vsel %vm3286, %v3277, %v3293
          %v3295 = vsel %vm3285, %v3292, %v3294
          %v3296 = vsel %vm3284, %v3274, %v3277
          %v3297 = vsel %vm3287, %v3283, 1326507024
          %v3298 = vsel %vm3286, %v3280, %v3297
          %v3299 = vsel %vm3285, %v3296, %v3298
          %v3300 = vshll.u32 %v3260, 8
          %v3301 = vand.u32 %v3300, 65535
          %v3302 = vshrl.u32 %v3300, 16
          %v3303 = vand.u32 %v3299, 65535
          %v3304 = vshrl.u32 %v3299, 16
          %v3305 = vmul.u32 %v3301, %v3303
          %v3306 = vmul.u32 %v3301, %v3304
          %v3307 = vmul.u32 %v3302, %v3303
          %v3308 = vmul.u32 %v3302, %v3304
          %v3309 = vshll.u32 %v3306, 16
          %v3310 = vshrl.u32 %v3306, 16
          %v3311 = vshll.u32 %v3307, 16
          %v3312 = vshrl.u32 %v3307, 16
          %vm3313 = vc.u32 %v3305, %v3309
          %v3314 = vsel %vm3313, 1, 0
          %v3315 = vadd.s32 %v3305, %v3309
          %v3316 = vadd.s32 %v3308, %v3314
          %vm3317 = vc.u32 %v3315, %v3311
          %v3318 = vsel %vm3317, 1, 0
          %v3319 = vadd.s32 %v3315, %v3311
          %v3320 = vadd.s32 %v3316, %v3318
          %v3321 = vadd.s32 %v3320, %v3310
          %v3322 = vadd.s32 %v3321, %v3312
          %v3323 = vand.u32 %v3300, 65535
          %v3324 = vshrl.u32 %v3300, 16
          %v3325 = vand.u32 %v3295, 65535
          %v3326 = vshrl.u32 %v3295, 16
          %v3327 = vmul.u32 %v3323, %v3325
          %v3328 = vmul.u32 %v3323, %v3326
          %v3329 = vmul.u32 %v3324, %v3325
          %v3330 = vmul.u32 %v3324, %v3326
          %v3331 = vshll.u32 %v3328, 16
          %v3332 = vshrl.u32 %v3328, 16
          %v3333 = vshll.u32 %v3329, 16
          %v3334 = vshrl.u32 %v3329, 16
          %vm3335 = vc.u32 %v3327, %v3331
          %v3336 = vsel %vm3335, 1, 0
          %v3337 = vadd.s32 %v3327, %v3331
          %v3338 = vadd.s32 %v3330, %v3336
          %vm3339 = vc.u32 %v3337, %v3333
          %v3340 = vsel %vm3339, 1, 0
          %v3341 = vadd.s32 %v3337, %v3333
          %v3342 = vadd.s32 %v3338, %v3340
          %v3343 = vadd.s32 %v3342, %v3332
          %v3344 = vadd.s32 %v3343, %v3334
          %v3345 = vmul.u32 %v3300, %v3291
          %v3346 = vadd.s32 %v3322, %v3341
          %vm3347 = vc.u32 %v3322, %v3341
          %v3348 = vadd.s32 %v3344, 1
          %v3349 = vsel %vm3347, %v3348, %v3344
          %v3350 = vadd.s32 %v3345, %v3349
          %v3351 = vadd.s32 %v3350, 536870912
          %v3352 = vshrl.u32 %v3351, 30
          %v3353 = vshll.u32 %v3352, 30
          %v3354 = vsub.s32 %v3350, %v3353
          %vm3355 = vcmp.lt.s32.totalorder %v3354, 0
          %v3356 = vsub.s32 0, %v3354
          %v3357 = vsel %vm3355, %v3356, %v3354
          %v3358 = vclz %v3357
          %v3359 = vsub.s32 %v3358, 2
          %vm3360 = vcmp.gt.s32.totalorder 0, %v3359
          %v3361 = vsel %vm3360, 0, %v3359
          %v3362 = vsub.s32 32, %v3361
          %v3363 = vshll.u32 %v3354, %v3361
          %v3364 = vshrl.u32 %v3346, %v3362
          %v3365 = vor.u32 %v3363, %v3364
          %v3366 = vsub.s32 4294967266, %v3361
          %v3367 = vadd.s32 %v3366, 127
          %v3368 = vshll.u32 %v3367, 23
          %v3369 = vor.u32 4788187, %v3368
          %v3370 = vand.u32 2147483647, %v3369
          %v3372 = vcvt.s32.f32 %v3365
          %v3373 = vmul.f32 %v3372, %v3370
          %v3374 = vxor.u32 %v3373, 2147483648
          %v3375 = vsel %vm3254, %v3374, %v3373
          %v3376 = vsub.s32 4, %v3352
          %v3377 = vsel %vm3254, %v3376, %v3352
          %v3378 = vsel %vm3253, %v389, %v3375
          %v3379 = vsel %vm3253, 0, %v3377
          %v3380 = vmul.f32 %v3378, %v3378
          %v3381 = vmul.f32 %v3380, -0.001358992
          %v3382 = vadd.f32 %v3381, 0.041655596
          %v3383 = vmul.f32 %v3380, %v3382
          %v3384 = vadd.f32 %v3383, -0.4999988
          %v3385 = vmul.f32 %v3380, %v3384
          %v3386 = vadd.f32 1.0, %v3385
          %v3387 = vmul.f32 %v3378, %v3378
          %v3388 = vmul.f32 %v3387, -0.00019511016
          %v3389 = vadd.f32 %v3388, 0.008332121
          %v3390 = vmul.f32 %v3387, %v3389
          %v3391 = vadd.f32 %v3390, -0.16666654
          %v3392 = vmul.f32 %v3387, %v3391
          %v3393 = vadd.f32 %v3392, 1.0
          %v3394 = vmul.f32 %v3393, %v3378
          %vm3395 = vweird.f32 %v389
          %v3396 = vand.u32 %v3379, 3
          %vm3397 = vcmp.lt.s32.totalorder %v3396, 2
          %vm3398 = vcmp.eq.s32.totalorder %v3396, 0
          %v3399 = vxor.u32 %v3394, 2147483648
          %v3400 = vsel %vm3398, %v3386, %v3399
          %vm3401 = vcmp.eq.s32.totalorder %v3396, 2
          %v3402 = vxor.u32 %v3386, 2147483648
          %v3403 = vsel %vm3401, %v3402, %v3394
          %v3404 = vsel %vm3397, %v3400, %v3403
          %v3405 = vsel %vm3395, nan, %v3404
          %v3406 = vand.u32 2147483647, %v392
          %vm3407 = vcmp.le.f32.partialorder %v3406, 0.7853982
          %vm3408 = vcmp.lt.s32.totalorder %v392, 0
          %v3409 = vand.u32 %v392, 2139095040
          %v3410 = vshrl.u32 %v3409, 23
          %v3411 = vsub.s32 %v3410, 127
          %v3412 = vand.u32 2147483647, %v392
          %v3413 = vand.u32 %v3412, 8388607
          %v3414 = vor.u32 %v3413, 8388608
          %v3415 = vsub.s32 0, %v3414
          %v3416 = vadd.s32 %v3411, 1
          %vm3417 = vcmp.gt.s32.totalorder %v3416, 0
          %v3418 = vsel %vm3417, %v3416, 0
          %v3419 = vshrl.u32 %v3418, 5
          %v3420 = vand.u32 %v3418, 31
          %v3421 = vsub.s32 32, %v3420
          %v3422 = vshrl.u32 683565275, %v3421
          %v3423 = vshll.u32 683565275, %v3420
          %v3424 = vshrl.u32 2475754826, %v3421
          %v3425 = vor.u32 %v3423, %v3424
          %v3426 = vshll.u32 2475754826, %v3420
          %v3427 = vshrl.u32 2131351028, %v3421
          %v3428 = vor.u32 %v3426, %v3427
          %v3429 = vshll.u32 2131351028, %v3420
          %v3430 = vshrl.u32 2102212464, %v3421
          %v3431 = vor.u32 %v3429, %v3430
          %v3432 = vshll.u32 2102212464, %v3420
          %v3433 = vshrl.u32 920167782, %v3421
          %v3434 = vor.u32 %v3432, %v3433
          %v3435 = vshll.u32 920167782, %v3420
          %v3436 = vshrl.u32 1326507024, %v3421
          %v3437 = vor.u32 %v3435, %v3436
          %vm3438 = vcmp.lt.s32.totalorder %v3419, 1
          %vm3439 = vcmp.lt.s32.totalorder %v3419, 2
          %vm3440 = vcmp.lt.s32.totalorder %v3419, 3
          %vm3441 = vcmp.lt.s32.totalorder %v3419, 4
          %v3442 = vsel %vm3438, %v3422, %v3425
          %v3443 = vsel %vm3441, %v3431, 2102212464
          %v3444 = vsel %vm3440, %v3428, %v3443
          %v3445 = vsel %vm3439, %v3442, %v3444
          %v3446 = vsel %vm3438, %v3425, %v3428
          %v3447 = vsel %vm3441, %v3434, 920167782
          %v3448 = vsel %vm3440, %v3431, %v3447
          %v3449 = vsel %vm3439, %v3446, %v3448
          %v3450 = vsel %vm3438, %v3428, %v3431
          %v3451 = vsel %vm3441, %v3437, 1326507024
          %v3452 = vsel %vm3440, %v3434, %v3451
          %v3453 = vsel %vm3439, %v3450, %v3452
          %v3454 = vshll.u32 %v3414, 8
          %v3455 = vand.u32 %v3454, 65535
          %v3456 = vshrl.u32 %v3454, 16
          %v3457 = vand.u32 %v3453, 65535
          %v3458 = vshrl.u32 %v3453, 16
          %v3459 = vmul.u32 %v3455, %v3457
          %v3460 = vmul.u32 %v3455, %v3458
          %v3461 = vmul.u32 %v3456, %v3457
          %v3462 = vmul.u32 %v3456, %v3458
          %v3463 = vshll.u32 %v3460, 16
          %v3464 = vshrl.u32 %v3460, 16
          %v3465 = vshll.u32 %v3461, 16
          %v3466 = vshrl.u32 %v3461, 16
          %vm3467 = vc.u32 %v3459, %v3463
          %v3468 = vsel %vm3467, 1, 0
          %v3469 = vadd.s32 %v3459, %v3463
          %v3470 = vadd.s32 %v3462, %v3468
          %vm3471 = vc.u32 %v3469, %v3465
          %v3472 = vsel %vm3471, 1, 0
          %v3473 = vadd.s32 %v3469, %v3465
          %v3474 = vadd.s32 %v3470, %v3472
          %v3475 = vadd.s32 %v3474, %v3464
          %v3476 = vadd.s32 %v3475, %v3466
          %v3477 = vand.u32 %v3454, 65535
          %v3478 = vshrl.u32 %v3454, 16
          %v3479 = vand.u32 %v3449, 65535
          %v3480 = vshrl.u32 %v3449, 16
          %v3481 = vmul.u32 %v3477, %v3479
          %v3482 = vmul.u32 %v3477, %v3480
          %v3483 = vmul.u32 %v3478, %v3479
          %v3484 = vmul.u32 %v3478, %v3480
          %v3485 = vshll.u32 %v3482, 16
          %v3486 = vshrl.u32 %v3482, 16
          %v3487 = vshll.u32 %v3483, 16
          %v3488 = vshrl.u32 %v3483, 16
          %vm3489 = vc.u32 %v3481, %v3485
          %v3490 = vsel %vm3489, 1, 0
          %v3491 = vadd.s32 %v3481, %v3485
          %v3492 = vadd.s32 %v3484, %v3490
          %vm3493 = vc.u32 %v3491, %v3487
          %v3494 = vsel %vm3493, 1, 0
          %v3495 = vadd.s32 %v3491, %v3487
          %v3496 = vadd.s32 %v3492, %v3494
          %v3497 = vadd.s32 %v3496, %v3486
          %v3498 = vadd.s32 %v3497, %v3488
          %v3499 = vmul.u32 %v3454, %v3445
          %v3500 = vadd.s32 %v3476, %v3495
          %vm3501 = vc.u32 %v3476, %v3495
          %v3502 = vadd.s32 %v3498, 1
          %v3503 = vsel %vm3501, %v3502, %v3498
          %v3504 = vadd.s32 %v3499, %v3503
          %v3505 = vadd.s32 %v3504, 536870912
          %v3506 = vshrl.u32 %v3505, 30
          %v3507 = vshll.u32 %v3506, 30
          %v3508 = vsub.s32 %v3504, %v3507
          %vm3509 = vcmp.lt.s32.totalorder %v3508, 0
          %v3510 = vsub.s32 0, %v3508
          %v3511 = vsel %vm3509, %v3510, %v3508
          %v3512 = vclz %v3511
          %v3513 = vsub.s32 %v3512, 2
          %vm3514 = vcmp.gt.s32.totalorder 0, %v3513
          %v3515 = vsel %vm3514, 0, %v3513
          %v3516 = vsub.s32 32, %v3515
          %v3517 = vshll.u32 %v3508, %v3515
          %v3518 = vshrl.u32 %v3500, %v3516
          %v3519 = vor.u32 %v3517, %v3518
          %v3520 = vsub.s32 4294967266, %v3515
          %v3521 = vadd.s32 %v3520, 127
          %v3522 = vshll.u32 %v3521, 23
          %v3523 = vor.u32 4788187, %v3522
          %v3524 = vand.u32 2147483647, %v3523
          %v3526 = vcvt.s32.f32 %v3519
          %v3527 = vmul.f32 %v3526, %v3524
          %v3528 = vxor.u32 %v3527, 2147483648
          %v3529 = vsel %vm3408, %v3528, %v3527
          %v3530 = vsub.s32 4, %v3506
          %v3531 = vsel %vm3408, %v3530, %v3506
          %v3532 = vsel %vm3407, %v392, %v3529
          %v3533 = vsel %vm3407, 0, %v3531
          %v3534 = vmul.f32 %v3532, %v3532
          %v3535 = vmul.f32 %v3534, -0.001358992
          %v3536 = vadd.f32 %v3535, 0.041655596
          %v3537 = vmul.f32 %v3534, %v3536
          %v3538 = vadd.f32 %v3537, -0.4999988
          %v3539 = vmul.f32 %v3534, %v3538
          %v3540 = vadd.f32 1.0, %v3539
          %v3541 = vmul.f32 %v3532, %v3532
          %v3542 = vmul.f32 %v3541, -0.00019511016
          %v3543 = vadd.f32 %v3542, 0.008332121
          %v3544 = vmul.f32 %v3541, %v3543
          %v3545 = vadd.f32 %v3544, -0.16666654
          %v3546 = vmul.f32 %v3541, %v3545
          %v3547 = vadd.f32 %v3546, 1.0
          %v3548 = vmul.f32 %v3547, %v3532
          %vm3549 = vweird.f32 %v392
          %v3550 = vand.u32 %v3533, 3
          %vm3551 = vcmp.lt.s32.totalorder %v3550, 2
          %vm3552 = vcmp.eq.s32.totalorder %v3550, 0
          %v3553 = vxor.u32 %v3548, 2147483648
          %v3554 = vsel %vm3552, %v3540, %v3553
          %vm3555 = vcmp.eq.s32.totalorder %v3550, 2
          %v3556 = vxor.u32 %v3540, 2147483648
          %v3557 = vsel %vm3555, %v3556, %v3548
          %v3558 = vsel %vm3551, %v3554, %v3557
          %v3559 = vsel %vm3549, nan, %v3558
          %v3560 = vand.u32 2147483647, %v395
          %vm3561 = vcmp.le.f32.partialorder %v3560, 0.7853982
          %vm3562 = vcmp.lt.s32.totalorder %v395, 0
          %v3563 = vand.u32 %v395, 2139095040
          %v3564 = vshrl.u32 %v3563, 23
          %v3565 = vsub.s32 %v3564, 127
          %v3566 = vand.u32 2147483647, %v395
          %v3567 = vand.u32 %v3566, 8388607
          %v3568 = vor.u32 %v3567, 8388608
          %v3569 = vsub.s32 0, %v3568
          %v3570 = vadd.s32 %v3565, 1
          %vm3571 = vcmp.gt.s32.totalorder %v3570, 0
          %v3572 = vsel %vm3571, %v3570, 0
          %v3573 = vshrl.u32 %v3572, 5
          %v3574 = vand.u32 %v3572, 31
          %v3575 = vsub.s32 32, %v3574
          %v3576 = vshrl.u32 683565275, %v3575
          %v3577 = vshll.u32 683565275, %v3574
          %v3578 = vshrl.u32 2475754826, %v3575
          %v3579 = vor.u32 %v3577, %v3578
          %v3580 = vshll.u32 2475754826, %v3574
          %v3581 = vshrl.u32 2131351028, %v3575
          %v3582 = vor.u32 %v3580, %v3581
          %v3583 = vshll.u32 2131351028, %v3574
          %v3584 = vshrl.u32 2102212464, %v3575
          %v3585 = vor.u32 %v3583, %v3584
          %v3586 = vshll.u32 2102212464, %v3574
          %v3587 = vshrl.u32 920167782, %v3575
          %v3588 = vor.u32 %v3586, %v3587
          %v3589 = vshll.u32 920167782, %v3574
          %v3590 = vshrl.u32 1326507024, %v3575
          %v3591 = vor.u32 %v3589, %v3590
          %vm3592 = vcmp.lt.s32.totalorder %v3573, 1
          %vm3593 = vcmp.lt.s32.totalorder %v3573, 2
          %vm3594 = vcmp.lt.s32.totalorder %v3573, 3
          %vm3595 = vcmp.lt.s32.totalorder %v3573, 4
          %v3596 = vsel %vm3592, %v3576, %v3579
          %v3597 = vsel %vm3595, %v3585, 2102212464
          %v3598 = vsel %vm3594, %v3582, %v3597
          %v3599 = vsel %vm3593, %v3596, %v3598
          %v3600 = vsel %vm3592, %v3579, %v3582
          %v3601 = vsel %vm3595, %v3588, 920167782
          %v3602 = vsel %vm3594, %v3585, %v3601
          %v3603 = vsel %vm3593, %v3600, %v3602
          %v3604 = vsel %vm3592, %v3582, %v3585
          %v3605 = vsel %vm3595, %v3591, 1326507024
          %v3606 = vsel %vm3594, %v3588, %v3605
          %v3607 = vsel %vm3593, %v3604, %v3606
          %v3608 = vshll.u32 %v3568, 8
          %v3609 = vand.u32 %v3608, 65535
          %v3610 = vshrl.u32 %v3608, 16
          %v3611 = vand.u32 %v3607, 65535
          %v3612 = vshrl.u32 %v3607, 16
          %v3613 = vmul.u32 %v3609, %v3611
          %v3614 = vmul.u32 %v3609, %v3612
          %v3615 = vmul.u32 %v3610, %v3611
          %v3616 = vmul.u32 %v3610, %v3612
          %v3617 = vshll.u32 %v3614, 16
          %v3618 = vshrl.u32 %v3614, 16
          %v3619 = vshll.u32 %v3615, 16
          %v3620 = vshrl.u32 %v3615, 16
          %vm3621 = vc.u32 %v3613, %v3617
          %v3622 = vsel %vm3621, 1, 0
          %v3623 = vadd.s32 %v3613, %v3617
          %v3624 = vadd.s32 %v3616, %v3622
          %vm3625 = vc.u32 %v3623, %v3619
          %v3626 = vsel %vm3625, 1, 0
          %v3627 = vadd.s32 %v3623, %v3619
          %v3628 = vadd.s32 %v3624, %v3626
          %v3629 = vadd.s32 %v3628, %v3618
          %v3630 = vadd.s32 %v3629, %v3620
          %v3631 = vand.u32 %v3608, 65535
          %v3632 = vshrl.u32 %v3608, 16
          %v3633 = vand.u32 %v3603, 65535
          %v3634 = vshrl.u32 %v3603, 16
          %v3635 = vmul.u32 %v3631, %v3633
          %v3636 = vmul.u32 %v3631, %v3634
          %v3637 = vmul.u32 %v3632, %v3633
          %v3638 = vmul.u32 %v3632, %v3634
          %v3639 = vshll.u32 %v3636, 16
          %v3640 = vshrl.u32 %v3636, 16
          %v3641 = vshll.u32 %v3637, 16
          %v3642 = vshrl.u32 %v3637, 16
          %vm3643 = vc.u32 %v3635, %v3639
          %v3644 = vsel %vm3643, 1, 0
          %v3645 = vadd.s32 %v3635, %v3639
          %v3646 = vadd.s32 %v3638, %v3644
          %vm3647 = vc.u32 %v3645, %v3641
          %v3648 = vsel %vm3647, 1, 0
          %v3649 = vadd.s32 %v3645, %v3641
          %v3650 = vadd.s32 %v3646, %v3648
          %v3651 = vadd.s32 %v3650, %v3640
          %v3652 = vadd.s32 %v3651, %v3642
          %v3653 = vmul.u32 %v3608, %v3599
          %v3654 = vadd.s32 %v3630, %v3649
          %vm3655 = vc.u32 %v3630, %v3649
          %v3656 = vadd.s32 %v3652, 1
          %v3657 = vsel %vm3655, %v3656, %v3652
          %v3658 = vadd.s32 %v3653, %v3657
          %v3659 = vadd.s32 %v3658, 536870912
          %v3660 = vshrl.u32 %v3659, 30
          %v3661 = vshll.u32 %v3660, 30
          %v3662 = vsub.s32 %v3658, %v3661
          %vm3663 = vcmp.lt.s32.totalorder %v3662, 0
          %v3664 = vsub.s32 0, %v3662
          %v3665 = vsel %vm3663, %v3664, %v3662
          %v3666 = vclz %v3665
          %v3667 = vsub.s32 %v3666, 2
          %vm3668 = vcmp.gt.s32.totalorder 0, %v3667
          %v3669 = vsel %vm3668, 0, %v3667
          %v3670 = vsub.s32 32, %v3669
          %v3671 = vshll.u32 %v3662, %v3669
          %v3672 = vshrl.u32 %v3654, %v3670
          %v3673 = vor.u32 %v3671, %v3672
          %v3674 = vsub.s32 4294967266, %v3669
          %v3675 = vadd.s32 %v3674, 127
          %v3676 = vshll.u32 %v3675, 23
          %v3677 = vor.u32 4788187, %v3676
          %v3678 = vand.u32 2147483647, %v3677
          %v3680 = vcvt.s32.f32 %v3673
          %v3681 = vmul.f32 %v3680, %v3678
          %v3682 = vxor.u32 %v3681, 2147483648
          %v3683 = vsel %vm3562, %v3682, %v3681
          %v3684 = vsub.s32 4, %v3660
          %v3685 = vsel %vm3562, %v3684, %v3660
          %v3686 = vsel %vm3561, %v395, %v3683
          %v3687 = vsel %vm3561, 0, %v3685
          %v3688 = vmul.f32 %v3686, %v3686
          %v3689 = vmul.f32 %v3688, -0.001358992
          %v3690 = vadd.f32 %v3689, 0.041655596
          %v3691 = vmul.f32 %v3688, %v3690
          %v3692 = vadd.f32 %v3691, -0.4999988
          %v3693 = vmul.f32 %v3688, %v3692
          %v3694 = vadd.f32 1.0, %v3693
          %v3695 = vmul.f32 %v3686, %v3686
          %v3696 = vmul.f32 %v3695, -0.00019511016
          %v3697 = vadd.f32 %v3696, 0.008332121
          %v3698 = vmul.f32 %v3695, %v3697
          %v3699 = vadd.f32 %v3698, -0.16666654
          %v3700 = vmul.f32 %v3695, %v3699
          %v3701 = vadd.f32 %v3700, 1.0
          %v3702 = vmul.f32 %v3701, %v3686
          %vm3703 = vweird.f32 %v395
          %v3704 = vand.u32 %v3687, 3
          %vm3705 = vcmp.lt.s32.totalorder %v3704, 2
          %vm3706 = vcmp.eq.s32.totalorder %v3704, 0
          %v3707 = vxor.u32 %v3702, 2147483648
          %v3708 = vsel %vm3706, %v3694, %v3707
          %vm3709 = vcmp.eq.s32.totalorder %v3704, 2
          %v3710 = vxor.u32 %v3694, 2147483648
          %v3711 = vsel %vm3709, %v3710, %v3702
          %v3712 = vsel %vm3705, %v3708, %v3711
          %v3713 = vsel %vm3703, nan, %v3712
          %v3714 = vand.u32 2147483647, %v398
          %vm3715 = vcmp.le.f32.partialorder %v3714, 0.7853982
          %vm3716 = vcmp.lt.s32.totalorder %v398, 0
          %v3717 = vand.u32 %v398, 2139095040
          %v3718 = vshrl.u32 %v3717, 23
          %v3719 = vsub.s32 %v3718, 127
          %v3720 = vand.u32 2147483647, %v398
          %v3721 = vand.u32 %v3720, 8388607
          %v3722 = vor.u32 %v3721, 8388608
          %v3723 = vsub.s32 0, %v3722
          %v3724 = vadd.s32 %v3719, 1
          %vm3725 = vcmp.gt.s32.totalorder %v3724, 0
          %v3726 = vsel %vm3725, %v3724, 0
          %v3727 = vshrl.u32 %v3726, 5
          %v3728 = vand.u32 %v3726, 31
          %v3729 = vsub.s32 32, %v3728
          %v3730 = vshrl.u32 683565275, %v3729
          %v3731 = vshll.u32 683565275, %v3728
          %v3732 = vshrl.u32 2475754826, %v3729
          %v3733 = vor.u32 %v3731, %v3732
          %v3734 = vshll.u32 2475754826, %v3728
          %v3735 = vshrl.u32 2131351028, %v3729
          %v3736 = vor.u32 %v3734, %v3735
          %v3737 = vshll.u32 2131351028, %v3728
          %v3738 = vshrl.u32 2102212464, %v3729
          %v3739 = vor.u32 %v3737, %v3738
          %v3740 = vshll.u32 2102212464, %v3728
          %v3741 = vshrl.u32 920167782, %v3729
          %v3742 = vor.u32 %v3740, %v3741
          %v3743 = vshll.u32 920167782, %v3728
          %v3744 = vshrl.u32 1326507024, %v3729
          %v3745 = vor.u32 %v3743, %v3744
          %vm3746 = vcmp.lt.s32.totalorder %v3727, 1
          %vm3747 = vcmp.lt.s32.totalorder %v3727, 2
          %vm3748 = vcmp.lt.s32.totalorder %v3727, 3
          %vm3749 = vcmp.lt.s32.totalorder %v3727, 4
          %v3750 = vsel %vm3746, %v3730, %v3733
          %v3751 = vsel %vm3749, %v3739, 2102212464
          %v3752 = vsel %vm3748, %v3736, %v3751
          %v3753 = vsel %vm3747, %v3750, %v3752
          %v3754 = vsel %vm3746, %v3733, %v3736
          %v3755 = vsel %vm3749, %v3742, 920167782
          %v3756 = vsel %vm3748, %v3739, %v3755
          %v3757 = vsel %vm3747, %v3754, %v3756
          %v3758 = vsel %vm3746, %v3736, %v3739
          %v3759 = vsel %vm3749, %v3745, 1326507024
          %v3760 = vsel %vm3748, %v3742, %v3759
          %v3761 = vsel %vm3747, %v3758, %v3760
          %v3762 = vshll.u32 %v3722, 8
          %v3763 = vand.u32 %v3762, 65535
          %v3764 = vshrl.u32 %v3762, 16
          %v3765 = vand.u32 %v3761, 65535
          %v3766 = vshrl.u32 %v3761, 16
          %v3767 = vmul.u32 %v3763, %v3765
          %v3768 = vmul.u32 %v3763, %v3766
          %v3769 = vmul.u32 %v3764, %v3765
          %v3770 = vmul.u32 %v3764, %v3766
          %v3771 = vshll.u32 %v3768, 16
          %v3772 = vshrl.u32 %v3768, 16
          %v3773 = vshll.u32 %v3769, 16
          %v3774 = vshrl.u32 %v3769, 16
          %vm3775 = vc.u32 %v3767, %v3771
          %v3776 = vsel %vm3775, 1, 0
          %v3777 = vadd.s32 %v3767, %v3771
          %v3778 = vadd.s32 %v3770, %v3776
          %vm3779 = vc.u32 %v3777, %v3773
          %v3780 = vsel %vm3779, 1, 0
          %v3781 = vadd.s32 %v3777, %v3773
          %v3782 = vadd.s32 %v3778, %v3780
          %v3783 = vadd.s32 %v3782, %v3772
          %v3784 = vadd.s32 %v3783, %v3774
          %v3785 = vand.u32 %v3762, 65535
          %v3786 = vshrl.u32 %v3762, 16
          %v3787 = vand.u32 %v3757, 65535
          %v3788 = vshrl.u32 %v3757, 16
          %v3789 = vmul.u32 %v3785, %v3787
          %v3790 = vmul.u32 %v3785, %v3788
          %v3791 = vmul.u32 %v3786, %v3787
          %v3792 = vmul.u32 %v3786, %v3788
          %v3793 = vshll.u32 %v3790, 16
          %v3794 = vshrl.u32 %v3790, 16
          %v3795 = vshll.u32 %v3791, 16
          %v3796 = vshrl.u32 %v3791, 16
          %vm3797 = vc.u32 %v3789, %v3793
          %v3798 = vsel %vm3797, 1, 0
          %v3799 = vadd.s32 %v3789, %v3793
          %v3800 = vadd.s32 %v3792, %v3798
          %vm3801 = vc.u32 %v3799, %v3795
          %v3802 = vsel %vm3801, 1, 0
          %v3803 = vadd.s32 %v3799, %v3795
          %v3804 = vadd.s32 %v3800, %v3802
          %v3805 = vadd.s32 %v3804, %v3794
          %v3806 = vadd.s32 %v3805, %v3796
          %v3807 = vmul.u32 %v3762, %v3753
          %v3808 = vadd.s32 %v3784, %v3803
          %vm3809 = vc.u32 %v3784, %v3803
          %v3810 = vadd.s32 %v3806, 1
          %v3811 = vsel %vm3809, %v3810, %v3806
          %v3812 = vadd.s32 %v3807, %v3811
          %v3813 = vadd.s32 %v3812, 536870912
          %v3814 = vshrl.u32 %v3813, 30
          %v3815 = vshll.u32 %v3814, 30
          %v3816 = vsub.s32 %v3812, %v3815
          %vm3817 = vcmp.lt.s32.totalorder %v3816, 0
          %v3818 = vsub.s32 0, %v3816
          %v3819 = vsel %vm3817, %v3818, %v3816
          %v3820 = vclz %v3819
          %v3821 = vsub.s32 %v3820, 2
          %vm3822 = vcmp.gt.s32.totalorder 0, %v3821
          %v3823 = vsel %vm3822, 0, %v3821
          %v3824 = vsub.s32 32, %v3823
          %v3825 = vshll.u32 %v3816, %v3823
          %v3826 = vshrl.u32 %v3808, %v3824
          %v3827 = vor.u32 %v3825, %v3826
          %v3828 = vsub.s32 4294967266, %v3823
          %v3829 = vadd.s32 %v3828, 127
          %v3830 = vshll.u32 %v3829, 23
          %v3831 = vor.u32 4788187, %v3830
          %v3832 = vand.u32 2147483647, %v3831
          %v3834 = vcvt.s32.f32 %v3827
          %v3835 = vmul.f32 %v3834, %v3832
          %v3836 = vxor.u32 %v3835, 2147483648
          %v3837 = vsel %vm3716, %v3836, %v3835
          %v3838 = vsub.s32 4, %v3814
          %v3839 = vsel %vm3716, %v3838, %v3814
          %v3840 = vsel %vm3715, %v398, %v3837
          %v3841 = vsel %vm3715, 0, %v3839
          %v3842 = vmul.f32 %v3840, %v3840
          %v3843 = vmul.f32 %v3842, -0.001358992
          %v3844 = vadd.f32 %v3843, 0.041655596
          %v3845 = vmul.f32 %v3842, %v3844
          %v3846 = vadd.f32 %v3845, -0.4999988
          %v3847 = vmul.f32 %v3842, %v3846
          %v3848 = vadd.f32 1.0, %v3847
          %v3849 = vmul.f32 %v3840, %v3840
          %v3850 = vmul.f32 %v3849, -0.00019511016
          %v3851 = vadd.f32 %v3850, 0.008332121
          %v3852 = vmul.f32 %v3849, %v3851
          %v3853 = vadd.f32 %v3852, -0.16666654
          %v3854 = vmul.f32 %v3849, %v3853
          %v3855 = vadd.f32 %v3854, 1.0
          %v3856 = vmul.f32 %v3855, %v3840
          %vm3857 = vweird.f32 %v398
          %v3858 = vand.u32 %v3841, 3
          %vm3859 = vcmp.lt.s32.totalorder %v3858, 2
          %vm3860 = vcmp.eq.s32.totalorder %v3858, 0
          %v3861 = vxor.u32 %v3856, 2147483648
          %v3862 = vsel %vm3860, %v3848, %v3861
          %vm3863 = vcmp.eq.s32.totalorder %v3858, 2
          %v3864 = vxor.u32 %v3848, 2147483648
          %v3865 = vsel %vm3863, %v3864, %v3856
          %v3866 = vsel %vm3859, %v3862, %v3865
          %v3867 = vsel %vm3857, nan, %v3866
          %v3868 = vand.u32 2147483647, %v401
          %vm3869 = vcmp.le.f32.partialorder %v3868, 0.7853982
          %vm3870 = vcmp.lt.s32.totalorder %v401, 0
          %v3871 = vand.u32 %v401, 2139095040
          %v3872 = vshrl.u32 %v3871, 23
          %v3873 = vsub.s32 %v3872, 127
          %v3874 = vand.u32 2147483647, %v401
          %v3875 = vand.u32 %v3874, 8388607
          %v3876 = vor.u32 %v3875, 8388608
          %v3877 = vsub.s32 0, %v3876
          %v3878 = vadd.s32 %v3873, 1
          %vm3879 = vcmp.gt.s32.totalorder %v3878, 0
          %v3880 = vsel %vm3879, %v3878, 0
          %v3881 = vshrl.u32 %v3880, 5
          %v3882 = vand.u32 %v3880, 31
          %v3883 = vsub.s32 32, %v3882
          %v3884 = vshrl.u32 683565275, %v3883
          %v3885 = vshll.u32 683565275, %v3882
          %v3886 = vshrl.u32 2475754826, %v3883
          %v3887 = vor.u32 %v3885, %v3886
          %v3888 = vshll.u32 2475754826, %v3882
          %v3889 = vshrl.u32 2131351028, %v3883
          %v3890 = vor.u32 %v3888, %v3889
          %v3891 = vshll.u32 2131351028, %v3882
          %v3892 = vshrl.u32 2102212464, %v3883
          %v3893 = vor.u32 %v3891, %v3892
          %v3894 = vshll.u32 2102212464, %v3882
          %v3895 = vshrl.u32 920167782, %v3883
          %v3896 = vor.u32 %v3894, %v3895
          %v3897 = vshll.u32 920167782, %v3882
          %v3898 = vshrl.u32 1326507024, %v3883
          %v3899 = vor.u32 %v3897, %v3898
          %vm3900 = vcmp.lt.s32.totalorder %v3881, 1
          %vm3901 = vcmp.lt.s32.totalorder %v3881, 2
          %vm3902 = vcmp.lt.s32.totalorder %v3881, 3
          %vm3903 = vcmp.lt.s32.totalorder %v3881, 4
          %v3904 = vsel %vm3900, %v3884, %v3887
          %v3905 = vsel %vm3903, %v3893, 2102212464
          %v3906 = vsel %vm3902, %v3890, %v3905
          %v3907 = vsel %vm3901, %v3904, %v3906
          %v3908 = vsel %vm3900, %v3887, %v3890
          %v3909 = vsel %vm3903, %v3896, 920167782
          %v3910 = vsel %vm3902, %v3893, %v3909
          %v3911 = vsel %vm3901, %v3908, %v3910
          %v3912 = vsel %vm3900, %v3890, %v3893
          %v3913 = vsel %vm3903, %v3899, 1326507024
          %v3914 = vsel %vm3902, %v3896, %v3913
          %v3915 = vsel %vm3901, %v3912, %v3914
          %v3916 = vshll.u32 %v3876, 8
          %v3917 = vand.u32 %v3916, 65535
          %v3918 = vshrl.u32 %v3916, 16
          %v3919 = vand.u32 %v3915, 65535
          %v3920 = vshrl.u32 %v3915, 16
          %v3921 = vmul.u32 %v3917, %v3919
          %v3922 = vmul.u32 %v3917, %v3920
          %v3923 = vmul.u32 %v3918, %v3919
          %v3924 = vmul.u32 %v3918, %v3920
          %v3925 = vshll.u32 %v3922, 16
          %v3926 = vshrl.u32 %v3922, 16
          %v3927 = vshll.u32 %v3923, 16
          %v3928 = vshrl.u32 %v3923, 16
          %vm3929 = vc.u32 %v3921, %v3925
          %v3930 = vsel %vm3929, 1, 0
          %v3931 = vadd.s32 %v3921, %v3925
          %v3932 = vadd.s32 %v3924, %v3930
          %vm3933 = vc.u32 %v3931, %v3927
          %v3934 = vsel %vm3933, 1, 0
          %v3935 = vadd.s32 %v3931, %v3927
          %v3936 = vadd.s32 %v3932, %v3934
          %v3937 = vadd.s32 %v3936, %v3926
          %v3938 = vadd.s32 %v3937, %v3928
          %v3939 = vand.u32 %v3916, 65535
          %v3940 = vshrl.u32 %v3916, 16
          %v3941 = vand.u32 %v3911, 65535
          %v3942 = vshrl.u32 %v3911, 16
          %v3943 = vmul.u32 %v3939, %v3941
          %v3944 = vmul.u32 %v3939, %v3942
          %v3945 = vmul.u32 %v3940, %v3941
          %v3946 = vmul.u32 %v3940, %v3942
          %v3947 = vshll.u32 %v3944, 16
          %v3948 = vshrl.u32 %v3944, 16
          %v3949 = vshll.u32 %v3945, 16
          %v3950 = vshrl.u32 %v3945, 16
          %vm3951 = vc.u32 %v3943, %v3947
          %v3952 = vsel %vm3951, 1, 0
          %v3953 = vadd.s32 %v3943, %v3947
          %v3954 = vadd.s32 %v3946, %v3952
          %vm3955 = vc.u32 %v3953, %v3949
          %v3956 = vsel %vm3955, 1, 0
          %v3957 = vadd.s32 %v3953, %v3949
          %v3958 = vadd.s32 %v3954, %v3956
          %v3959 = vadd.s32 %v3958, %v3948
          %v3960 = vadd.s32 %v3959, %v3950
          %v3961 = vmul.u32 %v3916, %v3907
          %v3962 = vadd.s32 %v3938, %v3957
          %vm3963 = vc.u32 %v3938, %v3957
          %v3964 = vadd.s32 %v3960, 1
          %v3965 = vsel %vm3963, %v3964, %v3960
          %v3966 = vadd.s32 %v3961, %v3965
          %v3967 = vadd.s32 %v3966, 536870912
          %v3968 = vshrl.u32 %v3967, 30
          %v3969 = vshll.u32 %v3968, 30
          %v3970 = vsub.s32 %v3966, %v3969
          %vm3971 = vcmp.lt.s32.totalorder %v3970, 0
          %v3972 = vsub.s32 0, %v3970
          %v3973 = vsel %vm3971, %v3972, %v3970
          %v3974 = vclz %v3973
          %v3975 = vsub.s32 %v3974, 2
          %vm3976 = vcmp.gt.s32.totalorder 0, %v3975
          %v3977 = vsel %vm3976, 0, %v3975
          %v3978 = vsub.s32 32, %v3977
          %v3979 = vshll.u32 %v3970, %v3977
          %v3980 = vshrl.u32 %v3962, %v3978
          %v3981 = vor.u32 %v3979, %v3980
          %v3982 = vsub.s32 4294967266, %v3977
          %v3983 = vadd.s32 %v3982, 127
          %v3984 = vshll.u32 %v3983, 23
          %v3985 = vor.u32 4788187, %v3984
          %v3986 = vand.u32 2147483647, %v3985
          %v3988 = vcvt.s32.f32 %v3981
          %v3989 = vmul.f32 %v3988, %v3986
          %v3990 = vxor.u32 %v3989, 2147483648
          %v3991 = vsel %vm3870, %v3990, %v3989
          %v3992 = vsub.s32 4, %v3968
          %v3993 = vsel %vm3870, %v3992, %v3968
          %v3994 = vsel %vm3869, %v401, %v3991
          %v3995 = vsel %vm3869, 0, %v3993
          %v3996 = vmul.f32 %v3994, %v3994
          %v3997 = vmul.f32 %v3996, -0.001358992
          %v3998 = vadd.f32 %v3997, 0.041655596
          %v3999 = vmul.f32 %v3996, %v3998
          %v4000 = vadd.f32 %v3999, -0.4999988
          %v4001 = vmul.f32 %v3996, %v4000
          %v4002 = vadd.f32 1.0, %v4001
          %v4003 = vmul.f32 %v3994, %v3994
          %v4004 = vmul.f32 %v4003, -0.00019511016
          %v4005 = vadd.f32 %v4004, 0.008332121
          %v4006 = vmul.f32 %v4003, %v4005
          %v4007 = vadd.f32 %v4006, -0.16666654
          %v4008 = vmul.f32 %v4003, %v4007
          %v4009 = vadd.f32 %v4008, 1.0
          %v4010 = vmul.f32 %v4009, %v3994
          %vm4011 = vweird.f32 %v401
          %v4012 = vand.u32 %v3995, 3
          %vm4013 = vcmp.lt.s32.totalorder %v4012, 2
          %vm4014 = vcmp.eq.s32.totalorder %v4012, 0
          %v4015 = vxor.u32 %v4010, 2147483648
          %v4016 = vsel %vm4014, %v4002, %v4015
          %vm4017 = vcmp.eq.s32.totalorder %v4012, 2
          %v4018 = vxor.u32 %v4002, 2147483648
          %v4019 = vsel %vm4017, %v4018, %v4010
          %v4020 = vsel %vm4013, %v4016, %v4019
          %v4021 = vsel %vm4011, nan, %v4020
          %v4022 = vand.u32 2147483647, %v404
          %vm4023 = vcmp.le.f32.partialorder %v4022, 0.7853982
          %vm4024 = vcmp.lt.s32.totalorder %v404, 0
          %v4025 = vand.u32 %v404, 2139095040
          %v4026 = vshrl.u32 %v4025, 23
          %v4027 = vsub.s32 %v4026, 127
          %v4028 = vand.u32 2147483647, %v404
          %v4029 = vand.u32 %v4028, 8388607
          %v4030 = vor.u32 %v4029, 8388608
          %v4031 = vsub.s32 0, %v4030
          %v4032 = vadd.s32 %v4027, 1
          %vm4033 = vcmp.gt.s32.totalorder %v4032, 0
          %v4034 = vsel %vm4033, %v4032, 0
          %v4035 = vshrl.u32 %v4034, 5
          %v4036 = vand.u32 %v4034, 31
          %v4037 = vsub.s32 32, %v4036
          %v4038 = vshrl.u32 683565275, %v4037
          %v4039 = vshll.u32 683565275, %v4036
          %v4040 = vshrl.u32 2475754826, %v4037
          %v4041 = vor.u32 %v4039, %v4040
          %v4042 = vshll.u32 2475754826, %v4036
          %v4043 = vshrl.u32 2131351028, %v4037
          %v4044 = vor.u32 %v4042, %v4043
          %v4045 = vshll.u32 2131351028, %v4036
          %v4046 = vshrl.u32 2102212464, %v4037
          %v4047 = vor.u32 %v4045, %v4046
          %v4048 = vshll.u32 2102212464, %v4036
          %v4049 = vshrl.u32 920167782, %v4037
          %v4050 = vor.u32 %v4048, %v4049
          %v4051 = vshll.u32 920167782, %v4036
          %v4052 = vshrl.u32 1326507024, %v4037
          %v4053 = vor.u32 %v4051, %v4052
          %vm4054 = vcmp.lt.s32.totalorder %v4035, 1
          %vm4055 = vcmp.lt.s32.totalorder %v4035, 2
          %vm4056 = vcmp.lt.s32.totalorder %v4035, 3
          %vm4057 = vcmp.lt.s32.totalorder %v4035, 4
          %v4058 = vsel %vm4054, %v4038, %v4041
          %v4059 = vsel %vm4057, %v4047, 2102212464
          %v4060 = vsel %vm4056, %v4044, %v4059
          %v4061 = vsel %vm4055, %v4058, %v4060
          %v4062 = vsel %vm4054, %v4041, %v4044
          %v4063 = vsel %vm4057, %v4050, 920167782
          %v4064 = vsel %vm4056, %v4047, %v4063
          %v4065 = vsel %vm4055, %v4062, %v4064
          %v4066 = vsel %vm4054, %v4044, %v4047
          %v4067 = vsel %vm4057, %v4053, 1326507024
          %v4068 = vsel %vm4056, %v4050, %v4067
          %v4069 = vsel %vm4055, %v4066, %v4068
          %v4070 = vshll.u32 %v4030, 8
          %v4071 = vand.u32 %v4070, 65535
          %v4072 = vshrl.u32 %v4070, 16
          %v4073 = vand.u32 %v4069, 65535
          %v4074 = vshrl.u32 %v4069, 16
          %v4075 = vmul.u32 %v4071, %v4073
          %v4076 = vmul.u32 %v4071, %v4074
          %v4077 = vmul.u32 %v4072, %v4073
          %v4078 = vmul.u32 %v4072, %v4074
          %v4079 = vshll.u32 %v4076, 16
          %v4080 = vshrl.u32 %v4076, 16
          %v4081 = vshll.u32 %v4077, 16
          %v4082 = vshrl.u32 %v4077, 16
          %vm4083 = vc.u32 %v4075, %v4079
          %v4084 = vsel %vm4083, 1, 0
          %v4085 = vadd.s32 %v4075, %v4079
          %v4086 = vadd.s32 %v4078, %v4084
          %vm4087 = vc.u32 %v4085, %v4081
          %v4088 = vsel %vm4087, 1, 0
          %v4089 = vadd.s32 %v4085, %v4081
          %v4090 = vadd.s32 %v4086, %v4088
          %v4091 = vadd.s32 %v4090, %v4080
          %v4092 = vadd.s32 %v4091, %v4082
          %v4093 = vand.u32 %v4070, 65535
          %v4094 = vshrl.u32 %v4070, 16
          %v4095 = vand.u32 %v4065, 65535
          %v4096 = vshrl.u32 %v4065, 16
          %v4097 = vmul.u32 %v4093, %v4095
          %v4098 = vmul.u32 %v4093, %v4096
          %v4099 = vmul.u32 %v4094, %v4095
          %v4100 = vmul.u32 %v4094, %v4096
          %v4101 = vshll.u32 %v4098, 16
          %v4102 = vshrl.u32 %v4098, 16
          %v4103 = vshll.u32 %v4099, 16
          %v4104 = vshrl.u32 %v4099, 16
          %vm4105 = vc.u32 %v4097, %v4101
          %v4106 = vsel %vm4105, 1, 0
          %v4107 = vadd.s32 %v4097, %v4101
          %v4108 = vadd.s32 %v4100, %v4106
          %vm4109 = vc.u32 %v4107, %v4103
          %v4110 = vsel %vm4109, 1, 0
          %v4111 = vadd.s32 %v4107, %v4103
          %v4112 = vadd.s32 %v4108, %v4110
          %v4113 = vadd.s32 %v4112, %v4102
          %v4114 = vadd.s32 %v4113, %v4104
          %v4115 = vmul.u32 %v4070, %v4061
          %v4116 = vadd.s32 %v4092, %v4111
          %vm4117 = vc.u32 %v4092, %v4111
          %v4118 = vadd.s32 %v4114, 1
          %v4119 = vsel %vm4117, %v4118, %v4114
          %v4120 = vadd.s32 %v4115, %v4119
          %v4121 = vadd.s32 %v4120, 536870912
          %v4122 = vshrl.u32 %v4121, 30
          %v4123 = vshll.u32 %v4122, 30
          %v4124 = vsub.s32 %v4120, %v4123
          %vm4125 = vcmp.lt.s32.totalorder %v4124, 0
          %v4126 = vsub.s32 0, %v4124
          %v4127 = vsel %vm4125, %v4126, %v4124
          %v4128 = vclz %v4127
          %v4129 = vsub.s32 %v4128, 2
          %vm4130 = vcmp.gt.s32.totalorder 0, %v4129
          %v4131 = vsel %vm4130, 0, %v4129
          %v4132 = vsub.s32 32, %v4131
          %v4133 = vshll.u32 %v4124, %v4131
          %v4134 = vshrl.u32 %v4116, %v4132
          %v4135 = vor.u32 %v4133, %v4134
          %v4136 = vsub.s32 4294967266, %v4131
          %v4137 = vadd.s32 %v4136, 127
          %v4138 = vshll.u32 %v4137, 23
          %v4139 = vor.u32 4788187, %v4138
          %v4140 = vand.u32 2147483647, %v4139
          %v4142 = vcvt.s32.f32 %v4135
          %v4143 = vmul.f32 %v4142, %v4140
          %v4144 = vxor.u32 %v4143, 2147483648
          %v4145 = vsel %vm4024, %v4144, %v4143
          %v4146 = vsub.s32 4, %v4122
          %v4147 = vsel %vm4024, %v4146, %v4122
          %v4148 = vsel %vm4023, %v404, %v4145
          %v4149 = vsel %vm4023, 0, %v4147
          %v4150 = vmul.f32 %v4148, %v4148
          %v4151 = vmul.f32 %v4150, -0.001358992
          %v4152 = vadd.f32 %v4151, 0.041655596
          %v4153 = vmul.f32 %v4150, %v4152
          %v4154 = vadd.f32 %v4153, -0.4999988
          %v4155 = vmul.f32 %v4150, %v4154
          %v4156 = vadd.f32 1.0, %v4155
          %v4157 = vmul.f32 %v4148, %v4148
          %v4158 = vmul.f32 %v4157, -0.00019511016
          %v4159 = vadd.f32 %v4158, 0.008332121
          %v4160 = vmul.f32 %v4157, %v4159
          %v4161 = vadd.f32 %v4160, -0.16666654
          %v4162 = vmul.f32 %v4157, %v4161
          %v4163 = vadd.f32 %v4162, 1.0
          %v4164 = vmul.f32 %v4163, %v4148
          %vm4165 = vweird.f32 %v404
          %v4166 = vand.u32 %v4149, 3
          %vm4167 = vcmp.lt.s32.totalorder %v4166, 2
          %vm4168 = vcmp.eq.s32.totalorder %v4166, 0
          %v4169 = vxor.u32 %v4164, 2147483648
          %v4170 = vsel %vm4168, %v4156, %v4169
          %vm4171 = vcmp.eq.s32.totalorder %v4166, 2
          %v4172 = vxor.u32 %v4156, 2147483648
          %v4173 = vsel %vm4171, %v4172, %v4164
          %v4174 = vsel %vm4167, %v4170, %v4173
          %v4175 = vsel %vm4165, nan, %v4174
          %v4176 = vand.u32 2147483647, %v407
          %vm4177 = vcmp.le.f32.partialorder %v4176, 0.7853982
          %vm4178 = vcmp.lt.s32.totalorder %v407, 0
          %v4179 = vand.u32 %v407, 2139095040
          %v4180 = vshrl.u32 %v4179, 23
          %v4181 = vsub.s32 %v4180, 127
          %v4182 = vand.u32 2147483647, %v407
          %v4183 = vand.u32 %v4182, 8388607
          %v4184 = vor.u32 %v4183, 8388608
          %v4185 = vsub.s32 0, %v4184
          %v4186 = vadd.s32 %v4181, 1
          %vm4187 = vcmp.gt.s32.totalorder %v4186, 0
          %v4188 = vsel %vm4187, %v4186, 0
          %v4189 = vshrl.u32 %v4188, 5
          %v4190 = vand.u32 %v4188, 31
          %v4191 = vsub.s32 32, %v4190
          %v4192 = vshrl.u32 683565275, %v4191
          %v4193 = vshll.u32 683565275, %v4190
          %v4194 = vshrl.u32 2475754826, %v4191
          %v4195 = vor.u32 %v4193, %v4194
          %v4196 = vshll.u32 2475754826, %v4190
          %v4197 = vshrl.u32 2131351028, %v4191
          %v4198 = vor.u32 %v4196, %v4197
          %v4199 = vshll.u32 2131351028, %v4190
          %v4200 = vshrl.u32 2102212464, %v4191
          %v4201 = vor.u32 %v4199, %v4200
          %v4202 = vshll.u32 2102212464, %v4190
          %v4203 = vshrl.u32 920167782, %v4191
          %v4204 = vor.u32 %v4202, %v4203
          %v4205 = vshll.u32 920167782, %v4190
          %v4206 = vshrl.u32 1326507024, %v4191
          %v4207 = vor.u32 %v4205, %v4206
          %vm4208 = vcmp.lt.s32.totalorder %v4189, 1
          %vm4209 = vcmp.lt.s32.totalorder %v4189, 2
          %vm4210 = vcmp.lt.s32.totalorder %v4189, 3
          %vm4211 = vcmp.lt.s32.totalorder %v4189, 4
          %v4212 = vsel %vm4208, %v4192, %v4195
          %v4213 = vsel %vm4211, %v4201, 2102212464
          %v4214 = vsel %vm4210, %v4198, %v4213
          %v4215 = vsel %vm4209, %v4212, %v4214
          %v4216 = vsel %vm4208, %v4195, %v4198
          %v4217 = vsel %vm4211, %v4204, 920167782
          %v4218 = vsel %vm4210, %v4201, %v4217
          %v4219 = vsel %vm4209, %v4216, %v4218
          %v4220 = vsel %vm4208, %v4198, %v4201
          %v4221 = vsel %vm4211, %v4207, 1326507024
          %v4222 = vsel %vm4210, %v4204, %v4221
          %v4223 = vsel %vm4209, %v4220, %v4222
          %v4224 = vshll.u32 %v4184, 8
          %v4225 = vand.u32 %v4224, 65535
          %v4226 = vshrl.u32 %v4224, 16
          %v4227 = vand.u32 %v4223, 65535
          %v4228 = vshrl.u32 %v4223, 16
          %v4229 = vmul.u32 %v4225, %v4227
          %v4230 = vmul.u32 %v4225, %v4228
          %v4231 = vmul.u32 %v4226, %v4227
          %v4232 = vmul.u32 %v4226, %v4228
          %v4233 = vshll.u32 %v4230, 16
          %v4234 = vshrl.u32 %v4230, 16
          %v4235 = vshll.u32 %v4231, 16
          %v4236 = vshrl.u32 %v4231, 16
          %vm4237 = vc.u32 %v4229, %v4233
          %v4238 = vsel %vm4237, 1, 0
          %v4239 = vadd.s32 %v4229, %v4233
          %v4240 = vadd.s32 %v4232, %v4238
          %vm4241 = vc.u32 %v4239, %v4235
          %v4242 = vsel %vm4241, 1, 0
          %v4243 = vadd.s32 %v4239, %v4235
          %v4244 = vadd.s32 %v4240, %v4242
          %v4245 = vadd.s32 %v4244, %v4234
          %v4246 = vadd.s32 %v4245, %v4236
          %v4247 = vand.u32 %v4224, 65535
          %v4248 = vshrl.u32 %v4224, 16
          %v4249 = vand.u32 %v4219, 65535
          %v4250 = vshrl.u32 %v4219, 16
          %v4251 = vmul.u32 %v4247, %v4249
          %v4252 = vmul.u32 %v4247, %v4250
          %v4253 = vmul.u32 %v4248, %v4249
          %v4254 = vmul.u32 %v4248, %v4250
          %v4255 = vshll.u32 %v4252, 16
          %v4256 = vshrl.u32 %v4252, 16
          %v4257 = vshll.u32 %v4253, 16
          %v4258 = vshrl.u32 %v4253, 16
          %vm4259 = vc.u32 %v4251, %v4255
          %v4260 = vsel %vm4259, 1, 0
          %v4261 = vadd.s32 %v4251, %v4255
          %v4262 = vadd.s32 %v4254, %v4260
          %vm4263 = vc.u32 %v4261, %v4257
          %v4264 = vsel %vm4263, 1, 0
          %v4265 = vadd.s32 %v4261, %v4257
          %v4266 = vadd.s32 %v4262, %v4264
          %v4267 = vadd.s32 %v4266, %v4256
          %v4268 = vadd.s32 %v4267, %v4258
          %v4269 = vmul.u32 %v4224, %v4215
          %v4270 = vadd.s32 %v4246, %v4265
          %vm4271 = vc.u32 %v4246, %v4265
          %v4272 = vadd.s32 %v4268, 1
          %v4273 = vsel %vm4271, %v4272, %v4268
          %v4274 = vadd.s32 %v4269, %v4273
          %v4275 = vadd.s32 %v4274, 536870912
          %v4276 = vshrl.u32 %v4275, 30
          %v4277 = vshll.u32 %v4276, 30
          %v4278 = vsub.s32 %v4274, %v4277
          %vm4279 = vcmp.lt.s32.totalorder %v4278, 0
          %v4280 = vsub.s32 0, %v4278
          %v4281 = vsel %vm4279, %v4280, %v4278
          %v4282 = vclz %v4281
          %v4283 = vsub.s32 %v4282, 2
          %vm4284 = vcmp.gt.s32.totalorder 0, %v4283
          %v4285 = vsel %vm4284, 0, %v4283
          %v4286 = vsub.s32 32, %v4285
          %v4287 = vshll.u32 %v4278, %v4285
          %v4288 = vshrl.u32 %v4270, %v4286
          %v4289 = vor.u32 %v4287, %v4288
          %v4290 = vsub.s32 4294967266, %v4285
          %v4291 = vadd.s32 %v4290, 127
          %v4292 = vshll.u32 %v4291, 23
          %v4293 = vor.u32 4788187, %v4292
          %v4294 = vand.u32 2147483647, %v4293
          %v4296 = vcvt.s32.f32 %v4289
          %v4297 = vmul.f32 %v4296, %v4294
          %v4298 = vxor.u32 %v4297, 2147483648
          %v4299 = vsel %vm4178, %v4298, %v4297
          %v4300 = vsub.s32 4, %v4276
          %v4301 = vsel %vm4178, %v4300, %v4276
          %v4302 = vsel %vm4177, %v407, %v4299
          %v4303 = vsel %vm4177, 0, %v4301
          %v4304 = vmul.f32 %v4302, %v4302
          %v4305 = vmul.f32 %v4304, -0.001358992
          %v4306 = vadd.f32 %v4305, 0.041655596
          %v4307 = vmul.f32 %v4304, %v4306
          %v4308 = vadd.f32 %v4307, -0.4999988
          %v4309 = vmul.f32 %v4304, %v4308
          %v4310 = vadd.f32 1.0, %v4309
          %v4311 = vmul.f32 %v4302, %v4302
          %v4312 = vmul.f32 %v4311, -0.00019511016
          %v4313 = vadd.f32 %v4312, 0.008332121
          %v4314 = vmul.f32 %v4311, %v4313
          %v4315 = vadd.f32 %v4314, -0.16666654
          %v4316 = vmul.f32 %v4311, %v4315
          %v4317 = vadd.f32 %v4316, 1.0
          %v4318 = vmul.f32 %v4317, %v4302
          %vm4319 = vweird.f32 %v407
          %v4320 = vand.u32 %v4303, 3
          %vm4321 = vcmp.lt.s32.totalorder %v4320, 2
          %vm4322 = vcmp.eq.s32.totalorder %v4320, 0
          %v4323 = vxor.u32 %v4318, 2147483648
          %v4324 = vsel %vm4322, %v4310, %v4323
          %vm4325 = vcmp.eq.s32.totalorder %v4320, 2
          %v4326 = vxor.u32 %v4310, 2147483648
          %v4327 = vsel %vm4325, %v4326, %v4318
          %v4328 = vsel %vm4321, %v4324, %v4327
          %v4329 = vsel %vm4319, nan, %v4328
          %v4330 = vand.u32 2147483647, %v410
          %vm4331 = vcmp.le.f32.partialorder %v4330, 0.7853982
          %vm4332 = vcmp.lt.s32.totalorder %v410, 0
          %v4333 = vand.u32 %v410, 2139095040
          %v4334 = vshrl.u32 %v4333, 23
          %v4335 = vsub.s32 %v4334, 127
          %v4336 = vand.u32 2147483647, %v410
          %v4337 = vand.u32 %v4336, 8388607
          %v4338 = vor.u32 %v4337, 8388608
          %v4339 = vsub.s32 0, %v4338
          %v4340 = vadd.s32 %v4335, 1
          %vm4341 = vcmp.gt.s32.totalorder %v4340, 0
          %v4342 = vsel %vm4341, %v4340, 0
          %v4343 = vshrl.u32 %v4342, 5
          %v4344 = vand.u32 %v4342, 31
          %v4345 = vsub.s32 32, %v4344
          %v4346 = vshrl.u32 683565275, %v4345
          %v4347 = vshll.u32 683565275, %v4344
          %v4348 = vshrl.u32 2475754826, %v4345
          %v4349 = vor.u32 %v4347, %v4348
          %v4350 = vshll.u32 2475754826, %v4344
          %v4351 = vshrl.u32 2131351028, %v4345
          %v4352 = vor.u32 %v4350, %v4351
          %v4353 = vshll.u32 2131351028, %v4344
          %v4354 = vshrl.u32 2102212464, %v4345
          %v4355 = vor.u32 %v4353, %v4354
          %v4356 = vshll.u32 2102212464, %v4344
          %v4357 = vshrl.u32 920167782, %v4345
          %v4358 = vor.u32 %v4356, %v4357
          %v4359 = vshll.u32 920167782, %v4344
          %v4360 = vshrl.u32 1326507024, %v4345
          %v4361 = vor.u32 %v4359, %v4360
          %vm4362 = vcmp.lt.s32.totalorder %v4343, 1
          %vm4363 = vcmp.lt.s32.totalorder %v4343, 2
          %vm4364 = vcmp.lt.s32.totalorder %v4343, 3
          %vm4365 = vcmp.lt.s32.totalorder %v4343, 4
          %v4366 = vsel %vm4362, %v4346, %v4349
          %v4367 = vsel %vm4365, %v4355, 2102212464
          %v4368 = vsel %vm4364, %v4352, %v4367
          %v4369 = vsel %vm4363, %v4366, %v4368
          %v4370 = vsel %vm4362, %v4349, %v4352
          %v4371 = vsel %vm4365, %v4358, 920167782
          %v4372 = vsel %vm4364, %v4355, %v4371
          %v4373 = vsel %vm4363, %v4370, %v4372
          %v4374 = vsel %vm4362, %v4352, %v4355
          %v4375 = vsel %vm4365, %v4361, 1326507024
          %v4376 = vsel %vm4364, %v4358, %v4375
          %v4377 = vsel %vm4363, %v4374, %v4376
          %v4378 = vshll.u32 %v4338, 8
          %v4379 = vand.u32 %v4378, 65535
          %v4380 = vshrl.u32 %v4378, 16
          %v4381 = vand.u32 %v4377, 65535
          %v4382 = vshrl.u32 %v4377, 16
          %v4383 = vmul.u32 %v4379, %v4381
          %v4384 = vmul.u32 %v4379, %v4382
          %v4385 = vmul.u32 %v4380, %v4381
          %v4386 = vmul.u32 %v4380, %v4382
          %v4387 = vshll.u32 %v4384, 16
          %v4388 = vshrl.u32 %v4384, 16
          %v4389 = vshll.u32 %v4385, 16
          %v4390 = vshrl.u32 %v4385, 16
          %vm4391 = vc.u32 %v4383, %v4387
          %v4392 = vsel %vm4391, 1, 0
          %v4393 = vadd.s32 %v4383, %v4387
          %v4394 = vadd.s32 %v4386, %v4392
          %vm4395 = vc.u32 %v4393, %v4389
          %v4396 = vsel %vm4395, 1, 0
          %v4397 = vadd.s32 %v4393, %v4389
          %v4398 = vadd.s32 %v4394, %v4396
          %v4399 = vadd.s32 %v4398, %v4388
          %v4400 = vadd.s32 %v4399, %v4390
          %v4401 = vand.u32 %v4378, 65535
          %v4402 = vshrl.u32 %v4378, 16
          %v4403 = vand.u32 %v4373, 65535
          %v4404 = vshrl.u32 %v4373, 16
          %v4405 = vmul.u32 %v4401, %v4403
          %v4406 = vmul.u32 %v4401, %v4404
          %v4407 = vmul.u32 %v4402, %v4403
          %v4408 = vmul.u32 %v4402, %v4404
          %v4409 = vshll.u32 %v4406, 16
          %v4410 = vshrl.u32 %v4406, 16
          %v4411 = vshll.u32 %v4407, 16
          %v4412 = vshrl.u32 %v4407, 16
          %vm4413 = vc.u32 %v4405, %v4409
          %v4414 = vsel %vm4413, 1, 0
          %v4415 = vadd.s32 %v4405, %v4409
          %v4416 = vadd.s32 %v4408, %v4414
          %vm4417 = vc.u32 %v4415, %v4411
          %v4418 = vsel %vm4417, 1, 0
          %v4419 = vadd.s32 %v4415, %v4411
          %v4420 = vadd.s32 %v4416, %v4418
          %v4421 = vadd.s32 %v4420, %v4410
          %v4422 = vadd.s32 %v4421, %v4412
          %v4423 = vmul.u32 %v4378, %v4369
          %v4424 = vadd.s32 %v4400, %v4419
          %vm4425 = vc.u32 %v4400, %v4419
          %v4426 = vadd.s32 %v4422, 1
          %v4427 = vsel %vm4425, %v4426, %v4422
          %v4428 = vadd.s32 %v4423, %v4427
          %v4429 = vadd.s32 %v4428, 536870912
          %v4430 = vshrl.u32 %v4429, 30
          %v4431 = vshll.u32 %v4430, 30
          %v4432 = vsub.s32 %v4428, %v4431
          %vm4433 = vcmp.lt.s32.totalorder %v4432, 0
          %v4434 = vsub.s32 0, %v4432
          %v4435 = vsel %vm4433, %v4434, %v4432
          %v4436 = vclz %v4435
          %v4437 = vsub.s32 %v4436, 2
          %vm4438 = vcmp.gt.s32.totalorder 0, %v4437
          %v4439 = vsel %vm4438, 0, %v4437
          %v4440 = vsub.s32 32, %v4439
          %v4441 = vshll.u32 %v4432, %v4439
          %v4442 = vshrl.u32 %v4424, %v4440
          %v4443 = vor.u32 %v4441, %v4442
          %v4444 = vsub.s32 4294967266, %v4439
          %v4445 = vadd.s32 %v4444, 127
          %v4446 = vshll.u32 %v4445, 23
          %v4447 = vor.u32 4788187, %v4446
          %v4448 = vand.u32 2147483647, %v4447
          %v4450 = vcvt.s32.f32 %v4443
          %v4451 = vmul.f32 %v4450, %v4448
          %v4452 = vxor.u32 %v4451, 2147483648
          %v4453 = vsel %vm4332, %v4452, %v4451
          %v4454 = vsub.s32 4, %v4430
          %v4455 = vsel %vm4332, %v4454, %v4430
          %v4456 = vsel %vm4331, %v410, %v4453
          %v4457 = vsel %vm4331, 0, %v4455
          %v4458 = vmul.f32 %v4456, %v4456
          %v4459 = vmul.f32 %v4458, -0.001358992
          %v4460 = vadd.f32 %v4459, 0.041655596
          %v4461 = vmul.f32 %v4458, %v4460
          %v4462 = vadd.f32 %v4461, -0.4999988
          %v4463 = vmul.f32 %v4458, %v4462
          %v4464 = vadd.f32 1.0, %v4463
          %v4465 = vmul.f32 %v4456, %v4456
          %v4466 = vmul.f32 %v4465, -0.00019511016
          %v4467 = vadd.f32 %v4466, 0.008332121
          %v4468 = vmul.f32 %v4465, %v4467
          %v4469 = vadd.f32 %v4468, -0.16666654
          %v4470 = vmul.f32 %v4465, %v4469
          %v4471 = vadd.f32 %v4470, 1.0
          %v4472 = vmul.f32 %v4471, %v4456
          %vm4473 = vweird.f32 %v410
          %v4474 = vand.u32 %v4457, 3
          %vm4475 = vcmp.lt.s32.totalorder %v4474, 2
          %vm4476 = vcmp.eq.s32.totalorder %v4474, 0
          %v4477 = vxor.u32 %v4472, 2147483648
          %v4478 = vsel %vm4476, %v4464, %v4477
          %vm4479 = vcmp.eq.s32.totalorder %v4474, 2
          %v4480 = vxor.u32 %v4464, 2147483648
          %v4481 = vsel %vm4479, %v4480, %v4472
          %v4482 = vsel %vm4475, %v4478, %v4481
          %v4483 = vsel %vm4473, nan, %v4482
          %v4484 = vand.u32 2147483647, %v413
          %vm4485 = vcmp.le.f32.partialorder %v4484, 0.7853982
          %vm4486 = vcmp.lt.s32.totalorder %v413, 0
          %v4487 = vand.u32 %v413, 2139095040
          %v4488 = vshrl.u32 %v4487, 23
          %v4489 = vsub.s32 %v4488, 127
          %v4490 = vand.u32 2147483647, %v413
          %v4491 = vand.u32 %v4490, 8388607
          %v4492 = vor.u32 %v4491, 8388608
          %v4493 = vsub.s32 0, %v4492
          %v4494 = vadd.s32 %v4489, 1
          %vm4495 = vcmp.gt.s32.totalorder %v4494, 0
          %v4496 = vsel %vm4495, %v4494, 0
          %v4497 = vshrl.u32 %v4496, 5
          %v4498 = vand.u32 %v4496, 31
          %v4499 = vsub.s32 32, %v4498
          %v4500 = vshrl.u32 683565275, %v4499
          %v4501 = vshll.u32 683565275, %v4498
          %v4502 = vshrl.u32 2475754826, %v4499
          %v4503 = vor.u32 %v4501, %v4502
          %v4504 = vshll.u32 2475754826, %v4498
          %v4505 = vshrl.u32 2131351028, %v4499
          %v4506 = vor.u32 %v4504, %v4505
          %v4507 = vshll.u32 2131351028, %v4498
          %v4508 = vshrl.u32 2102212464, %v4499
          %v4509 = vor.u32 %v4507, %v4508
          %v4510 = vshll.u32 2102212464, %v4498
          %v4511 = vshrl.u32 920167782, %v4499
          %v4512 = vor.u32 %v4510, %v4511
          %v4513 = vshll.u32 920167782, %v4498
          %v4514 = vshrl.u32 1326507024, %v4499
          %v4515 = vor.u32 %v4513, %v4514
          %vm4516 = vcmp.lt.s32.totalorder %v4497, 1
          %vm4517 = vcmp.lt.s32.totalorder %v4497, 2
          %vm4518 = vcmp.lt.s32.totalorder %v4497, 3
          %vm4519 = vcmp.lt.s32.totalorder %v4497, 4
          %v4520 = vsel %vm4516, %v4500, %v4503
          %v4521 = vsel %vm4519, %v4509, 2102212464
          %v4522 = vsel %vm4518, %v4506, %v4521
          %v4523 = vsel %vm4517, %v4520, %v4522
          %v4524 = vsel %vm4516, %v4503, %v4506
          %v4525 = vsel %vm4519, %v4512, 920167782
          %v4526 = vsel %vm4518, %v4509, %v4525
          %v4527 = vsel %vm4517, %v4524, %v4526
          %v4528 = vsel %vm4516, %v4506, %v4509
          %v4529 = vsel %vm4519, %v4515, 1326507024
          %v4530 = vsel %vm4518, %v4512, %v4529
          %v4531 = vsel %vm4517, %v4528, %v4530
          %v4532 = vshll.u32 %v4492, 8
          %v4533 = vand.u32 %v4532, 65535
          %v4534 = vshrl.u32 %v4532, 16
          %v4535 = vand.u32 %v4531, 65535
          %v4536 = vshrl.u32 %v4531, 16
          %v4537 = vmul.u32 %v4533, %v4535
          %v4538 = vmul.u32 %v4533, %v4536
          %v4539 = vmul.u32 %v4534, %v4535
          %v4540 = vmul.u32 %v4534, %v4536
          %v4541 = vshll.u32 %v4538, 16
          %v4542 = vshrl.u32 %v4538, 16
          %v4543 = vshll.u32 %v4539, 16
          %v4544 = vshrl.u32 %v4539, 16
          %vm4545 = vc.u32 %v4537, %v4541
          %v4546 = vsel %vm4545, 1, 0
          %v4547 = vadd.s32 %v4537, %v4541
          %v4548 = vadd.s32 %v4540, %v4546
          %vm4549 = vc.u32 %v4547, %v4543
          %v4550 = vsel %vm4549, 1, 0
          %v4551 = vadd.s32 %v4547, %v4543
          %v4552 = vadd.s32 %v4548, %v4550
          %v4553 = vadd.s32 %v4552, %v4542
          %v4554 = vadd.s32 %v4553, %v4544
          %v4555 = vand.u32 %v4532, 65535
          %v4556 = vshrl.u32 %v4532, 16
          %v4557 = vand.u32 %v4527, 65535
          %v4558 = vshrl.u32 %v4527, 16
          %v4559 = vmul.u32 %v4555, %v4557
          %v4560 = vmul.u32 %v4555, %v4558
          %v4561 = vmul.u32 %v4556, %v4557
          %v4562 = vmul.u32 %v4556, %v4558
          %v4563 = vshll.u32 %v4560, 16
          %v4564 = vshrl.u32 %v4560, 16
          %v4565 = vshll.u32 %v4561, 16
          %v4566 = vshrl.u32 %v4561, 16
          %vm4567 = vc.u32 %v4559, %v4563
          %v4568 = vsel %vm4567, 1, 0
          %v4569 = vadd.s32 %v4559, %v4563
          %v4570 = vadd.s32 %v4562, %v4568
          %vm4571 = vc.u32 %v4569, %v4565
          %v4572 = vsel %vm4571, 1, 0
          %v4573 = vadd.s32 %v4569, %v4565
          %v4574 = vadd.s32 %v4570, %v4572
          %v4575 = vadd.s32 %v4574, %v4564
          %v4576 = vadd.s32 %v4575, %v4566
          %v4577 = vmul.u32 %v4532, %v4523
          %v4578 = vadd.s32 %v4554, %v4573
          %vm4579 = vc.u32 %v4554, %v4573
          %v4580 = vadd.s32 %v4576, 1
          %v4581 = vsel %vm4579, %v4580, %v4576
          %v4582 = vadd.s32 %v4577, %v4581
          %v4583 = vadd.s32 %v4582, 536870912
          %v4584 = vshrl.u32 %v4583, 30
          %v4585 = vshll.u32 %v4584, 30
          %v4586 = vsub.s32 %v4582, %v4585
          %vm4587 = vcmp.lt.s32.totalorder %v4586, 0
          %v4588 = vsub.s32 0, %v4586
          %v4589 = vsel %vm4587, %v4588, %v4586
          %v4590 = vclz %v4589
          %v4591 = vsub.s32 %v4590, 2
          %vm4592 = vcmp.gt.s32.totalorder 0, %v4591
          %v4593 = vsel %vm4592, 0, %v4591
          %v4594 = vsub.s32 32, %v4593
          %v4595 = vshll.u32 %v4586, %v4593
          %v4596 = vshrl.u32 %v4578, %v4594
          %v4597 = vor.u32 %v4595, %v4596
          %v4598 = vsub.s32 4294967266, %v4593
          %v4599 = vadd.s32 %v4598, 127
          %v4600 = vshll.u32 %v4599, 23
          %v4601 = vor.u32 4788187, %v4600
          %v4602 = vand.u32 2147483647, %v4601
          %v4604 = vcvt.s32.f32 %v4597
          %v4605 = vmul.f32 %v4604, %v4602
          %v4606 = vxor.u32 %v4605, 2147483648
          %v4607 = vsel %vm4486, %v4606, %v4605
          %v4608 = vsub.s32 4, %v4584
          %v4609 = vsel %vm4486, %v4608, %v4584
          %v4610 = vsel %vm4485, %v413, %v4607
          %v4611 = vsel %vm4485, 0, %v4609
          %v4612 = vmul.f32 %v4610, %v4610
          %v4613 = vmul.f32 %v4612, -0.001358992
          %v4614 = vadd.f32 %v4613, 0.041655596
          %v4615 = vmul.f32 %v4612, %v4614
          %v4616 = vadd.f32 %v4615, -0.4999988
          %v4617 = vmul.f32 %v4612, %v4616
          %v4618 = vadd.f32 1.0, %v4617
          %v4619 = vmul.f32 %v4610, %v4610
          %v4620 = vmul.f32 %v4619, -0.00019511016
          %v4621 = vadd.f32 %v4620, 0.008332121
          %v4622 = vmul.f32 %v4619, %v4621
          %v4623 = vadd.f32 %v4622, -0.16666654
          %v4624 = vmul.f32 %v4619, %v4623
          %v4625 = vadd.f32 %v4624, 1.0
          %v4626 = vmul.f32 %v4625, %v4610
          %vm4627 = vweird.f32 %v413
          %v4628 = vand.u32 %v4611, 3
          %vm4629 = vcmp.lt.s32.totalorder %v4628, 2
          %vm4630 = vcmp.eq.s32.totalorder %v4628, 0
          %v4631 = vxor.u32 %v4626, 2147483648
          %v4632 = vsel %vm4630, %v4618, %v4631
          %vm4633 = vcmp.eq.s32.totalorder %v4628, 2
          %v4634 = vxor.u32 %v4618, 2147483648
          %v4635 = vsel %vm4633, %v4634, %v4626
          %v4636 = vsel %vm4629, %v4632, %v4635
          %v4637 = vsel %vm4627, nan, %v4636
          %v4638 = vand.u32 2147483647, %v416
          %vm4639 = vcmp.le.f32.partialorder %v4638, 0.7853982
          %vm4640 = vcmp.lt.s32.totalorder %v416, 0
          %v4641 = vand.u32 %v416, 2139095040
          %v4642 = vshrl.u32 %v4641, 23
          %v4643 = vsub.s32 %v4642, 127
          %v4644 = vand.u32 2147483647, %v416
          %v4645 = vand.u32 %v4644, 8388607
          %v4646 = vor.u32 %v4645, 8388608
          %v4647 = vsub.s32 0, %v4646
          %v4648 = vadd.s32 %v4643, 1
          %vm4649 = vcmp.gt.s32.totalorder %v4648, 0
          %v4650 = vsel %vm4649, %v4648, 0
          %v4651 = vshrl.u32 %v4650, 5
          %v4652 = vand.u32 %v4650, 31
          %v4653 = vsub.s32 32, %v4652
          %v4654 = vshrl.u32 683565275, %v4653
          %v4655 = vshll.u32 683565275, %v4652
          %v4656 = vshrl.u32 2475754826, %v4653
          %v4657 = vor.u32 %v4655, %v4656
          %v4658 = vshll.u32 2475754826, %v4652
          %v4659 = vshrl.u32 2131351028, %v4653
          %v4660 = vor.u32 %v4658, %v4659
          %v4661 = vshll.u32 2131351028, %v4652
          %v4662 = vshrl.u32 2102212464, %v4653
          %v4663 = vor.u32 %v4661, %v4662
          %v4664 = vshll.u32 2102212464, %v4652
          %v4665 = vshrl.u32 920167782, %v4653
          %v4666 = vor.u32 %v4664, %v4665
          %v4667 = vshll.u32 920167782, %v4652
          %v4668 = vshrl.u32 1326507024, %v4653
          %v4669 = vor.u32 %v4667, %v4668
          %vm4670 = vcmp.lt.s32.totalorder %v4651, 1
          %vm4671 = vcmp.lt.s32.totalorder %v4651, 2
          %vm4672 = vcmp.lt.s32.totalorder %v4651, 3
          %vm4673 = vcmp.lt.s32.totalorder %v4651, 4
          %v4674 = vsel %vm4670, %v4654, %v4657
          %v4675 = vsel %vm4673, %v4663, 2102212464
          %v4676 = vsel %vm4672, %v4660, %v4675
          %v4677 = vsel %vm4671, %v4674, %v4676
          %v4678 = vsel %vm4670, %v4657, %v4660
          %v4679 = vsel %vm4673, %v4666, 920167782
          %v4680 = vsel %vm4672, %v4663, %v4679
          %v4681 = vsel %vm4671, %v4678, %v4680
          %v4682 = vsel %vm4670, %v4660, %v4663
          %v4683 = vsel %vm4673, %v4669, 1326507024
          %v4684 = vsel %vm4672, %v4666, %v4683
          %v4685 = vsel %vm4671, %v4682, %v4684
          %v4686 = vshll.u32 %v4646, 8
          %v4687 = vand.u32 %v4686, 65535
          %v4688 = vshrl.u32 %v4686, 16
          %v4689 = vand.u32 %v4685, 65535
          %v4690 = vshrl.u32 %v4685, 16
          %v4691 = vmul.u32 %v4687, %v4689
          %v4692 = vmul.u32 %v4687, %v4690
          %v4693 = vmul.u32 %v4688, %v4689
          %v4694 = vmul.u32 %v4688, %v4690
          %v4695 = vshll.u32 %v4692, 16
          %v4696 = vshrl.u32 %v4692, 16
          %v4697 = vshll.u32 %v4693, 16
          %v4698 = vshrl.u32 %v4693, 16
          %vm4699 = vc.u32 %v4691, %v4695
          %v4700 = vsel %vm4699, 1, 0
          %v4701 = vadd.s32 %v4691, %v4695
          %v4702 = vadd.s32 %v4694, %v4700
          %vm4703 = vc.u32 %v4701, %v4697
          %v4704 = vsel %vm4703, 1, 0
          %v4705 = vadd.s32 %v4701, %v4697
          %v4706 = vadd.s32 %v4702, %v4704
          %v4707 = vadd.s32 %v4706, %v4696
          %v4708 = vadd.s32 %v4707, %v4698
          %v4709 = vand.u32 %v4686, 65535
          %v4710 = vshrl.u32 %v4686, 16
          %v4711 = vand.u32 %v4681, 65535
          %v4712 = vshrl.u32 %v4681, 16
          %v4713 = vmul.u32 %v4709, %v4711
          %v4714 = vmul.u32 %v4709, %v4712
          %v4715 = vmul.u32 %v4710, %v4711
          %v4716 = vmul.u32 %v4710, %v4712
          %v4717 = vshll.u32 %v4714, 16
          %v4718 = vshrl.u32 %v4714, 16
          %v4719 = vshll.u32 %v4715, 16
          %v4720 = vshrl.u32 %v4715, 16
          %vm4721 = vc.u32 %v4713, %v4717
          %v4722 = vsel %vm4721, 1, 0
          %v4723 = vadd.s32 %v4713, %v4717
          %v4724 = vadd.s32 %v4716, %v4722
          %vm4725 = vc.u32 %v4723, %v4719
          %v4726 = vsel %vm4725, 1, 0
          %v4727 = vadd.s32 %v4723, %v4719
          %v4728 = vadd.s32 %v4724, %v4726
          %v4729 = vadd.s32 %v4728, %v4718
          %v4730 = vadd.s32 %v4729, %v4720
          %v4731 = vmul.u32 %v4686, %v4677
          %v4732 = vadd.s32 %v4708, %v4727
          %vm4733 = vc.u32 %v4708, %v4727
          %v4734 = vadd.s32 %v4730, 1
          %v4735 = vsel %vm4733, %v4734, %v4730
          %v4736 = vadd.s32 %v4731, %v4735
          %v4737 = vadd.s32 %v4736, 536870912
          %v4738 = vshrl.u32 %v4737, 30
          %v4739 = vshll.u32 %v4738, 30
          %v4740 = vsub.s32 %v4736, %v4739
          %vm4741 = vcmp.lt.s32.totalorder %v4740, 0
          %v4742 = vsub.s32 0, %v4740
          %v4743 = vsel %vm4741, %v4742, %v4740
          %v4744 = vclz %v4743
          %v4745 = vsub.s32 %v4744, 2
          %vm4746 = vcmp.gt.s32.totalorder 0, %v4745
          %v4747 = vsel %vm4746, 0, %v4745
          %v4748 = vsub.s32 32, %v4747
          %v4749 = vshll.u32 %v4740, %v4747
          %v4750 = vshrl.u32 %v4732, %v4748
          %v4751 = vor.u32 %v4749, %v4750
          %v4752 = vsub.s32 4294967266, %v4747
          %v4753 = vadd.s32 %v4752, 127
          %v4754 = vshll.u32 %v4753, 23
          %v4755 = vor.u32 4788187, %v4754
          %v4756 = vand.u32 2147483647, %v4755
          %v4758 = vcvt.s32.f32 %v4751
          %v4759 = vmul.f32 %v4758, %v4756
          %v4760 = vxor.u32 %v4759, 2147483648
          %v4761 = vsel %vm4640, %v4760, %v4759
          %v4762 = vsub.s32 4, %v4738
          %v4763 = vsel %vm4640, %v4762, %v4738
          %v4764 = vsel %vm4639, %v416, %v4761
          %v4765 = vsel %vm4639, 0, %v4763
          %v4766 = vmul.f32 %v4764, %v4764
          %v4767 = vmul.f32 %v4766, -0.001358992
          %v4768 = vadd.f32 %v4767, 0.041655596
          %v4769 = vmul.f32 %v4766, %v4768
          %v4770 = vadd.f32 %v4769, -0.4999988
          %v4771 = vmul.f32 %v4766, %v4770
          %v4772 = vadd.f32 1.0, %v4771
          %v4773 = vmul.f32 %v4764, %v4764
          %v4774 = vmul.f32 %v4773, -0.00019511016
          %v4775 = vadd.f32 %v4774, 0.008332121
          %v4776 = vmul.f32 %v4773, %v4775
          %v4777 = vadd.f32 %v4776, -0.16666654
          %v4778 = vmul.f32 %v4773, %v4777
          %v4779 = vadd.f32 %v4778, 1.0
          %v4780 = vmul.f32 %v4779, %v4764
          %vm4781 = vweird.f32 %v416
          %v4782 = vand.u32 %v4765, 3
          %vm4783 = vcmp.lt.s32.totalorder %v4782, 2
          %vm4784 = vcmp.eq.s32.totalorder %v4782, 0
          %v4785 = vxor.u32 %v4780, 2147483648
          %v4786 = vsel %vm4784, %v4772, %v4785
          %vm4787 = vcmp.eq.s32.totalorder %v4782, 2
          %v4788 = vxor.u32 %v4772, 2147483648
          %v4789 = vsel %vm4787, %v4788, %v4780
          %v4790 = vsel %vm4783, %v4786, %v4789
          %v4791 = vsel %vm4781, nan, %v4790
          %v4792 = vand.u32 2147483647, %v419
          %vm4793 = vcmp.le.f32.partialorder %v4792, 0.7853982
          %vm4794 = vcmp.lt.s32.totalorder %v419, 0
          %v4795 = vand.u32 %v419, 2139095040
          %v4796 = vshrl.u32 %v4795, 23
          %v4797 = vsub.s32 %v4796, 127
          %v4798 = vand.u32 2147483647, %v419
          %v4799 = vand.u32 %v4798, 8388607
          %v4800 = vor.u32 %v4799, 8388608
          %v4801 = vsub.s32 0, %v4800
          %v4802 = vadd.s32 %v4797, 1
          %vm4803 = vcmp.gt.s32.totalorder %v4802, 0
          %v4804 = vsel %vm4803, %v4802, 0
          %v4805 = vshrl.u32 %v4804, 5
          %v4806 = vand.u32 %v4804, 31
          %v4807 = vsub.s32 32, %v4806
          %v4808 = vshrl.u32 683565275, %v4807
          %v4809 = vshll.u32 683565275, %v4806
          %v4810 = vshrl.u32 2475754826, %v4807
          %v4811 = vor.u32 %v4809, %v4810
          %v4812 = vshll.u32 2475754826, %v4806
          %v4813 = vshrl.u32 2131351028, %v4807
          %v4814 = vor.u32 %v4812, %v4813
          %v4815 = vshll.u32 2131351028, %v4806
          %v4816 = vshrl.u32 2102212464, %v4807
          %v4817 = vor.u32 %v4815, %v4816
          %v4818 = vshll.u32 2102212464, %v4806
          %v4819 = vshrl.u32 920167782, %v4807
          %v4820 = vor.u32 %v4818, %v4819
          %v4821 = vshll.u32 920167782, %v4806
          %v4822 = vshrl.u32 1326507024, %v4807
          %v4823 = vor.u32 %v4821, %v4822
          %vm4824 = vcmp.lt.s32.totalorder %v4805, 1
          %vm4825 = vcmp.lt.s32.totalorder %v4805, 2
          %vm4826 = vcmp.lt.s32.totalorder %v4805, 3
          %vm4827 = vcmp.lt.s32.totalorder %v4805, 4
          %v4828 = vsel %vm4824, %v4808, %v4811
          %v4829 = vsel %vm4827, %v4817, 2102212464
          %v4830 = vsel %vm4826, %v4814, %v4829
          %v4831 = vsel %vm4825, %v4828, %v4830
          %v4832 = vsel %vm4824, %v4811, %v4814
          %v4833 = vsel %vm4827, %v4820, 920167782
          %v4834 = vsel %vm4826, %v4817, %v4833
          %v4835 = vsel %vm4825, %v4832, %v4834
          %v4836 = vsel %vm4824, %v4814, %v4817
          %v4837 = vsel %vm4827, %v4823, 1326507024
          %v4838 = vsel %vm4826, %v4820, %v4837
          %v4839 = vsel %vm4825, %v4836, %v4838
          %v4840 = vshll.u32 %v4800, 8
          %v4841 = vand.u32 %v4840, 65535
          %v4842 = vshrl.u32 %v4840, 16
          %v4843 = vand.u32 %v4839, 65535
          %v4844 = vshrl.u32 %v4839, 16
          %v4845 = vmul.u32 %v4841, %v4843
          %v4846 = vmul.u32 %v4841, %v4844
          %v4847 = vmul.u32 %v4842, %v4843
          %v4848 = vmul.u32 %v4842, %v4844
          %v4849 = vshll.u32 %v4846, 16
          %v4850 = vshrl.u32 %v4846, 16
          %v4851 = vshll.u32 %v4847, 16
          %v4852 = vshrl.u32 %v4847, 16
          %vm4853 = vc.u32 %v4845, %v4849
          %v4854 = vsel %vm4853, 1, 0
          %v4855 = vadd.s32 %v4845, %v4849
          %v4856 = vadd.s32 %v4848, %v4854
          %vm4857 = vc.u32 %v4855, %v4851
          %v4858 = vsel %vm4857, 1, 0
          %v4859 = vadd.s32 %v4855, %v4851
          %v4860 = vadd.s32 %v4856, %v4858
          %v4861 = vadd.s32 %v4860, %v4850
          %v4862 = vadd.s32 %v4861, %v4852
          %v4863 = vand.u32 %v4840, 65535
          %v4864 = vshrl.u32 %v4840, 16
          %v4865 = vand.u32 %v4835, 65535
          %v4866 = vshrl.u32 %v4835, 16
          %v4867 = vmul.u32 %v4863, %v4865
          %v4868 = vmul.u32 %v4863, %v4866
          %v4869 = vmul.u32 %v4864, %v4865
          %v4870 = vmul.u32 %v4864, %v4866
          %v4871 = vshll.u32 %v4868, 16
          %v4872 = vshrl.u32 %v4868, 16
          %v4873 = vshll.u32 %v4869, 16
          %v4874 = vshrl.u32 %v4869, 16
          %vm4875 = vc.u32 %v4867, %v4871
          %v4876 = vsel %vm4875, 1, 0
          %v4877 = vadd.s32 %v4867, %v4871
          %v4878 = vadd.s32 %v4870, %v4876
          %vm4879 = vc.u32 %v4877, %v4873
          %v4880 = vsel %vm4879, 1, 0
          %v4881 = vadd.s32 %v4877, %v4873
          %v4882 = vadd.s32 %v4878, %v4880
          %v4883 = vadd.s32 %v4882, %v4872
          %v4884 = vadd.s32 %v4883, %v4874
          %v4885 = vmul.u32 %v4840, %v4831
          %v4886 = vadd.s32 %v4862, %v4881
          %vm4887 = vc.u32 %v4862, %v4881
          %v4888 = vadd.s32 %v4884, 1
          %v4889 = vsel %vm4887, %v4888, %v4884
          %v4890 = vadd.s32 %v4885, %v4889
          %v4891 = vadd.s32 %v4890, 536870912
          %v4892 = vshrl.u32 %v4891, 30
          %v4893 = vshll.u32 %v4892, 30
          %v4894 = vsub.s32 %v4890, %v4893
          %vm4895 = vcmp.lt.s32.totalorder %v4894, 0
          %v4896 = vsub.s32 0, %v4894
          %v4897 = vsel %vm4895, %v4896, %v4894
          %v4898 = vclz %v4897
          %v4899 = vsub.s32 %v4898, 2
          %vm4900 = vcmp.gt.s32.totalorder 0, %v4899
          %v4901 = vsel %vm4900, 0, %v4899
          %v4902 = vsub.s32 32, %v4901
          %v4903 = vshll.u32 %v4894, %v4901
          %v4904 = vshrl.u32 %v4886, %v4902
          %v4905 = vor.u32 %v4903, %v4904
          %v4906 = vsub.s32 4294967266, %v4901
          %v4907 = vadd.s32 %v4906, 127
          %v4908 = vshll.u32 %v4907, 23
          %v4909 = vor.u32 4788187, %v4908
          %v4910 = vand.u32 2147483647, %v4909
          %v4912 = vcvt.s32.f32 %v4905
          %v4913 = vmul.f32 %v4912, %v4910
          %v4914 = vxor.u32 %v4913, 2147483648
          %v4915 = vsel %vm4794, %v4914, %v4913
          %v4916 = vsub.s32 4, %v4892
          %v4917 = vsel %vm4794, %v4916, %v4892
          %v4918 = vsel %vm4793, %v419, %v4915
          %v4919 = vsel %vm4793, 0, %v4917
          %v4920 = vmul.f32 %v4918, %v4918
          %v4921 = vmul.f32 %v4920, -0.001358992
          %v4922 = vadd.f32 %v4921, 0.041655596
          %v4923 = vmul.f32 %v4920, %v4922
          %v4924 = vadd.f32 %v4923, -0.4999988
          %v4925 = vmul.f32 %v4920, %v4924
          %v4926 = vadd.f32 1.0, %v4925
          %v4927 = vmul.f32 %v4918, %v4918
          %v4928 = vmul.f32 %v4927, -0.00019511016
          %v4929 = vadd.f32 %v4928, 0.008332121
          %v4930 = vmul.f32 %v4927, %v4929
          %v4931 = vadd.f32 %v4930, -0.16666654
          %v4932 = vmul.f32 %v4927, %v4931
          %v4933 = vadd.f32 %v4932, 1.0
          %v4934 = vmul.f32 %v4933, %v4918
          %vm4935 = vweird.f32 %v419
          %v4936 = vand.u32 %v4919, 3
          %vm4937 = vcmp.lt.s32.totalorder %v4936, 2
          %vm4938 = vcmp.eq.s32.totalorder %v4936, 0
          %v4939 = vxor.u32 %v4934, 2147483648
          %v4940 = vsel %vm4938, %v4926, %v4939
          %vm4941 = vcmp.eq.s32.totalorder %v4936, 2
          %v4942 = vxor.u32 %v4926, 2147483648
          %v4943 = vsel %vm4941, %v4942, %v4934
          %v4944 = vsel %vm4937, %v4940, %v4943
          %v4945 = vsel %vm4935, nan, %v4944
          %v4946 = vand.u32 2147483647, %v422
          %vm4947 = vcmp.le.f32.partialorder %v4946, 0.7853982
          %vm4948 = vcmp.lt.s32.totalorder %v422, 0
          %v4949 = vand.u32 %v422, 2139095040
          %v4950 = vshrl.u32 %v4949, 23
          %v4951 = vsub.s32 %v4950, 127
          %v4952 = vand.u32 2147483647, %v422
          %v4953 = vand.u32 %v4952, 8388607
          %v4954 = vor.u32 %v4953, 8388608
          %v4955 = vsub.s32 0, %v4954
          %v4956 = vadd.s32 %v4951, 1
          %vm4957 = vcmp.gt.s32.totalorder %v4956, 0
          %v4958 = vsel %vm4957, %v4956, 0
          %v4959 = vshrl.u32 %v4958, 5
          %v4960 = vand.u32 %v4958, 31
          %v4961 = vsub.s32 32, %v4960
          %v4962 = vshrl.u32 683565275, %v4961
          %v4963 = vshll.u32 683565275, %v4960
          %v4964 = vshrl.u32 2475754826, %v4961
          %v4965 = vor.u32 %v4963, %v4964
          %v4966 = vshll.u32 2475754826, %v4960
          %v4967 = vshrl.u32 2131351028, %v4961
          %v4968 = vor.u32 %v4966, %v4967
          %v4969 = vshll.u32 2131351028, %v4960
          %v4970 = vshrl.u32 2102212464, %v4961
          %v4971 = vor.u32 %v4969, %v4970
          %v4972 = vshll.u32 2102212464, %v4960
          %v4973 = vshrl.u32 920167782, %v4961
          %v4974 = vor.u32 %v4972, %v4973
          %v4975 = vshll.u32 920167782, %v4960
          %v4976 = vshrl.u32 1326507024, %v4961
          %v4977 = vor.u32 %v4975, %v4976
          %vm4978 = vcmp.lt.s32.totalorder %v4959, 1
          %vm4979 = vcmp.lt.s32.totalorder %v4959, 2
          %vm4980 = vcmp.lt.s32.totalorder %v4959, 3
          %vm4981 = vcmp.lt.s32.totalorder %v4959, 4
          %v4982 = vsel %vm4978, %v4962, %v4965
          %v4983 = vsel %vm4981, %v4971, 2102212464
          %v4984 = vsel %vm4980, %v4968, %v4983
          %v4985 = vsel %vm4979, %v4982, %v4984
          %v4986 = vsel %vm4978, %v4965, %v4968
          %v4987 = vsel %vm4981, %v4974, 920167782
          %v4988 = vsel %vm4980, %v4971, %v4987
          %v4989 = vsel %vm4979, %v4986, %v4988
          %v4990 = vsel %vm4978, %v4968, %v4971
          %v4991 = vsel %vm4981, %v4977, 1326507024
          %v4992 = vsel %vm4980, %v4974, %v4991
          %v4993 = vsel %vm4979, %v4990, %v4992
          %v4994 = vshll.u32 %v4954, 8
          %v4995 = vand.u32 %v4994, 65535
          %v4996 = vshrl.u32 %v4994, 16
          %v4997 = vand.u32 %v4993, 65535
          %v4998 = vshrl.u32 %v4993, 16
          %v4999 = vmul.u32 %v4995, %v4997
          %v5000 = vmul.u32 %v4995, %v4998
          %v5001 = vmul.u32 %v4996, %v4997
          %v5002 = vmul.u32 %v4996, %v4998
          %v5003 = vshll.u32 %v5000, 16
          %v5004 = vshrl.u32 %v5000, 16
          %v5005 = vshll.u32 %v5001, 16
          %v5006 = vshrl.u32 %v5001, 16
          %vm5007 = vc.u32 %v4999, %v5003
          %v5008 = vsel %vm5007, 1, 0
          %v5009 = vadd.s32 %v4999, %v5003
          %v5010 = vadd.s32 %v5002, %v5008
          %vm5011 = vc.u32 %v5009, %v5005
          %v5012 = vsel %vm5011, 1, 0
          %v5013 = vadd.s32 %v5009, %v5005
          %v5014 = vadd.s32 %v5010, %v5012
          %v5015 = vadd.s32 %v5014, %v5004
          %v5016 = vadd.s32 %v5015, %v5006
          %v5017 = vand.u32 %v4994, 65535
          %v5018 = vshrl.u32 %v4994, 16
          %v5019 = vand.u32 %v4989, 65535
          %v5020 = vshrl.u32 %v4989, 16
          %v5021 = vmul.u32 %v5017, %v5019
          %v5022 = vmul.u32 %v5017, %v5020
          %v5023 = vmul.u32 %v5018, %v5019
          %v5024 = vmul.u32 %v5018, %v5020
          %v5025 = vshll.u32 %v5022, 16
          %v5026 = vshrl.u32 %v5022, 16
          %v5027 = vshll.u32 %v5023, 16
          %v5028 = vshrl.u32 %v5023, 16
          %vm5029 = vc.u32 %v5021, %v5025
          %v5030 = vsel %vm5029, 1, 0
          %v5031 = vadd.s32 %v5021, %v5025
          %v5032 = vadd.s32 %v5024, %v5030
          %vm5033 = vc.u32 %v5031, %v5027
          %v5034 = vsel %vm5033, 1, 0
          %v5035 = vadd.s32 %v5031, %v5027
          %v5036 = vadd.s32 %v5032, %v5034
          %v5037 = vadd.s32 %v5036, %v5026
          %v5038 = vadd.s32 %v5037, %v5028
          %v5039 = vmul.u32 %v4994, %v4985
          %v5040 = vadd.s32 %v5016, %v5035
          %vm5041 = vc.u32 %v5016, %v5035
          %v5042 = vadd.s32 %v5038, 1
          %v5043 = vsel %vm5041, %v5042, %v5038
          %v5044 = vadd.s32 %v5039, %v5043
          %v5045 = vadd.s32 %v5044, 536870912
          %v5046 = vshrl.u32 %v5045, 30
          %v5047 = vshll.u32 %v5046, 30
          %v5048 = vsub.s32 %v5044, %v5047
          %vm5049 = vcmp.lt.s32.totalorder %v5048, 0
          %v5050 = vsub.s32 0, %v5048
          %v5051 = vsel %vm5049, %v5050, %v5048
          %v5052 = vclz %v5051
          %v5053 = vsub.s32 %v5052, 2
          %vm5054 = vcmp.gt.s32.totalorder 0, %v5053
          %v5055 = vsel %vm5054, 0, %v5053
          %v5056 = vsub.s32 32, %v5055
          %v5057 = vshll.u32 %v5048, %v5055
          %v5058 = vshrl.u32 %v5040, %v5056
          %v5059 = vor.u32 %v5057, %v5058
          %v5060 = vsub.s32 4294967266, %v5055
          %v5061 = vadd.s32 %v5060, 127
          %v5062 = vshll.u32 %v5061, 23
          %v5063 = vor.u32 4788187, %v5062
          %v5064 = vand.u32 2147483647, %v5063
          %v5066 = vcvt.s32.f32 %v5059
          %v5067 = vmul.f32 %v5066, %v5064
          %v5068 = vxor.u32 %v5067, 2147483648
          %v5069 = vsel %vm4948, %v5068, %v5067
          %v5070 = vsub.s32 4, %v5046
          %v5071 = vsel %vm4948, %v5070, %v5046
          %v5072 = vsel %vm4947, %v422, %v5069
          %v5073 = vsel %vm4947, 0, %v5071
          %v5074 = vmul.f32 %v5072, %v5072
          %v5075 = vmul.f32 %v5074, -0.001358992
          %v5076 = vadd.f32 %v5075, 0.041655596
          %v5077 = vmul.f32 %v5074, %v5076
          %v5078 = vadd.f32 %v5077, -0.4999988
          %v5079 = vmul.f32 %v5074, %v5078
          %v5080 = vadd.f32 1.0, %v5079
          %v5081 = vmul.f32 %v5072, %v5072
          %v5082 = vmul.f32 %v5081, -0.00019511016
          %v5083 = vadd.f32 %v5082, 0.008332121
          %v5084 = vmul.f32 %v5081, %v5083
          %v5085 = vadd.f32 %v5084, -0.16666654
          %v5086 = vmul.f32 %v5081, %v5085
          %v5087 = vadd.f32 %v5086, 1.0
          %v5088 = vmul.f32 %v5087, %v5072
          %vm5089 = vweird.f32 %v422
          %v5090 = vand.u32 %v5073, 3
          %vm5091 = vcmp.lt.s32.totalorder %v5090, 2
          %vm5092 = vcmp.eq.s32.totalorder %v5090, 0
          %v5093 = vxor.u32 %v5088, 2147483648
          %v5094 = vsel %vm5092, %v5080, %v5093
          %vm5095 = vcmp.eq.s32.totalorder %v5090, 2
          %v5096 = vxor.u32 %v5080, 2147483648
          %v5097 = vsel %vm5095, %v5096, %v5088
          %v5098 = vsel %vm5091, %v5094, %v5097
          %v5099 = vsel %vm5089, nan, %v5098
          %v5100 = vand.u32 2147483647, %v425
          %vm5101 = vcmp.le.f32.partialorder %v5100, 0.7853982
          %vm5102 = vcmp.lt.s32.totalorder %v425, 0
          %v5103 = vand.u32 %v425, 2139095040
          %v5104 = vshrl.u32 %v5103, 23
          %v5105 = vsub.s32 %v5104, 127
          %v5106 = vand.u32 2147483647, %v425
          %v5107 = vand.u32 %v5106, 8388607
          %v5108 = vor.u32 %v5107, 8388608
          %v5109 = vsub.s32 0, %v5108
          %v5110 = vadd.s32 %v5105, 1
          %vm5111 = vcmp.gt.s32.totalorder %v5110, 0
          %v5112 = vsel %vm5111, %v5110, 0
          %v5113 = vshrl.u32 %v5112, 5
          %v5114 = vand.u32 %v5112, 31
          %v5115 = vsub.s32 32, %v5114
          %v5116 = vshrl.u32 683565275, %v5115
          %v5117 = vshll.u32 683565275, %v5114
          %v5118 = vshrl.u32 2475754826, %v5115
          %v5119 = vor.u32 %v5117, %v5118
          %v5120 = vshll.u32 2475754826, %v5114
          %v5121 = vshrl.u32 2131351028, %v5115
          %v5122 = vor.u32 %v5120, %v5121
          %v5123 = vshll.u32 2131351028, %v5114
          %v5124 = vshrl.u32 2102212464, %v5115
          %v5125 = vor.u32 %v5123, %v5124
          %v5126 = vshll.u32 2102212464, %v5114
          %v5127 = vshrl.u32 920167782, %v5115
          %v5128 = vor.u32 %v5126, %v5127
          %v5129 = vshll.u32 920167782, %v5114
          %v5130 = vshrl.u32 1326507024, %v5115
          %v5131 = vor.u32 %v5129, %v5130
          %vm5132 = vcmp.lt.s32.totalorder %v5113, 1
          %vm5133 = vcmp.lt.s32.totalorder %v5113, 2
          %vm5134 = vcmp.lt.s32.totalorder %v5113, 3
          %vm5135 = vcmp.lt.s32.totalorder %v5113, 4
          %v5136 = vsel %vm5132, %v5116, %v5119
          %v5137 = vsel %vm5135, %v5125, 2102212464
          %v5138 = vsel %vm5134, %v5122, %v5137
          %v5139 = vsel %vm5133, %v5136, %v5138
          %v5140 = vsel %vm5132, %v5119, %v5122
          %v5141 = vsel %vm5135, %v5128, 920167782
          %v5142 = vsel %vm5134, %v5125, %v5141
          %v5143 = vsel %vm5133, %v5140, %v5142
          %v5144 = vsel %vm5132, %v5122, %v5125
          %v5145 = vsel %vm5135, %v5131, 1326507024
          %v5146 = vsel %vm5134, %v5128, %v5145
          %v5147 = vsel %vm5133, %v5144, %v5146
          %v5148 = vshll.u32 %v5108, 8
          %v5149 = vand.u32 %v5148, 65535
          %v5150 = vshrl.u32 %v5148, 16
          %v5151 = vand.u32 %v5147, 65535
          %v5152 = vshrl.u32 %v5147, 16
          %v5153 = vmul.u32 %v5149, %v5151
          %v5154 = vmul.u32 %v5149, %v5152
          %v5155 = vmul.u32 %v5150, %v5151
          %v5156 = vmul.u32 %v5150, %v5152
          %v5157 = vshll.u32 %v5154, 16
          %v5158 = vshrl.u32 %v5154, 16
          %v5159 = vshll.u32 %v5155, 16
          %v5160 = vshrl.u32 %v5155, 16
          %vm5161 = vc.u32 %v5153, %v5157
          %v5162 = vsel %vm5161, 1, 0
          %v5163 = vadd.s32 %v5153, %v5157
          %v5164 = vadd.s32 %v5156, %v5162
          %vm5165 = vc.u32 %v5163, %v5159
          %v5166 = vsel %vm5165, 1, 0
          %v5167 = vadd.s32 %v5163, %v5159
          %v5168 = vadd.s32 %v5164, %v5166
          %v5169 = vadd.s32 %v5168, %v5158
          %v5170 = vadd.s32 %v5169, %v5160
          %v5171 = vand.u32 %v5148, 65535
          %v5172 = vshrl.u32 %v5148, 16
          %v5173 = vand.u32 %v5143, 65535
          %v5174 = vshrl.u32 %v5143, 16
          %v5175 = vmul.u32 %v5171, %v5173
          %v5176 = vmul.u32 %v5171, %v5174
          %v5177 = vmul.u32 %v5172, %v5173
          %v5178 = vmul.u32 %v5172, %v5174
          %v5179 = vshll.u32 %v5176, 16
          %v5180 = vshrl.u32 %v5176, 16
          %v5181 = vshll.u32 %v5177, 16
          %v5182 = vshrl.u32 %v5177, 16
          %vm5183 = vc.u32 %v5175, %v5179
          %v5184 = vsel %vm5183, 1, 0
          %v5185 = vadd.s32 %v5175, %v5179
          %v5186 = vadd.s32 %v5178, %v5184
          %vm5187 = vc.u32 %v5185, %v5181
          %v5188 = vsel %vm5187, 1, 0
          %v5189 = vadd.s32 %v5185, %v5181
          %v5190 = vadd.s32 %v5186, %v5188
          %v5191 = vadd.s32 %v5190, %v5180
          %v5192 = vadd.s32 %v5191, %v5182
          %v5193 = vmul.u32 %v5148, %v5139
          %v5194 = vadd.s32 %v5170, %v5189
          %vm5195 = vc.u32 %v5170, %v5189
          %v5196 = vadd.s32 %v5192, 1
          %v5197 = vsel %vm5195, %v5196, %v5192
          %v5198 = vadd.s32 %v5193, %v5197
          %v5199 = vadd.s32 %v5198, 536870912
          %v5200 = vshrl.u32 %v5199, 30
          %v5201 = vshll.u32 %v5200, 30
          %v5202 = vsub.s32 %v5198, %v5201
          %vm5203 = vcmp.lt.s32.totalorder %v5202, 0
          %v5204 = vsub.s32 0, %v5202
          %v5205 = vsel %vm5203, %v5204, %v5202
          %v5206 = vclz %v5205
          %v5207 = vsub.s32 %v5206, 2
          %vm5208 = vcmp.gt.s32.totalorder 0, %v5207
          %v5209 = vsel %vm5208, 0, %v5207
          %v5210 = vsub.s32 32, %v5209
          %v5211 = vshll.u32 %v5202, %v5209
          %v5212 = vshrl.u32 %v5194, %v5210
          %v5213 = vor.u32 %v5211, %v5212
          %v5214 = vsub.s32 4294967266, %v5209
          %v5215 = vadd.s32 %v5214, 127
          %v5216 = vshll.u32 %v5215, 23
          %v5217 = vor.u32 4788187, %v5216
          %v5218 = vand.u32 2147483647, %v5217
          %v5220 = vcvt.s32.f32 %v5213
          %v5221 = vmul.f32 %v5220, %v5218
          %v5222 = vxor.u32 %v5221, 2147483648
          %v5223 = vsel %vm5102, %v5222, %v5221
          %v5224 = vsub.s32 4, %v5200
          %v5225 = vsel %vm5102, %v5224, %v5200
          %v5226 = vsel %vm5101, %v425, %v5223
          %v5227 = vsel %vm5101, 0, %v5225
          %v5228 = vmul.f32 %v5226, %v5226
          %v5229 = vmul.f32 %v5228, -0.001358992
          %v5230 = vadd.f32 %v5229, 0.041655596
          %v5231 = vmul.f32 %v5228, %v5230
          %v5232 = vadd.f32 %v5231, -0.4999988
          %v5233 = vmul.f32 %v5228, %v5232
          %v5234 = vadd.f32 1.0, %v5233
          %v5235 = vmul.f32 %v5226, %v5226
          %v5236 = vmul.f32 %v5235, -0.00019511016
          %v5237 = vadd.f32 %v5236, 0.008332121
          %v5238 = vmul.f32 %v5235, %v5237
          %v5239 = vadd.f32 %v5238, -0.16666654
          %v5240 = vmul.f32 %v5235, %v5239
          %v5241 = vadd.f32 %v5240, 1.0
          %v5242 = vmul.f32 %v5241, %v5226
          %vm5243 = vweird.f32 %v425
          %v5244 = vand.u32 %v5227, 3
          %vm5245 = vcmp.lt.s32.totalorder %v5244, 2
          %vm5246 = vcmp.eq.s32.totalorder %v5244, 0
          %v5247 = vxor.u32 %v5242, 2147483648
          %v5248 = vsel %vm5246, %v5234, %v5247
          %vm5249 = vcmp.eq.s32.totalorder %v5244, 2
          %v5250 = vxor.u32 %v5234, 2147483648
          %v5251 = vsel %vm5249, %v5250, %v5242
          %v5252 = vsel %vm5245, %v5248, %v5251
          %v5253 = vsel %vm5243, nan, %v5252
          %v5254 = vand.u32 2147483647, %v428
          %vm5255 = vcmp.le.f32.partialorder %v5254, 0.7853982
          %vm5256 = vcmp.lt.s32.totalorder %v428, 0
          %v5257 = vand.u32 %v428, 2139095040
          %v5258 = vshrl.u32 %v5257, 23
          %v5259 = vsub.s32 %v5258, 127
          %v5260 = vand.u32 2147483647, %v428
          %v5261 = vand.u32 %v5260, 8388607
          %v5262 = vor.u32 %v5261, 8388608
          %v5263 = vsub.s32 0, %v5262
          %v5264 = vadd.s32 %v5259, 1
          %vm5265 = vcmp.gt.s32.totalorder %v5264, 0
          %v5266 = vsel %vm5265, %v5264, 0
          %v5267 = vshrl.u32 %v5266, 5
          %v5268 = vand.u32 %v5266, 31
          %v5269 = vsub.s32 32, %v5268
          %v5270 = vshrl.u32 683565275, %v5269
          %v5271 = vshll.u32 683565275, %v5268
          %v5272 = vshrl.u32 2475754826, %v5269
          %v5273 = vor.u32 %v5271, %v5272
          %v5274 = vshll.u32 2475754826, %v5268
          %v5275 = vshrl.u32 2131351028, %v5269
          %v5276 = vor.u32 %v5274, %v5275
          %v5277 = vshll.u32 2131351028, %v5268
          %v5278 = vshrl.u32 2102212464, %v5269
          %v5279 = vor.u32 %v5277, %v5278
          %v5280 = vshll.u32 2102212464, %v5268
          %v5281 = vshrl.u32 920167782, %v5269
          %v5282 = vor.u32 %v5280, %v5281
          %v5283 = vshll.u32 920167782, %v5268
          %v5284 = vshrl.u32 1326507024, %v5269
          %v5285 = vor.u32 %v5283, %v5284
          %vm5286 = vcmp.lt.s32.totalorder %v5267, 1
          %vm5287 = vcmp.lt.s32.totalorder %v5267, 2
          %vm5288 = vcmp.lt.s32.totalorder %v5267, 3
          %vm5289 = vcmp.lt.s32.totalorder %v5267, 4
          %v5290 = vsel %vm5286, %v5270, %v5273
          %v5291 = vsel %vm5289, %v5279, 2102212464
          %v5292 = vsel %vm5288, %v5276, %v5291
          %v5293 = vsel %vm5287, %v5290, %v5292
          %v5294 = vsel %vm5286, %v5273, %v5276
          %v5295 = vsel %vm5289, %v5282, 920167782
          %v5296 = vsel %vm5288, %v5279, %v5295
          %v5297 = vsel %vm5287, %v5294, %v5296
          %v5298 = vsel %vm5286, %v5276, %v5279
          %v5299 = vsel %vm5289, %v5285, 1326507024
          %v5300 = vsel %vm5288, %v5282, %v5299
          %v5301 = vsel %vm5287, %v5298, %v5300
          %v5302 = vshll.u32 %v5262, 8
          %v5303 = vand.u32 %v5302, 65535
          %v5304 = vshrl.u32 %v5302, 16
          %v5305 = vand.u32 %v5301, 65535
          %v5306 = vshrl.u32 %v5301, 16
          %v5307 = vmul.u32 %v5303, %v5305
          %v5308 = vmul.u32 %v5303, %v5306
          %v5309 = vmul.u32 %v5304, %v5305
          %v5310 = vmul.u32 %v5304, %v5306
          %v5311 = vshll.u32 %v5308, 16
          %v5312 = vshrl.u32 %v5308, 16
          %v5313 = vshll.u32 %v5309, 16
          %v5314 = vshrl.u32 %v5309, 16
          %vm5315 = vc.u32 %v5307, %v5311
          %v5316 = vsel %vm5315, 1, 0
          %v5317 = vadd.s32 %v5307, %v5311
          %v5318 = vadd.s32 %v5310, %v5316
          %vm5319 = vc.u32 %v5317, %v5313
          %v5320 = vsel %vm5319, 1, 0
          %v5321 = vadd.s32 %v5317, %v5313
          %v5322 = vadd.s32 %v5318, %v5320
          %v5323 = vadd.s32 %v5322, %v5312
          %v5324 = vadd.s32 %v5323, %v5314
          %v5325 = vand.u32 %v5302, 65535
          %v5326 = vshrl.u32 %v5302, 16
          %v5327 = vand.u32 %v5297, 65535
          %v5328 = vshrl.u32 %v5297, 16
          %v5329 = vmul.u32 %v5325, %v5327
          %v5330 = vmul.u32 %v5325, %v5328
          %v5331 = vmul.u32 %v5326, %v5327
          %v5332 = vmul.u32 %v5326, %v5328
          %v5333 = vshll.u32 %v5330, 16
          %v5334 = vshrl.u32 %v5330, 16
          %v5335 = vshll.u32 %v5331, 16
          %v5336 = vshrl.u32 %v5331, 16
          %vm5337 = vc.u32 %v5329, %v5333
          %v5338 = vsel %vm5337, 1, 0
          %v5339 = vadd.s32 %v5329, %v5333
          %v5340 = vadd.s32 %v5332, %v5338
          %vm5341 = vc.u32 %v5339, %v5335
          %v5342 = vsel %vm5341, 1, 0
          %v5343 = vadd.s32 %v5339, %v5335
          %v5344 = vadd.s32 %v5340, %v5342
          %v5345 = vadd.s32 %v5344, %v5334
          %v5346 = vadd.s32 %v5345, %v5336
          %v5347 = vmul.u32 %v5302, %v5293
          %v5348 = vadd.s32 %v5324, %v5343
          %vm5349 = vc.u32 %v5324, %v5343
          %v5350 = vadd.s32 %v5346, 1
          %v5351 = vsel %vm5349, %v5350, %v5346
          %v5352 = vadd.s32 %v5347, %v5351
          %v5353 = vadd.s32 %v5352, 536870912
          %v5354 = vshrl.u32 %v5353, 30
          %v5355 = vshll.u32 %v5354, 30
          %v5356 = vsub.s32 %v5352, %v5355
          %vm5357 = vcmp.lt.s32.totalorder %v5356, 0
          %v5358 = vsub.s32 0, %v5356
          %v5359 = vsel %vm5357, %v5358, %v5356
          %v5360 = vclz %v5359
          %v5361 = vsub.s32 %v5360, 2
          %vm5362 = vcmp.gt.s32.totalorder 0, %v5361
          %v5363 = vsel %vm5362, 0, %v5361
          %v5364 = vsub.s32 32, %v5363
          %v5365 = vshll.u32 %v5356, %v5363
          %v5366 = vshrl.u32 %v5348, %v5364
          %v5367 = vor.u32 %v5365, %v5366
          %v5368 = vsub.s32 4294967266, %v5363
          %v5369 = vadd.s32 %v5368, 127
          %v5370 = vshll.u32 %v5369, 23
          %v5371 = vor.u32 4788187, %v5370
          %v5372 = vand.u32 2147483647, %v5371
          %v5374 = vcvt.s32.f32 %v5367
          %v5375 = vmul.f32 %v5374, %v5372
          %v5376 = vxor.u32 %v5375, 2147483648
          %v5377 = vsel %vm5256, %v5376, %v5375
          %v5378 = vsub.s32 4, %v5354
          %v5379 = vsel %vm5256, %v5378, %v5354
          %v5380 = vsel %vm5255, %v428, %v5377
          %v5381 = vsel %vm5255, 0, %v5379
          %v5382 = vmul.f32 %v5380, %v5380
          %v5383 = vmul.f32 %v5382, -0.001358992
          %v5384 = vadd.f32 %v5383, 0.041655596
          %v5385 = vmul.f32 %v5382, %v5384
          %v5386 = vadd.f32 %v5385, -0.4999988
          %v5387 = vmul.f32 %v5382, %v5386
          %v5388 = vadd.f32 1.0, %v5387
          %v5389 = vmul.f32 %v5380, %v5380
          %v5390 = vmul.f32 %v5389, -0.00019511016
          %v5391 = vadd.f32 %v5390, 0.008332121
          %v5392 = vmul.f32 %v5389, %v5391
          %v5393 = vadd.f32 %v5392, -0.16666654
          %v5394 = vmul.f32 %v5389, %v5393
          %v5395 = vadd.f32 %v5394, 1.0
          %v5396 = vmul.f32 %v5395, %v5380
          %vm5397 = vweird.f32 %v428
          %v5398 = vand.u32 %v5381, 3
          %vm5399 = vcmp.lt.s32.totalorder %v5398, 2
          %vm5400 = vcmp.eq.s32.totalorder %v5398, 0
          %v5401 = vxor.u32 %v5396, 2147483648
          %v5402 = vsel %vm5400, %v5388, %v5401
          %vm5403 = vcmp.eq.s32.totalorder %v5398, 2
          %v5404 = vxor.u32 %v5388, 2147483648
          %v5405 = vsel %vm5403, %v5404, %v5396
          %v5406 = vsel %vm5399, %v5402, %v5405
          %v5407 = vsel %vm5397, nan, %v5406
          %5424 = vrot.lane.b32.xlu0 %v3097, 12
          %v5425 = vpop.permute.xlu0 %5424
          %5426 = vrot.lane.b32.xlu0 %v3251, 12
          %v5427 = vpop.permute.xlu0 %5426
          %5428 = vrot.lane.b32.xlu0 %v3405, 12
          %v5429 = vpop.permute.xlu0 %5428
          %5430 = vrot.lane.b32.xlu0 %v3559, 12
          %v5431 = vpop.permute.xlu0 %5430
          %5432 = vrot.lane.b32.xlu0 %v3713, 12
          %v5433 = vpop.permute.xlu0 %5432
          %5434 = vrot.lane.b32.xlu0 %v3867, 12
          %v5435 = vpop.permute.xlu0 %5434
          %5436 = vrot.lane.b32.xlu0 %v4021, 12
          %v5437 = vpop.permute.xlu0 %5436
          %5438 = vrot.lane.b32.xlu0 %v4175, 12
          %v5439 = vpop.permute.xlu0 %5438
          %5440 = vrot.lane.b32.xlu0 %v4329, 12
          %v5441 = vpop.permute.xlu0 %5440
          %5442 = vrot.lane.b32.xlu0 %v4483, 12
          %v5443 = vpop.permute.xlu0 %5442
          %5444 = vrot.lane.b32.xlu0 %v4637, 12
          %v5445 = vpop.permute.xlu0 %5444
          %5446 = vrot.lane.b32.xlu0 %v4791, 12
          %v5447 = vpop.permute.xlu0 %5446
          %5448 = vrot.lane.b32.xlu0 %v4945, 12
          %v5449 = vpop.permute.xlu0 %5448
          %5450 = vrot.lane.b32.xlu0 %v5099, 12
          %v5451 = vpop.permute.xlu0 %5450
          %5452 = vrot.lane.b32.xlu0 %v5253, 12
          %v5453 = vpop.permute.xlu0 %5452
          %5454 = vrot.lane.b32.xlu0 %v5407, 12
          %v5455 = vpop.permute.xlu0 %5454
          %vm5472 = vcmask 220280
          %5473 = vst.msk [vmem:[#allocation2] sm:$0xff] %vm5472, %v5425
          %5474 = vst.msk [vmem:[#allocation2 + $0x8] sm:$0xff] %vm5472, %v5427
          %5475 = vst.msk [vmem:[#allocation2 + $0x10] sm:$0xff] %vm5472, %v5429
          %5476 = vst.msk [vmem:[#allocation2 + $0x18] sm:$0xff] %vm5472, %v5431
          %5477 = vst.msk [vmem:[#allocation2 + $0x20] sm:$0xff] %vm5472, %v5433
          %5478 = vst.msk [vmem:[#allocation2 + $0x28] sm:$0xff] %vm5472, %v5435
          %5479 = vst.msk [vmem:[#allocation2 + $0x30] sm:$0xff] %vm5472, %v5437
          %5480 = vst.msk [vmem:[#allocation2 + $0x38] sm:$0xff] %vm5472, %v5439
          %5481 = vst.msk [vmem:[#allocation2 + $0x40] sm:$0xff] %vm5472, %v5441
          %5482 = vst.msk [vmem:[#allocation2 + $0x48] sm:$0xff] %vm5472, %v5443
          %5483 = vst.msk [vmem:[#allocation2 + $0x50] sm:$0xff] %vm5472, %v5445
          %5484 = vst.msk [vmem:[#allocation2 + $0x58] sm:$0xff] %vm5472, %v5447
          %5485 = vst.msk [vmem:[#allocation2 + $0x60] sm:$0xff] %vm5472, %v5449
          %5486 = vst.msk [vmem:[#allocation2 + $0x68] sm:$0xff] %vm5472, %v5451
          %5487 = vst.msk [vmem:[#allocation2 + $0x70] sm:$0xff] %vm5472, %v5453
          %5488 = vst.msk [vmem:[#allocation2 + $0x78] sm:$0xff] %vm5472, %v5455
        $region40: #{tpu_custom_call.1} parent=35 // pred_fallthru
          _
        %v5489 = vld [vmem:[#allocation2] sm:$0xff]
        %v5490 = vld [vmem:[#allocation2 + $0x8] sm:$0xff]
        %v5491 = vld [vmem:[#allocation2 + $0x10] sm:$0xff]
        %v5492 = vld [vmem:[#allocation2 + $0x18] sm:$0xff]
        %v5493 = vld [vmem:[#allocation2 + $0x20] sm:$0xff]
        %v5494 = vld [vmem:[#allocation2 + $0x28] sm:$0xff]
        %v5495 = vld [vmem:[#allocation2 + $0x30] sm:$0xff]
        %v5496 = vld [vmem:[#allocation2 + $0x38] sm:$0xff]
        %v5497 = vld [vmem:[#allocation2 + $0x40] sm:$0xff]
        %v5498 = vld [vmem:[#allocation2 + $0x48] sm:$0xff]
        %v5499 = vld [vmem:[#allocation2 + $0x50] sm:$0xff]
        %v5500 = vld [vmem:[#allocation2 + $0x58] sm:$0xff]
        %v5501 = vld [vmem:[#allocation2 + $0x60] sm:$0xff]
        %v5502 = vld [vmem:[#allocation2 + $0x68] sm:$0xff]
        %v5503 = vld [vmem:[#allocation2 + $0x70] sm:$0xff]
        %v5504 = vld [vmem:[#allocation2 + $0x78] sm:$0xff]
        %v5505 = vld [vmem:[%s249] sm:$0xff]
        %v5506 = vld [vmem:[%s249 + $0x8] sm:$0xff]
        %v5507 = vld [vmem:[%s249 + $0x10] sm:$0xff]
        %v5508 = vld [vmem:[%s249 + $0x18] sm:$0xff]
        %v5509 = vld [vmem:[%s249 + $0x20] sm:$0xff]
        %v5510 = vld [vmem:[%s249 + $0x28] sm:$0xff]
        %v5511 = vld [vmem:[%s249 + $0x30] sm:$0x7]
        %v5512 = vld [vmem:[%s249 + $0x38] sm:$0x7]
        %v5513 = vld [vmem:[%s254] sm:$0x3]
        %v5515 = vperm.slane %v5513, 0
        %v5516 = vperm.slane %v5513, 1
        %vm5519 = vcmask 220160
        %v5521 = vsel %vm5519, %v5489, 0
        %v5524 = vsel %vm5519, %v5490, 0
        %v5527 = vsel %vm5519, %v5491, 0
        %v5530 = vsel %vm5519, %v5492, 0
        %v5533 = vsel %vm5519, %v5493, 0
        %v5536 = vsel %vm5519, %v5494, 0
        %v5539 = vsel %vm5519, %v5495, 0
        %v5542 = vsel %vm5519, %v5496, 0
        %v5545 = vsel %vm5519, %v5497, 0
        %v5548 = vsel %vm5519, %v5498, 0
        %v5551 = vsel %vm5519, %v5499, 0
        %v5554 = vsel %vm5519, %v5500, 0
        %v5557 = vsel %vm5519, %v5501, 0
        %v5560 = vsel %vm5519, %v5502, 0
        %v5563 = vsel %vm5519, %v5503, 0
        %v5566 = vsel %vm5519, %v5504, 0
        %vm5568 = vcmask 1042432
        %v5570 = vsel %vm5568, %v5511, 0
        %v5573 = vsel %vm5568, %v5512, 0
        %5575 = vmatpush.msra.mxu0 0.0
        %5576 = vmatpush.msra.mxu0 0.0
        %5577 = vmatpush.msra.mxu0 0.0
        %5578 = vmatpush.msra.mxu0 0.0
        %5579 = vmatpush.msra.mxu0 0.0
        %5580 = vmatpush.msra.mxu0 0.0
        %5581 = vmatpush.msra.mxu0 0.0
        %5582 = vmatpush.msra.mxu0 0.0
        %5583 = vmatpush.msra.mxu0 0.0
        %5584 = vmatpush.msra.mxu0 0.0
        %5585 = vmatpush.msra.mxu0 0.0
        %5586 = vmatpush.msra.mxu0 0.0
        %5587 = vmatpush.msra.mxu0 %v5570
        %5588 = vmatpush.msra.mxu0 %v5509
        %5589 = vmatpush.msra.mxu0 %v5507
        %5590 = vmatpush.msra.mxu0 %v5505
        %5591 = vmatmul.f32.gmra.mxu0 %v5521
        %v5592 = vpop.f32.mrf.mxu0
        %v5593 = vadd.f32 %v5515, %v5592
        %5594 = vmatmul.f32.gmra.mxu0 %v5524
        %v5595 = vpop.f32.mrf.mxu0
        %v5596 = vadd.f32 %v5515, %v5595
        %5597 = vmatmul.f32.gmra.mxu0 %v5527
        %v5598 = vpop.f32.mrf.mxu0
        %v5599 = vadd.f32 %v5515, %v5598
        %5600 = vmatmul.f32.gmra.mxu0 %v5530
        %v5601 = vpop.f32.mrf.mxu0
        %v5602 = vadd.f32 %v5515, %v5601
        %5603 = vmatmul.f32.gmra.mxu0 %v5533
        %v5604 = vpop.f32.mrf.mxu0
        %v5605 = vadd.f32 %v5515, %v5604
        %5606 = vmatmul.f32.gmra.mxu0 %v5536
        %v5607 = vpop.f32.mrf.mxu0
        %v5608 = vadd.f32 %v5515, %v5607
        %5609 = vmatmul.f32.gmra.mxu0 %v5539
        %v5610 = vpop.f32.mrf.mxu0
        %v5611 = vadd.f32 %v5515, %v5610
        %5612 = vmatmul.f32.gmra.mxu0 %v5542
        %v5613 = vpop.f32.mrf.mxu0
        %v5614 = vadd.f32 %v5515, %v5613
        %5615 = vmatmul.f32.gmra.mxu0 %v5545
        %v5616 = vpop.f32.mrf.mxu0
        %v5617 = vadd.f32 %v5515, %v5616
        %5618 = vmatmul.f32.gmra.mxu0 %v5548
        %v5619 = vpop.f32.mrf.mxu0
        %v5620 = vadd.f32 %v5515, %v5619
        %5621 = vmatmul.f32.gmra.mxu0 %v5551
        %v5622 = vpop.f32.mrf.mxu0
        %v5623 = vadd.f32 %v5515, %v5622
        %5624 = vmatmul.f32.gmra.mxu0 %v5554
        %v5625 = vpop.f32.mrf.mxu0
        %v5626 = vadd.f32 %v5515, %v5625
        %5627 = vmatmul.f32.gmra.mxu0 %v5557
        %v5628 = vpop.f32.mrf.mxu0
        %v5629 = vadd.f32 %v5515, %v5628
        %5630 = vmatmul.f32.gmra.mxu0 %v5560
        %v5631 = vpop.f32.mrf.mxu0
        %v5632 = vadd.f32 %v5515, %v5631
        %5633 = vmatmul.f32.gmra.mxu0 %v5563
        %v5634 = vpop.f32.mrf.mxu0
        %v5635 = vadd.f32 %v5515, %v5634
        %5636 = vmatmul.f32.gmra.mxu0 %v5566
        %v5637 = vpop.f32.mrf.mxu0
        %v5638 = vadd.f32 %v5515, %v5637
        %5639 = vdwg.mxu0
        %5640 = vmatpush.msra.mxu0 0.0
        %5641 = vmatpush.msra.mxu0 0.0
        %5642 = vmatpush.msra.mxu0 0.0
        %5643 = vmatpush.msra.mxu0 0.0
        %5644 = vmatpush.msra.mxu0 0.0
        %5645 = vmatpush.msra.mxu0 0.0
        %5646 = vmatpush.msra.mxu0 0.0
        %5647 = vmatpush.msra.mxu0 0.0
        %5648 = vmatpush.msra.mxu0 0.0
        %5649 = vmatpush.msra.mxu0 0.0
        %5650 = vmatpush.msra.mxu0 0.0
        %5651 = vmatpush.msra.mxu0 0.0
        %5652 = vmatpush.msra.mxu0 %v5573
        %5653 = vmatpush.msra.mxu0 %v5510
        %5654 = vmatpush.msra.mxu0 %v5508
        %5655 = vmatpush.msra.mxu0 %v5506
        %5656 = vmatmul.f32.gmra.mxu0 %v5521
        %v5657 = vpop.f32.mrf.mxu0
        %v5658 = vadd.f32 %v5516, %v5657
        %5659 = vmatmul.f32.gmra.mxu0 %v5524
        %v5660 = vpop.f32.mrf.mxu0
        %v5661 = vadd.f32 %v5516, %v5660
        %5662 = vmatmul.f32.gmra.mxu0 %v5527
        %v5663 = vpop.f32.mrf.mxu0
        %v5664 = vadd.f32 %v5516, %v5663
        %5665 = vmatmul.f32.gmra.mxu0 %v5530
        %v5666 = vpop.f32.mrf.mxu0
        %v5667 = vadd.f32 %v5516, %v5666
        %5668 = vmatmul.f32.gmra.mxu0 %v5533
        %v5669 = vpop.f32.mrf.mxu0
        %v5670 = vadd.f32 %v5516, %v5669
        %5671 = vmatmul.f32.gmra.mxu0 %v5536
        %v5672 = vpop.f32.mrf.mxu0
        %v5673 = vadd.f32 %v5516, %v5672
        %5674 = vmatmul.f32.gmra.mxu0 %v5539
        %v5675 = vpop.f32.mrf.mxu0
        %v5676 = vadd.f32 %v5516, %v5675
        %5677 = vmatmul.f32.gmra.mxu0 %v5542
        %v5678 = vpop.f32.mrf.mxu0
        %v5679 = vadd.f32 %v5516, %v5678
        %5680 = vmatmul.f32.gmra.mxu0 %v5545
        %v5681 = vpop.f32.mrf.mxu0
        %v5682 = vadd.f32 %v5516, %v5681
        %5683 = vmatmul.f32.gmra.mxu0 %v5548
        %v5684 = vpop.f32.mrf.mxu0
        %v5685 = vadd.f32 %v5516, %v5684
        %5686 = vmatmul.f32.gmra.mxu0 %v5551
        %v5687 = vpop.f32.mrf.mxu0
        %v5688 = vadd.f32 %v5516, %v5687
        %5689 = vmatmul.f32.gmra.mxu0 %v5554
        %v5690 = vpop.f32.mrf.mxu0
        %v5691 = vadd.f32 %v5516, %v5690
        %5692 = vmatmul.f32.gmra.mxu0 %v5557
        %v5693 = vpop.f32.mrf.mxu0
        %v5694 = vadd.f32 %v5516, %v5693
        %5695 = vmatmul.f32.gmra.mxu0 %v5560
        %v5696 = vpop.f32.mrf.mxu0
        %v5697 = vadd.f32 %v5516, %v5696
        %5698 = vmatmul.f32.gmra.mxu0 %v5563
        %v5699 = vpop.f32.mrf.mxu0
        %v5700 = vadd.f32 %v5516, %v5699
        %5701 = vmatmul.f32.gmra.mxu0 %v5566
        %v5702 = vpop.f32.mrf.mxu0
        %v5703 = vadd.f32 %v5516, %v5702
        %5704 = vdwg.mxu0
        %5705 = vst [vmem:[%s237] sm:$0xff] %v5593
        %5706 = vst [vmem:[%s237 + $0x8] sm:$0xff] %v5658
        %5707 = vst [vmem:[%s237 + $0x10] sm:$0xff] %v5596
        %5708 = vst [vmem:[%s237 + $0x18] sm:$0xff] %v5661
        %5709 = vst [vmem:[%s237 + $0x20] sm:$0xff] %v5599
        %5710 = vst [vmem:[%s237 + $0x28] sm:$0xff] %v5664
        %5711 = vst [vmem:[%s237 + $0x30] sm:$0xff] %v5602
        %5712 = vst [vmem:[%s237 + $0x38] sm:$0xff] %v5667
        %5713 = vst [vmem:[%s237 + $0x40] sm:$0xff] %v5605
        %5714 = vst [vmem:[%s237 + $0x48] sm:$0xff] %v5670
        %5715 = vst [vmem:[%s237 + $0x50] sm:$0xff] %v5608
        %5716 = vst [vmem:[%s237 + $0x58] sm:$0xff] %v5673
        %5717 = vst [vmem:[%s237 + $0x60] sm:$0xff] %v5611
        %5718 = vst [vmem:[%s237 + $0x68] sm:$0xff] %v5676
        %5719 = vst [vmem:[%s237 + $0x70] sm:$0xff] %v5614
        %5720 = vst [vmem:[%s237 + $0x78] sm:$0xff] %v5679
        %5721 = vst [vmem:[%s237 + $0x80] sm:$0xff] %v5617
        %5722 = vst [vmem:[%s237 + $0x88] sm:$0xff] %v5682
        %5723 = vst [vmem:[%s237 + $0x90] sm:$0xff] %v5620
        %5724 = vst [vmem:[%s237 + $0x98] sm:$0xff] %v5685
        %5725 = vst [vmem:[%s237 + $0xa0] sm:$0xff] %v5623
        %5726 = vst [vmem:[%s237 + $0xa8] sm:$0xff] %v5688
        %5727 = vst [vmem:[%s237 + $0xb0] sm:$0xff] %v5626
        %5728 = vst [vmem:[%s237 + $0xb8] sm:$0xff] %v5691
        %5729 = vst [vmem:[%s237 + $0xc0] sm:$0xff] %v5629
        %5730 = vst [vmem:[%s237 + $0xc8] sm:$0xff] %v5694
        %5731 = vst [vmem:[%s237 + $0xd0] sm:$0xff] %v5632
        %5732 = vst [vmem:[%s237 + $0xd8] sm:$0xff] %v5697
        %5733 = vst [vmem:[%s237 + $0xe0] sm:$0xff] %v5635
        %5734 = vst [vmem:[%s237 + $0xe8] sm:$0xff] %v5700
        %5735 = vst [vmem:[%s237 + $0xf0] sm:$0xff] %v5638
        %5736 = vst [vmem:[%s237 + $0xf8] sm:$0xff] %v5703
        %s5737 = sand.u32 %s139, 1
        %s5738 = scalar_lea.sflag [#allocation4], %s5737
        %s5739 = sand.u32 %s139, 1
        %s5740 = smul.addr %s5739, 256
        %s5741 = scalar_lea.vmem [#allocation3], %s5740
        // Predicated region
        $region41: #{tpu_custom_call.1} parent=35 // pred_check
          %p5742 = pneg %p149
        $region42: #{tpu_custom_call.1} parent=35 // pred_check_branch
          %5744 = sbr.rel (%p5742) target = $region44
        $region43: #{tpu_custom_call.1} parent=35 // pred_region
          %s5745 = smul.u32 16, %s22
          %s5746 = smul.u32 2, %s23
          %5748 = vsyncadd %s5738, 0
          %s5749 = smul.addr %s5745, 2
          %s5750 = sadd.s32 %s5746, %s5749
          %s5751 = smul.addr %s5750, 8
          %s5752 = scalar_lea.hbm %s4, %s5751
          %s5753 = sshll.u32 %s5741, 4
          %s5754 = int_to_ptr.vmem [resolvable:$true] %s5753
          %s5755 = sshll.u32 %s5752, 4
          %s5756 = int_to_ptr.hbm [resolvable:$true] %s5755
          %5761 = dma.vmem_to_hbm [thread:$0]  %s5754, 4096, %s5756, %s5738, 256, 256, 16
        $region44: #{tpu_custom_call.1} parent=35 // pred_fallthru
          _
      $region36: #{tpu_custom_call.1} parent=5 // pred_fallthru
        _
      %p5762 = scmp.le.s32.totalorder 2, %s13
      // Predicated region
      $region45: #{tpu_custom_call.1} parent=5 // pred_check
        %p5763 = pneg %p5762
      $region46: #{tpu_custom_call.1} parent=5 // pred_check_branch
        %5765 = sbr.rel (%p5763) target = $region48
      $region47: #{tpu_custom_call.1} parent=5 // pred_region
        %s5766 = ssub.s32 %s13, 2
        // Predicated region
        $region49: #{tpu_custom_call.1} parent=47 // pred_check
          %p5767 = pneg %p155
        $region50: #{tpu_custom_call.1} parent=47 // pred_check_branch
          %5769 = sbr.rel (%p5767) target = $region52
        $region51: #{tpu_custom_call.1} parent=47 // pred_region
          %s5770 = sand.u32 %s140, 1
          %s5771 = scalar_lea.sflag [#allocation4], %s5770
          %s5772 = sand.u32 %s140, 1
          %s5773 = smul.addr %s5772, 256
          %s5774 = scalar_lea.vmem [#allocation3], %s5773
          %5776 = dma.done %s5771, 4096
        $region52: #{tpu_custom_call.1} parent=47 // pred_fallthru
          _
      $region48: #{tpu_custom_call.1} parent=5 // pred_fallthru
        _
    $region6: #{tpu_custom_call.1} parent=1 // loop_footer
      %s17 = sadd.s32 1, %s13
    $region7: #{tpu_custom_call.1} parent=1 // loop_footer_branch
      %12 = sbr.rel target = $region3
    $region8: #{tpu_custom_call.1} parent=1 // loop_exit
      _
    %5777 = vsyncpa [#allocation4], 1
    %s5778 = scalar_lea.sflag [#allocation4], 1
    %5779 = vsyncpa %s5778, 1

</llo_original>
